<compile_context>
chip_gen: v6e
topology: v6e:2x2x1
jax: 0.10.0
libtpu: 0.0.40
codegen_flags: <defaults>
</compile_context>

<pallas_src>
import functools

import jax
import jax.numpy as jnp
from jax.experimental import pallas as pl
from jax.experimental.pallas import tpu as pltpu

# Layer widths of DeeperModel.fc
DIMS = [1, 64, 128, 256, 256, 128, 64, 1]
NUM_LAYERS = len(DIMS) - 1  # 7 Linear layers

# Per padded batch element: matmul FLOPs and tanh count (for CostEstimate).
MATMUL_FLOPS_PER_ELEM = 2 * sum(DIMS[i] * DIMS[i + 1] for i in range(NUM_LAYERS))
TANH_PER_ELEM = sum(DIMS[1:-1])  # 896


def mlp_kernel(x_ref, *refs, bf16_act):
    """Full MLP for one lane-dense batch tile.

    x_ref : (1, TB)              batch tile, batch on lanes
    refs  : w1, b1, w2, b2, ..., w7, b7, out_ref
      w1  : (64, 1)   f32   -- first-layer column (VPU outer product)
      wi  : (out, in) bf16  -- transposed middle weights (MXU)
      bi  : (out, 1)  bf16 (bf16_act) or f32
      w7  : (64, 1)   f32   -- last-layer column (multiply + sublane reduce)
      b7  : (1, 1)    f32
      out : (1, TB)
    """
    out_ref = refs[-1]
    params = refs[:-1]

    x = x_ref[...].astype(jnp.float32)                        # (1, TB)

    # ---- Layer 1: Linear(1, 64) == outer product, pure VPU (no K=1 matmul) ----
    w1 = params[0][...]                                       # (64, 1) f32
    b1 = params[1][...]                                       # (64, 1) f32
    h = jnp.tanh(w1 * x + b1)                                 # (64, TB) f32
    if bf16_act:
        h = h.astype(jnp.bfloat16)

    # ---- Layers 2..6: MXU matmuls (bf16 in, f32 accumulation) ----
    for i in range(1, NUM_LAYERS - 1):
        wt = params[2 * i][...]                               # (out, in) bf16
        b = params[2 * i + 1][...]                            # (out, 1)
        if bf16_act:
            # bf16 bias add + bf16 tanh (v6e/v7x have bf16 VPU/EUP); the next
            # jnp.dot consumes the bf16 result directly.
            acc = jnp.dot(wt, h, preferred_element_type=jnp.float32)
            h = jnp.tanh(acc.astype(jnp.bfloat16) + b)        # (out, TB) bf16
        else:
            # v5e: keep elementwise work in f32, only MXU operands are bf16.
            acc = jnp.dot(wt, h.astype(jnp.bfloat16),
                          preferred_element_type=jnp.float32) + b
            h = jnp.tanh(acc)                                 # (out, TB) f32

    # ---- Layer 7: Linear(64, 1) == multiply + sublane reduce (no N=1 matmul) ----
    w7 = params[2 * (NUM_LAYERS - 1)][...]                    # (64, 1) f32
    b7 = params[2 * (NUM_LAYERS - 1) + 1][...]                # (1, 1)  f32
    out = jnp.sum(w7 * h.astype(jnp.float32), axis=0, keepdims=True) + b7
    out_ref[...] = out.astype(out_ref.dtype)


def init_params(key, dtype=jnp.float32):
    """Deterministic init mirroring nn.Linear default (U[-1/sqrt(in), 1/sqrt(in)]).

    Weights stored as (in_features, out_features): forward is x @ W + b.
    """
    params = []
    for i in range(NUM_LAYERS):
        fan_in, fan_out = DIMS[i], DIMS[i + 1]
        key, kw, kb = jax.random.split(key, 3)
        bound = 1.0 / (fan_in ** 0.5)
        w = jax.random.uniform(kw, (fan_in, fan_out), dtype, -bound, bound)
        b = jax.random.uniform(kb, (fan_out,), dtype, -bound, bound)
        params.append((w, b))
    return params


def prepare_params(params, *, bf16_act=True):
    """One-time packing: transposes / dtype casts / bias reshapes done OUTSIDE
    the jitted forward so no per-call prep ops sit on the critical path."""
    flat = []
    for li, (w, b) in enumerate(params):
        if li == 0:
            w_arg = jnp.asarray(w).T.astype(jnp.float32)        # (64, 1) VPU column
            b_arg = jnp.asarray(b).reshape(-1, 1).astype(jnp.float32)
        elif li == NUM_LAYERS - 1:
            w_arg = jnp.asarray(w).astype(jnp.float32)          # (64, 1) reduce column
            b_arg = jnp.asarray(b).reshape(-1, 1).astype(jnp.float32)
        else:
            w_arg = jnp.asarray(w).T.astype(jnp.bfloat16)       # (out, in) for MXU
            b_dtype = jnp.bfloat16 if bf16_act else jnp.float32
            b_arg = jnp.asarray(b).reshape(-1, 1).astype(b_dtype)
        flat += [w_arg, b_arg]
    return tuple(flat)


def _default_bf16_act():
    """bf16 bias/tanh on v6e/v7x (bf16 VPU/EUP); f32 elementwise on v5e/older."""
    try:
        kind = jax.devices()[0].device_kind.lower()
    except Exception:
        return True
    return not any(g in kind for g in ("v2", "v3", "v4", "v5"))


def _vmem_limit_bytes():
    """Explicit scoped-VMEM limit so large batch tiles don't trip the
    16/32 MiB defaults; clamped to 3/4 of physical VMEM when queryable."""
    target = 48 * 1024 * 1024
    try:
        cap = int(pltpu.get_tpu_info().vmem_capacity_bytes)
        target = min(target, (cap * 3) // 4)
    except Exception:
        pass
    return target


def choose_tile_b(n, *, max_tile=4096):
    """Pick a lane-dense batch tile: as big as safe (<= max_tile, multiple of
    128) while keeping grid >= 2 when there is enough work (dual-TC v7x) and
    not padding tiny N up to a huge tile.  On v6e (128 MiB VMEM) max_tile=8192
    is also fine."""
    padded = -(-n // 128) * 128
    if padded >= 512:
        tb = -(-(padded // 2) // 128) * 128   # aim for >= 2 grid steps
    else:
        tb = padded
    return max(128, min(max_tile, tb))


@functools.partial(jax.jit, static_argnames=("tile_b", "bf16_act"))
def deeper_model_forward(x, packed_params, *, tile_b=4096, bf16_act=True):
    N, F = x.shape
    assert F == 1, "DeeperModel expects scalar features: x is (N, 1)"
    assert tile_b % 128 == 0, "tile_b must be a multiple of the 128-lane width"

    # Lane-dense layout: batch on the last (lane) axis, zero-padded to tile_b.
    pad = (-N) % tile_b
    xt = jnp.pad(x.reshape(1, N), ((0, 0), (0, pad)))
    n_padded = N + pad

    # x/out: tiled over lanes.  Params: full arrays, VMEM-resident, same block
    # every grid step (fetched once).
    in_specs = [pl.BlockSpec((1, tile_b), lambda i: (0, i))]
    for p in packed_params:
        in_specs.append(pl.BlockSpec(p.shape, lambda i: (0, 0)))

    weight_bytes = sum(int(p.size) * p.dtype.itemsize for p in packed_params)
    cost = pl.CostEstimate(
        flops=MATMUL_FLOPS_PER_ELEM * n_padded,
        transcendentals=TANH_PER_ELEM * n_padded,
        bytes_accessed=2 * 4 * n_padded + weight_bytes,
    )

    out_t = pl.pallas_call(
        functools.partial(mlp_kernel, bf16_act=bf16_act),
        out_shape=jax.ShapeDtypeStruct((1, n_padded), x.dtype),
        grid=(n_padded // tile_b,),
        in_specs=in_specs,
        out_specs=pl.BlockSpec((1, tile_b), lambda i: (0, i)),
        compiler_params=pltpu.CompilerParams(
            dimension_semantics=("parallel",),
            vmem_limit_bytes=_vmem_limit_bytes(),
        ),
        cost_estimate=cost,
    )(xt, *packed_params)

    return out_t[:, :N].reshape(N, 1)


def reference_forward(x, params):
    h = x.astype(jnp.float32)
    for i, (w, b) in enumerate(params):
        h = h @ w + b
        if i < NUM_LAYERS - 1:
            h = jnp.tanh(h)
    return h


if __name__ == "__main__":
    key = jax.random.PRNGKey(0)
    k_params, k_x = jax.random.split(key)

    params = init_params(k_params)
    bf16_act = _default_bf16_act()
    packed = prepare_params(params, bf16_act=bf16_act)

    # Small deterministic example: 1024 scalar inputs -> two 512-lane tiles
    # (grid=2 keeps both v7x TensorCores busy); for large N the tile grows to
    # the 4096 cap automatically.
    N = 1024
    x = jax.random.normal(k_x, (N, 1), dtype=jnp.float32)
    tile_b = choose_tile_b(N)

    out = jax.block_until_ready(
        deeper_model_forward(x, packed, tile_b=tile_b, bf16_act=bf16_act))

    ref = reference_forward(x, params)
    assert out.shape == (N, 1)
    # bf16 MXU operands (+ bf16 bias/tanh on v6e/v7x) -> looser tolerance than
    # pure f32; this is a deliberate speed/precision tradeoff.
    max_err = float(jnp.max(jnp.abs(out - ref)))
    assert max_err < 5e-2, f"max abs err = {max_err}"

    print("KERNEL_OK")
</pallas_src>

<mosaic_0001>
module attributes {stable_mosaic.version = 11 : i64} {
  func.func @mlp_kernel(%arg0: i32, %arg1: memref<1x512xf32, #tpu.memory_space<vmem>>, %arg2: memref<64x1xf32, #tpu.memory_space<vmem>>, %arg3: memref<64x1xf32, #tpu.memory_space<vmem>>, %arg4: memref<128x64xbf16, #tpu.memory_space<vmem>>, %arg5: memref<128x1xbf16, #tpu.memory_space<vmem>>, %arg6: memref<256x128xbf16, #tpu.memory_space<vmem>>, %arg7: memref<256x1xbf16, #tpu.memory_space<vmem>>, %arg8: memref<256x256xbf16, #tpu.memory_space<vmem>>, %arg9: memref<256x1xbf16, #tpu.memory_space<vmem>>, %arg10: memref<128x256xbf16, #tpu.memory_space<vmem>>, %arg11: memref<128x1xbf16, #tpu.memory_space<vmem>>, %arg12: memref<64x128xbf16, #tpu.memory_space<vmem>>, %arg13: memref<64x1xbf16, #tpu.memory_space<vmem>>, %arg14: memref<64x1xf32, #tpu.memory_space<vmem>>, %arg15: memref<1x1xf32, #tpu.memory_space<vmem>>, %arg16: memref<1x512xf32, #tpu.memory_space<vmem>>) attributes {dimension_semantics = [#tpu.dimension_semantics<parallel>], iteration_bounds = array<i64: 2>, scalar_prefetch = 0 : i64, scratch_operands = 0 : i64, tpu.core_type = #tpu.core_type<tc>, window_params = [{transform_indices = @transform_0, window_bounds = array<i64: 1, 512>}, {pipeline_mode = #tpu.pipeline_mode<synchronous>, transform_indices = @transform_1, window_bounds = array<i64: 64, 1>}, {pipeline_mode = #tpu.pipeline_mode<synchronous>, transform_indices = @transform_2, window_bounds = array<i64: 64, 1>}, {pipeline_mode = #tpu.pipeline_mode<synchronous>, transform_indices = @transform_3, window_bounds = array<i64: 128, 64>}, {pipeline_mode = #tpu.pipeline_mode<synchronous>, transform_indices = @transform_4, window_bounds = array<i64: 128, 1>}, {pipeline_mode = #tpu.pipeline_mode<synchronous>, transform_indices = @transform_5, window_bounds = array<i64: 256, 128>}, {pipeline_mode = #tpu.pipeline_mode<synchronous>, transform_indices = @transform_6, window_bounds = array<i64: 256, 1>}, {pipeline_mode = #tpu.pipeline_mode<synchronous>, transform_indices = @transform_7, window_bounds = array<i64: 256, 256>}, {pipeline_mode = #tpu.pipeline_mode<synchronous>, transform_indices = @transform_8, window_bounds = array<i64: 256, 1>}, {pipeline_mode = #tpu.pipeline_mode<synchronous>, transform_indices = @transform_9, window_bounds = array<i64: 128, 256>}, {pipeline_mode = #tpu.pipeline_mode<synchronous>, transform_indices = @transform_10, window_bounds = array<i64: 128, 1>}, {pipeline_mode = #tpu.pipeline_mode<synchronous>, transform_indices = @transform_11, window_bounds = array<i64: 64, 128>}, {pipeline_mode = #tpu.pipeline_mode<synchronous>, transform_indices = @transform_12, window_bounds = array<i64: 64, 1>}, {pipeline_mode = #tpu.pipeline_mode<synchronous>, transform_indices = @transform_13, window_bounds = array<i64: 64, 1>}, {pipeline_mode = #tpu.pipeline_mode<synchronous>, transform_indices = @transform_14, window_bounds = array<i64: 1, 1>}, {transform_indices = @transform_15, window_bounds = array<i64: 1, 512>}]} {
    %c0 = arith.constant 0 : index
    %c0_0 = arith.constant 0 : index
    %0 = vector.load %arg1[%c0, %c0_0] : memref<1x512xf32, #tpu.memory_space<vmem>>, vector<1x512xf32>
    %c0_1 = arith.constant 0 : index
    %c0_2 = arith.constant 0 : index
    %1 = vector.load %arg2[%c0_1, %c0_2] : memref<64x1xf32, #tpu.memory_space<vmem>>, vector<64x1xf32>
    %c0_3 = arith.constant 0 : index
    %c0_4 = arith.constant 0 : index
    %2 = vector.load %arg3[%c0_3, %c0_4] : memref<64x1xf32, #tpu.memory_space<vmem>>, vector<64x1xf32>
    %3 = vector.broadcast %1 : vector<64x1xf32> to vector<64x512xf32>
    %4 = vector.broadcast %0 : vector<1x512xf32> to vector<64x512xf32>
    %5 = arith.mulf %3, %4 : vector<64x512xf32>
    %6 = vector.broadcast %2 : vector<64x1xf32> to vector<64x512xf32>
    %7 = arith.addf %5, %6 : vector<64x512xf32>
    %8 = math.tanh %7 : vector<64x512xf32>
    %9 = arith.truncf %8 : vector<64x512xf32> to vector<64x512xbf16>
    %c0_5 = arith.constant 0 : index
    %c0_6 = arith.constant 0 : index
    %10 = vector.load %arg4[%c0_5, %c0_6] : memref<128x64xbf16, #tpu.memory_space<vmem>>, vector<128x64xbf16>
    %c0_7 = arith.constant 0 : index
    %c0_8 = arith.constant 0 : index
    %11 = vector.load %arg5[%c0_7, %c0_8] : memref<128x1xbf16, #tpu.memory_space<vmem>>, vector<128x1xbf16>
    %cst = arith.constant dense<0.000000e+00> : vector<128x512xf32>
    %12 = tpu.matmul %10, %9, %cst {dimension_numbers = #tpu.dot_dimension_numbers<[1], [0], [0], [1], [0, 0, 1, 1], [], []>} : vector<128x64xbf16>, vector<64x512xbf16>, vector<128x512xf32> -> vector<128x512xf32>
    %13 = arith.truncf %12 : vector<128x512xf32> to vector<128x512xbf16>
    %14 = vector.broadcast %11 : vector<128x1xbf16> to vector<128x512xbf16>
    %15 = arith.addf %13, %14 : vector<128x512xbf16>
    %16 = math.tanh %15 : vector<128x512xbf16>
    %c0_9 = arith.constant 0 : index
    %c0_10 = arith.constant 0 : index
    %17 = vector.load %arg6[%c0_9, %c0_10] : memref<256x128xbf16, #tpu.memory_space<vmem>>, vector<256x128xbf16>
    %c0_11 = arith.constant 0 : index
    %c0_12 = arith.constant 0 : index
    %18 = vector.load %arg7[%c0_11, %c0_12] : memref<256x1xbf16, #tpu.memory_space<vmem>>, vector<256x1xbf16>
    %cst_13 = arith.constant dense<0.000000e+00> : vector<256x512xf32>
    %19 = tpu.matmul %17, %16, %cst_13 {dimension_numbers = #tpu.dot_dimension_numbers<[1], [0], [0], [1], [0, 0, 1, 1], [], []>} : vector<256x128xbf16>, vector<128x512xbf16>, vector<256x512xf32> -> vector<256x512xf32>
    %20 = arith.truncf %19 : vector<256x512xf32> to vector<256x512xbf16>
    %21 = vector.broadcast %18 : vector<256x1xbf16> to vector<256x512xbf16>
    %22 = arith.addf %20, %21 : vector<256x512xbf16>
    %23 = math.tanh %22 : vector<256x512xbf16>
    %c0_14 = arith.constant 0 : index
    %c0_15 = arith.constant 0 : index
    %24 = vector.load %arg8[%c0_14, %c0_15] : memref<256x256xbf16, #tpu.memory_space<vmem>>, vector<256x256xbf16>
    %c0_16 = arith.constant 0 : index
    %c0_17 = arith.constant 0 : index
    %25 = vector.load %arg9[%c0_16, %c0_17] : memref<256x1xbf16, #tpu.memory_space<vmem>>, vector<256x1xbf16>
    %cst_18 = arith.constant dense<0.000000e+00> : vector<256x512xf32>
    %26 = tpu.matmul %24, %23, %cst_18 {dimension_numbers = #tpu.dot_dimension_numbers<[1], [0], [0], [1], [0, 0, 1, 1], [], []>} : vector<256x256xbf16>, vector<256x512xbf16>, vector<256x512xf32> -> vector<256x512xf32>
    %27 = arith.truncf %26 : vector<256x512xf32> to vector<256x512xbf16>
    %28 = vector.broadcast %25 : vector<256x1xbf16> to vector<256x512xbf16>
    %29 = arith.addf %27, %28 : vector<256x512xbf16>
    %30 = math.tanh %29 : vector<256x512xbf16>
    %c0_19 = arith.constant 0 : index
    %c0_20 = arith.constant 0 : index
    %31 = vector.load %arg10[%c0_19, %c0_20] : memref<128x256xbf16, #tpu.memory_space<vmem>>, vector<128x256xbf16>
    %c0_21 = arith.constant 0 : index
    %c0_22 = arith.constant 0 : index
    %32 = vector.load %arg11[%c0_21, %c0_22] : memref<128x1xbf16, #tpu.memory_space<vmem>>, vector<128x1xbf16>
    %cst_23 = arith.constant dense<0.000000e+00> : vector<128x512xf32>
    %33 = tpu.matmul %31, %30, %cst_23 {dimension_numbers = #tpu.dot_dimension_numbers<[1], [0], [0], [1], [0, 0, 1, 1], [], []>} : vector<128x256xbf16>, vector<256x512xbf16>, vector<128x512xf32> -> vector<128x512xf32>
    %34 = arith.truncf %33 : vector<128x512xf32> to vector<128x512xbf16>
    %35 = vector.broadcast %32 : vector<128x1xbf16> to vector<128x512xbf16>
    %36 = arith.addf %34, %35 : vector<128x512xbf16>
    %37 = math.tanh %36 : vector<128x512xbf16>
    %c0_24 = arith.constant 0 : index
    %c0_25 = arith.constant 0 : index
    %38 = vector.load %arg12[%c0_24, %c0_25] : memref<64x128xbf16, #tpu.memory_space<vmem>>, vector<64x128xbf16>
    %c0_26 = arith.constant 0 : index
    %c0_27 = arith.constant 0 : index
    %39 = vector.load %arg13[%c0_26, %c0_27] : memref<64x1xbf16, #tpu.memory_space<vmem>>, vector<64x1xbf16>
    %cst_28 = arith.constant dense<0.000000e+00> : vector<64x512xf32>
    %40 = tpu.matmul %38, %37, %cst_28 {dimension_numbers = #tpu.dot_dimension_numbers<[1], [0], [0], [1], [0, 0, 1, 1], [], []>} : vector<64x128xbf16>, vector<128x512xbf16>, vector<64x512xf32> -> vector<64x512xf32>
    %41 = arith.truncf %40 : vector<64x512xf32> to vector<64x512xbf16>
    %42 = vector.broadcast %39 : vector<64x1xbf16> to vector<64x512xbf16>
    %43 = arith.addf %41, %42 : vector<64x512xbf16>
    %44 = math.tanh %43 : vector<64x512xbf16>
    %c0_29 = arith.constant 0 : index
    %c0_30 = arith.constant 0 : index
    %45 = vector.load %arg14[%c0_29, %c0_30] : memref<64x1xf32, #tpu.memory_space<vmem>>, vector<64x1xf32>
    %c0_31 = arith.constant 0 : index
    %c0_32 = arith.constant 0 : index
    %46 = vector.load %arg15[%c0_31, %c0_32] : memref<1x1xf32, #tpu.memory_space<vmem>>, vector<1x1xf32>
    %47 = arith.extf %44 : vector<64x512xbf16> to vector<64x512xf32>
    %48 = vector.broadcast %45 : vector<64x1xf32> to vector<64x512xf32>
    %49 = arith.mulf %48, %47 : vector<64x512xf32>
    %cst_33 = arith.constant dense<0.000000e+00> : vector<512xf32>
    %50 = vector.multi_reduction <add>, %49, %cst_33 [0] : vector<64x512xf32> to vector<512xf32>
    %51 = vector.shape_cast %50 : vector<512xf32> to vector<1x512xf32>
    %52 = vector.broadcast %46 : vector<1x1xf32> to vector<1x512xf32>
    %53 = arith.addf %51, %52 : vector<1x512xf32>
    %c0_34 = arith.constant 0 : index
    %c0_35 = arith.constant 0 : index
    %54 = vector.load %arg16[%c0_34, %c0_35] : memref<1x512xf32, #tpu.memory_space<vmem>>, vector<1x512xf32>
    tpu.vector_store %arg16[%c0_34, %c0_35], %53 {strides = array<i32>} : memref<1x512xf32, #tpu.memory_space<vmem>>, vector<1x512xf32>,
    return
  }
  func.func @transform_0(%arg0: i32) -> (i32, i32) {
    %c0_i32 = arith.constant 0 : i32
    %c0_i32_0 = arith.constant 0 : i32
    return %c0_i32, %arg0 : i32, i32
  }
  func.func @transform_1(%arg0: i32) -> (i32, i32) {
    %c0_i32 = arith.constant 0 : i32
    %c0_i32_0 = arith.constant 0 : i32
    %c0_i32_1 = arith.constant 0 : i32
    return %c0_i32, %c0_i32_0 : i32, i32
  }
  func.func @transform_2(%arg0: i32) -> (i32, i32) {
    %c0_i32 = arith.constant 0 : i32
    %c0_i32_0 = arith.constant 0 : i32
    %c0_i32_1 = arith.constant 0 : i32
    return %c0_i32, %c0_i32_0 : i32, i32
  }
  func.func @transform_3(%arg0: i32) -> (i32, i32) {
    %c0_i32 = arith.constant 0 : i32
    %c0_i32_0 = arith.constant 0 : i32
    %c0_i32_1 = arith.constant 0 : i32
    return %c0_i32, %c0_i32_0 : i32, i32
  }
  func.func @transform_4(%arg0: i32) -> (i32, i32) {
    %c0_i32 = arith.constant 0 : i32
    %c0_i32_0 = arith.constant 0 : i32
    %c0_i32_1 = arith.constant 0 : i32
    return %c0_i32, %c0_i32_0 : i32, i32
  }
  func.func @transform_5(%arg0: i32) -> (i32, i32) {
    %c0_i32 = arith.constant 0 : i32
    %c0_i32_0 = arith.constant 0 : i32
    %c0_i32_1 = arith.constant 0 : i32
    return %c0_i32, %c0_i32_0 : i32, i32
  }
  func.func @transform_6(%arg0: i32) -> (i32, i32) {
    %c0_i32 = arith.constant 0 : i32
    %c0_i32_0 = arith.constant 0 : i32
    %c0_i32_1 = arith.constant 0 : i32
    return %c0_i32, %c0_i32_0 : i32, i32
  }
  func.func @transform_7(%arg0: i32) -> (i32, i32) {
    %c0_i32 = arith.constant 0 : i32
    %c0_i32_0 = arith.constant 0 : i32
    %c0_i32_1 = arith.constant 0 : i32
    return %c0_i32, %c0_i32_0 : i32, i32
  }
  func.func @transform_8(%arg0: i32) -> (i32, i32) {
    %c0_i32 = arith.constant 0 : i32
    %c0_i32_0 = arith.constant 0 : i32
    %c0_i32_1 = arith.constant 0 : i32
    return %c0_i32, %c0_i32_0 : i32, i32
  }
  func.func @transform_9(%arg0: i32) -> (i32, i32) {
    %c0_i32 = arith.constant 0 : i32
    %c0_i32_0 = arith.constant 0 : i32
    %c0_i32_1 = arith.constant 0 : i32
    return %c0_i32, %c0_i32_0 : i32, i32
  }
  func.func @transform_10(%arg0: i32) -> (i32, i32) {
    %c0_i32 = arith.constant 0 : i32
    %c0_i32_0 = arith.constant 0 : i32
    %c0_i32_1 = arith.constant 0 : i32
    return %c0_i32, %c0_i32_0 : i32, i32
  }
  func.func @transform_11(%arg0: i32) -> (i32, i32) {
    %c0_i32 = arith.constant 0 : i32
    %c0_i32_0 = arith.constant 0 : i32
    %c0_i32_1 = arith.constant 0 : i32
    return %c0_i32, %c0_i32_0 : i32, i32
  }
  func.func @transform_12(%arg0: i32) -> (i32, i32) {
    %c0_i32 = arith.constant 0 : i32
    %c0_i32_0 = arith.constant 0 : i32
    %c0_i32_1 = arith.constant 0 : i32
    return %c0_i32, %c0_i32_0 : i32, i32
  }
  func.func @transform_13(%arg0: i32) -> (i32, i32) {
    %c0_i32 = arith.constant 0 : i32
    %c0_i32_0 = arith.constant 0 : i32
    %c0_i32_1 = arith.constant 0 : i32
    return %c0_i32, %c0_i32_0 : i32, i32
  }
  func.func @transform_14(%arg0: i32) -> (i32, i32) {
    %c0_i32 = arith.constant 0 : i32
    %c0_i32_0 = arith.constant 0 : i32
    %c0_i32_1 = arith.constant 0 : i32
    return %c0_i32, %c0_i32_0 : i32, i32
  }
  func.func @transform_15(%arg0: i32) -> (i32, i32) {
    %c0_i32 = arith.constant 0 : i32
    %c0_i32_0 = arith.constant 0 : i32
    return %c0_i32, %arg0 : i32, i32
  }
}

</mosaic_0001>

<llo_original>
// kernel: deeper_model_forward.1
$region0: #{deeper_model_forward.1}
  #allocation0 [shape = 'u32[]', space=smem, size = 0x4, offset = 0x4, fixed_abs, tag = 'smem constant byte address 0x4 - core index']
  #allocation1 [shape = 'u32[144,128]{1,0:T(1,128)}', space=vmem, size = 0x12000, scoped, tag = 'internal scratch']
  #allocation2 [shape = 'f32[1,1]{1,0:T(1,128)S(1)}', space=vmem, size = 0x200, scoped, tag = 'scoped memory for deeper_model_forward.1']
  %s0 = inlined_call_operand.vmem [shape: f32[1,1024], index: 0, kind: input, shape index: {}]
  %s1 = inlined_call_operand.vmem [shape: f32[64,1], index: 1, kind: input, shape index: {}]
  %s2 = inlined_call_operand.vmem [shape: f32[64,1], index: 2, kind: input, shape index: {}]
  %s3 = inlined_call_operand.vmem [shape: bf16[128,64], index: 3, kind: input, shape index: {}]
  %s4 = inlined_call_operand.vmem [shape: bf16[128,1], index: 4, kind: input, shape index: {}]
  %s5 = inlined_call_operand.vmem [shape: bf16[256,128], index: 5, kind: input, shape index: {}]
  %s6 = inlined_call_operand.vmem [shape: bf16[256,1], index: 6, kind: input, shape index: {}]
  %s7 = inlined_call_operand.vmem [shape: bf16[256,256], index: 7, kind: input, shape index: {}]
  %s8 = inlined_call_operand.vmem [shape: bf16[256,1], index: 8, kind: input, shape index: {}]
  %s9 = inlined_call_operand.vmem [shape: bf16[128,256], index: 9, kind: input, shape index: {}]
  %s10 = inlined_call_operand.vmem [shape: bf16[128,1], index: 10, kind: input, shape index: {}]
  %s11 = inlined_call_operand.vmem [shape: bf16[64,128], index: 11, kind: input, shape index: {}]
  %s12 = inlined_call_operand.vmem [shape: bf16[64,1], index: 12, kind: input, shape index: {}]
  %s13 = inlined_call_operand.vmem [shape: f32[64,1], index: 13, kind: input, shape index: {}]
  %s14 = inlined_call_operand.<no memory space> [shape: f32[1,1], index: 14, kind: input, shape index: {}]
  %s15 = inlined_call_operand.hbm [shape: f32[1,1024], index: 15, kind: output, shape index: {}]
  %s16 = sld [smem:[#allocation0]]
  $region93: #{deeper_model_forward.1} parent=0
    _
  %s18 = ssub.s32 1, %s16
  %s19 = scalar_select 0, %s18, %s16
  %v20 = vstv %s14
  %21 = vst [vmem:[#allocation2] sm:$0x1] %v20
  $region1: #{deeper_model_forward.1} parent=0
    #allocation3 [shape = 'u8[4096]{0}', space=vmem, size = 0x1000, scoped, tag = 'output window, operand 0']
    #allocation4 [shape = 's32[2]{0}', space=sflag, size = 0x8, scoped, tag = 'scoped memory for deeper_model_forward.1']
    %22 = vsyncpa [#allocation4], 0
    %s23 = scalar_lea.sflag [#allocation4], 1
    %24 = vsyncpa %s23, 0
    loop: start=0, step=1, limit=4
    $region2: #{deeper_model_forward.1} parent=1 // loop_pre_header
      _
    $region3: #{deeper_model_forward.1} parent=1 // loop_header
      %s26 = sphi 0, %s30
      %p27 = scmp.ge.s32.totalorder %s26, 4
      %s36 = sphi 0, %s38
      %s39 = sphi 0, %s36
      %s40 = sphi 0, %s39
      %s56 = sphi 0, %s40
      %s60 = sphi 0, %s60
      %s62 = sphi 0, %s60
      %s63 = sphi 0, %s62
      %s77 = sphi 0, %s63
      %s81 = sphi 0, %s81
      %s83 = sphi 0, %s81
      %s84 = sphi 0, %s83
      %s98 = sphi 0, %s84
      %s102 = sphi 0, %s102
      %s104 = sphi 0, %s102
      %s105 = sphi 0, %s104
      %s119 = sphi 0, %s105
      %s123 = sphi 0, %s123
      %s125 = sphi 0, %s123
      %s126 = sphi 0, %s125
      %s140 = sphi 0, %s126
      %s144 = sphi 0, %s144
      %s146 = sphi 0, %s144
      %s147 = sphi 0, %s146
      %s161 = sphi 0, %s147
      %s165 = sphi 0, %s165
      %s167 = sphi 0, %s165
      %s168 = sphi 0, %s167
      %s182 = sphi 0, %s168
      %s186 = sphi 0, %s186
      %s188 = sphi 0, %s186
      %s189 = sphi 0, %s188
      %s203 = sphi 0, %s189
      %s207 = sphi 0, %s207
      %s209 = sphi 0, %s207
      %s210 = sphi 0, %s209
      %s224 = sphi 0, %s210
      %s228 = sphi 0, %s228
      %s230 = sphi 0, %s228
      %s231 = sphi 0, %s230
      %s245 = sphi 0, %s231
      %s249 = sphi 0, %s249
      %s251 = sphi 0, %s249
      %s252 = sphi 0, %s251
      %s266 = sphi 0, %s252
      %s270 = sphi 0, %s270
      %s272 = sphi 0, %s270
      %s273 = sphi 0, %s272
      %s287 = sphi 0, %s273
      %s291 = sphi 0, %s291
      %s293 = sphi 0, %s291
      %s294 = sphi 0, %s293
      %s308 = sphi 0, %s294
      %s312 = sphi 0, %s312
      %s314 = sphi 0, %s312
      %s315 = sphi 0, %s314
      %s329 = sphi 0, %s315
      %s333 = sphi 0, %s333
      %s335 = sphi 0, %s333
      %s336 = sphi 0, %s335
      %s350 = sphi 0, %s336
      %s356 = sphi 0, %s358
      %s359 = sphi 0, %s356
      %s360 = sphi 0, %s359
      %s376 = sphi 0, %s360
    $region4: #{deeper_model_forward.1} parent=1 // loop_header_branch
      %29 = sbr.rel (%p27) target = $region8
    $region5: #{deeper_model_forward.1} parent=1 // loop_body
      %s31 = ssub.s32 %s26, 1
      %s32 = ssub.s32 %s26, 2
      %s33 = sadd.s32 %s26, 1
      %s34 = ssub.s32 %s26, %s33
      %p35 = scmp.eq.s32.totalorder %s34, 0
      %s37 = sadd.s32 %s36, 1
      %s38 = scalar_select %p35, %s36, %s37
      %p41 = pneg %p35
      %p42 = scmp.eq.s32.totalorder %s26, 1
      %p43 = por %p41, %p42
      %p44 = scmp.ne.s32.totalorder %s36, %s39
      %p45 = scmp.eq.s32.totalorder %s26, 0
      %p46 = por %p44, %p45
      %p47 = scmp.ne.s32.totalorder %s36, %s39
      %p48 = scmp.eq.s32.totalorder %s31, 1
      %p49 = por %p47, %p48
      %p50 = scmp.ne.s32.totalorder %s39, %s40
      %p51 = scmp.eq.s32.totalorder %s31, 0
      %p52 = por %p50, %p51
      %p53 = scmp.ne.s32.totalorder %s39, %s40
      %p54 = scmp.eq.s32.totalorder %s32, 1
      %p55 = por %p53, %p54
      %p57 = scmp.ne.s32.totalorder %s40, %s56
      %p58 = scmp.eq.s32.totalorder %s32, 0
      %p59 = por %p57, %p58
      %s61 = sadd.s32 %s60, 1
      %p64 = scmp.eq.s32.totalorder %s26, 1
      %p65 = scmp.ne.s32.totalorder %s60, %s62
      %p66 = scmp.eq.s32.totalorder %s26, 0
      %p67 = por %p65, %p66
      %p68 = scmp.ne.s32.totalorder %s60, %s62
      %p69 = scmp.eq.s32.totalorder %s31, 1
      %p70 = por %p68, %p69
      %p71 = scmp.ne.s32.totalorder %s62, %s63
      %p72 = scmp.eq.s32.totalorder %s31, 0
      %p73 = por %p71, %p72
      %p74 = scmp.ne.s32.totalorder %s62, %s63
      %p75 = scmp.eq.s32.totalorder %s32, 1
      %p76 = por %p74, %p75
      %p78 = scmp.ne.s32.totalorder %s63, %s77
      %p79 = scmp.eq.s32.totalorder %s32, 0
      %p80 = por %p78, %p79
      %s82 = sadd.s32 %s81, 1
      %p85 = scmp.eq.s32.totalorder %s26, 1
      %p86 = scmp.ne.s32.totalorder %s81, %s83
      %p87 = scmp.eq.s32.totalorder %s26, 0
      %p88 = por %p86, %p87
      %p89 = scmp.ne.s32.totalorder %s81, %s83
      %p90 = scmp.eq.s32.totalorder %s31, 1
      %p91 = por %p89, %p90
      %p92 = scmp.ne.s32.totalorder %s83, %s84
      %p93 = scmp.eq.s32.totalorder %s31, 0
      %p94 = por %p92, %p93
      %p95 = scmp.ne.s32.totalorder %s83, %s84
      %p96 = scmp.eq.s32.totalorder %s32, 1
      %p97 = por %p95, %p96
      %p99 = scmp.ne.s32.totalorder %s84, %s98
      %p100 = scmp.eq.s32.totalorder %s32, 0
      %p101 = por %p99, %p100
      %s103 = sadd.s32 %s102, 1
      %p106 = scmp.eq.s32.totalorder %s26, 1
      %p107 = scmp.ne.s32.totalorder %s102, %s104
      %p108 = scmp.eq.s32.totalorder %s26, 0
      %p109 = por %p107, %p108
      %p110 = scmp.ne.s32.totalorder %s102, %s104
      %p111 = scmp.eq.s32.totalorder %s31, 1
      %p112 = por %p110, %p111
      %p113 = scmp.ne.s32.totalorder %s104, %s105
      %p114 = scmp.eq.s32.totalorder %s31, 0
      %p115 = por %p113, %p114
      %p116 = scmp.ne.s32.totalorder %s104, %s105
      %p117 = scmp.eq.s32.totalorder %s32, 1
      %p118 = por %p116, %p117
      %p120 = scmp.ne.s32.totalorder %s105, %s119
      %p121 = scmp.eq.s32.totalorder %s32, 0
      %p122 = por %p120, %p121
      %s124 = sadd.s32 %s123, 1
      %p127 = scmp.eq.s32.totalorder %s26, 1
      %p128 = scmp.ne.s32.totalorder %s123, %s125
      %p129 = scmp.eq.s32.totalorder %s26, 0
      %p130 = por %p128, %p129
      %p131 = scmp.ne.s32.totalorder %s123, %s125
      %p132 = scmp.eq.s32.totalorder %s31, 1
      %p133 = por %p131, %p132
      %p134 = scmp.ne.s32.totalorder %s125, %s126
      %p135 = scmp.eq.s32.totalorder %s31, 0
      %p136 = por %p134, %p135
      %p137 = scmp.ne.s32.totalorder %s125, %s126
      %p138 = scmp.eq.s32.totalorder %s32, 1
      %p139 = por %p137, %p138
      %p141 = scmp.ne.s32.totalorder %s126, %s140
      %p142 = scmp.eq.s32.totalorder %s32, 0
      %p143 = por %p141, %p142
      %s145 = sadd.s32 %s144, 1
      %p148 = scmp.eq.s32.totalorder %s26, 1
      %p149 = scmp.ne.s32.totalorder %s144, %s146
      %p150 = scmp.eq.s32.totalorder %s26, 0
      %p151 = por %p149, %p150
      %p152 = scmp.ne.s32.totalorder %s144, %s146
      %p153 = scmp.eq.s32.totalorder %s31, 1
      %p154 = por %p152, %p153
      %p155 = scmp.ne.s32.totalorder %s146, %s147
      %p156 = scmp.eq.s32.totalorder %s31, 0
      %p157 = por %p155, %p156
      %p158 = scmp.ne.s32.totalorder %s146, %s147
      %p159 = scmp.eq.s32.totalorder %s32, 1
      %p160 = por %p158, %p159
      %p162 = scmp.ne.s32.totalorder %s147, %s161
      %p163 = scmp.eq.s32.totalorder %s32, 0
      %p164 = por %p162, %p163
      %s166 = sadd.s32 %s165, 1
      %p169 = scmp.eq.s32.totalorder %s26, 1
      %p170 = scmp.ne.s32.totalorder %s165, %s167
      %p171 = scmp.eq.s32.totalorder %s26, 0
      %p172 = por %p170, %p171
      %p173 = scmp.ne.s32.totalorder %s165, %s167
      %p174 = scmp.eq.s32.totalorder %s31, 1
      %p175 = por %p173, %p174
      %p176 = scmp.ne.s32.totalorder %s167, %s168
      %p177 = scmp.eq.s32.totalorder %s31, 0
      %p178 = por %p176, %p177
      %p179 = scmp.ne.s32.totalorder %s167, %s168
      %p180 = scmp.eq.s32.totalorder %s32, 1
      %p181 = por %p179, %p180
      %p183 = scmp.ne.s32.totalorder %s168, %s182
      %p184 = scmp.eq.s32.totalorder %s32, 0
      %p185 = por %p183, %p184
      %s187 = sadd.s32 %s186, 1
      %p190 = scmp.eq.s32.totalorder %s26, 1
      %p191 = scmp.ne.s32.totalorder %s186, %s188
      %p192 = scmp.eq.s32.totalorder %s26, 0
      %p193 = por %p191, %p192
      %p194 = scmp.ne.s32.totalorder %s186, %s188
      %p195 = scmp.eq.s32.totalorder %s31, 1
      %p196 = por %p194, %p195
      %p197 = scmp.ne.s32.totalorder %s188, %s189
      %p198 = scmp.eq.s32.totalorder %s31, 0
      %p199 = por %p197, %p198
      %p200 = scmp.ne.s32.totalorder %s188, %s189
      %p201 = scmp.eq.s32.totalorder %s32, 1
      %p202 = por %p200, %p201
      %p204 = scmp.ne.s32.totalorder %s189, %s203
      %p205 = scmp.eq.s32.totalorder %s32, 0
      %p206 = por %p204, %p205
      %s208 = sadd.s32 %s207, 1
      %p211 = scmp.eq.s32.totalorder %s26, 1
      %p212 = scmp.ne.s32.totalorder %s207, %s209
      %p213 = scmp.eq.s32.totalorder %s26, 0
      %p214 = por %p212, %p213
      %p215 = scmp.ne.s32.totalorder %s207, %s209
      %p216 = scmp.eq.s32.totalorder %s31, 1
      %p217 = por %p215, %p216
      %p218 = scmp.ne.s32.totalorder %s209, %s210
      %p219 = scmp.eq.s32.totalorder %s31, 0
      %p220 = por %p218, %p219
      %p221 = scmp.ne.s32.totalorder %s209, %s210
      %p222 = scmp.eq.s32.totalorder %s32, 1
      %p223 = por %p221, %p222
      %p225 = scmp.ne.s32.totalorder %s210, %s224
      %p226 = scmp.eq.s32.totalorder %s32, 0
      %p227 = por %p225, %p226
      %s229 = sadd.s32 %s228, 1
      %p232 = scmp.eq.s32.totalorder %s26, 1
      %p233 = scmp.ne.s32.totalorder %s228, %s230
      %p234 = scmp.eq.s32.totalorder %s26, 0
      %p235 = por %p233, %p234
      %p236 = scmp.ne.s32.totalorder %s228, %s230
      %p237 = scmp.eq.s32.totalorder %s31, 1
      %p238 = por %p236, %p237
      %p239 = scmp.ne.s32.totalorder %s230, %s231
      %p240 = scmp.eq.s32.totalorder %s31, 0
      %p241 = por %p239, %p240
      %p242 = scmp.ne.s32.totalorder %s230, %s231
      %p243 = scmp.eq.s32.totalorder %s32, 1
      %p244 = por %p242, %p243
      %p246 = scmp.ne.s32.totalorder %s231, %s245
      %p247 = scmp.eq.s32.totalorder %s32, 0
      %p248 = por %p246, %p247
      %s250 = sadd.s32 %s249, 1
      %p253 = scmp.eq.s32.totalorder %s26, 1
      %p254 = scmp.ne.s32.totalorder %s249, %s251
      %p255 = scmp.eq.s32.totalorder %s26, 0
      %p256 = por %p254, %p255
      %p257 = scmp.ne.s32.totalorder %s249, %s251
      %p258 = scmp.eq.s32.totalorder %s31, 1
      %p259 = por %p257, %p258
      %p260 = scmp.ne.s32.totalorder %s251, %s252
      %p261 = scmp.eq.s32.totalorder %s31, 0
      %p262 = por %p260, %p261
      %p263 = scmp.ne.s32.totalorder %s251, %s252
      %p264 = scmp.eq.s32.totalorder %s32, 1
      %p265 = por %p263, %p264
      %p267 = scmp.ne.s32.totalorder %s252, %s266
      %p268 = scmp.eq.s32.totalorder %s32, 0
      %p269 = por %p267, %p268
      %s271 = sadd.s32 %s270, 1
      %p274 = scmp.eq.s32.totalorder %s26, 1
      %p275 = scmp.ne.s32.totalorder %s270, %s272
      %p276 = scmp.eq.s32.totalorder %s26, 0
      %p277 = por %p275, %p276
      %p278 = scmp.ne.s32.totalorder %s270, %s272
      %p279 = scmp.eq.s32.totalorder %s31, 1
      %p280 = por %p278, %p279
      %p281 = scmp.ne.s32.totalorder %s272, %s273
      %p282 = scmp.eq.s32.totalorder %s31, 0
      %p283 = por %p281, %p282
      %p284 = scmp.ne.s32.totalorder %s272, %s273
      %p285 = scmp.eq.s32.totalorder %s32, 1
      %p286 = por %p284, %p285
      %p288 = scmp.ne.s32.totalorder %s273, %s287
      %p289 = scmp.eq.s32.totalorder %s32, 0
      %p290 = por %p288, %p289
      %s292 = sadd.s32 %s291, 1
      %p295 = scmp.eq.s32.totalorder %s26, 1
      %p296 = scmp.ne.s32.totalorder %s291, %s293
      %p297 = scmp.eq.s32.totalorder %s26, 0
      %p298 = por %p296, %p297
      %p299 = scmp.ne.s32.totalorder %s291, %s293
      %p300 = scmp.eq.s32.totalorder %s31, 1
      %p301 = por %p299, %p300
      %p302 = scmp.ne.s32.totalorder %s293, %s294
      %p303 = scmp.eq.s32.totalorder %s31, 0
      %p304 = por %p302, %p303
      %p305 = scmp.ne.s32.totalorder %s293, %s294
      %p306 = scmp.eq.s32.totalorder %s32, 1
      %p307 = por %p305, %p306
      %p309 = scmp.ne.s32.totalorder %s294, %s308
      %p310 = scmp.eq.s32.totalorder %s32, 0
      %p311 = por %p309, %p310
      %s313 = sadd.s32 %s312, 1
      %p316 = scmp.eq.s32.totalorder %s26, 1
      %p317 = scmp.ne.s32.totalorder %s312, %s314
      %p318 = scmp.eq.s32.totalorder %s26, 0
      %p319 = por %p317, %p318
      %p320 = scmp.ne.s32.totalorder %s312, %s314
      %p321 = scmp.eq.s32.totalorder %s31, 1
      %p322 = por %p320, %p321
      %p323 = scmp.ne.s32.totalorder %s314, %s315
      %p324 = scmp.eq.s32.totalorder %s31, 0
      %p325 = por %p323, %p324
      %p326 = scmp.ne.s32.totalorder %s314, %s315
      %p327 = scmp.eq.s32.totalorder %s32, 1
      %p328 = por %p326, %p327
      %p330 = scmp.ne.s32.totalorder %s315, %s329
      %p331 = scmp.eq.s32.totalorder %s32, 0
      %p332 = por %p330, %p331
      %s334 = sadd.s32 %s333, 1
      %p337 = scmp.eq.s32.totalorder %s26, 1
      %p338 = scmp.ne.s32.totalorder %s333, %s335
      %p339 = scmp.eq.s32.totalorder %s26, 0
      %p340 = por %p338, %p339
      %p341 = scmp.ne.s32.totalorder %s333, %s335
      %p342 = scmp.eq.s32.totalorder %s31, 1
      %p343 = por %p341, %p342
      %p344 = scmp.ne.s32.totalorder %s335, %s336
      %p345 = scmp.eq.s32.totalorder %s31, 0
      %p346 = por %p344, %p345
      %p347 = scmp.ne.s32.totalorder %s335, %s336
      %p348 = scmp.eq.s32.totalorder %s32, 1
      %p349 = por %p347, %p348
      %p351 = scmp.ne.s32.totalorder %s336, %s350
      %p352 = scmp.eq.s32.totalorder %s32, 0
      %p353 = por %p351, %p352
      %s354 = ssub.s32 %s26, %s33
      %p355 = scmp.eq.s32.totalorder %s354, 0
      %s357 = sadd.s32 %s356, 1
      %s358 = scalar_select %p355, %s356, %s357
      %p361 = pneg %p355
      %p362 = scmp.eq.s32.totalorder %s26, 1
      %p363 = por %p361, %p362
      %p364 = scmp.ne.s32.totalorder %s356, %s359
      %p365 = scmp.eq.s32.totalorder %s26, 0
      %p366 = por %p364, %p365
      %p367 = scmp.ne.s32.totalorder %s356, %s359
      %p368 = scmp.eq.s32.totalorder %s31, 1
      %p369 = por %p367, %p368
      %p370 = scmp.ne.s32.totalorder %s359, %s360
      %p371 = scmp.eq.s32.totalorder %s31, 0
      %p372 = por %p370, %p371
      %p373 = scmp.ne.s32.totalorder %s359, %s360
      %p374 = scmp.eq.s32.totalorder %s32, 1
      %p375 = por %p373, %p374
      %p377 = scmp.ne.s32.totalorder %s360, %s376
      %p378 = scmp.eq.s32.totalorder %s32, 0
      %p379 = por %p377, %p378
      %p380 = scmp.le.s32.totalorder 1, %s26
      %p381 = scmp.lt.s32.totalorder %s26, 3
      %p382 = pnand %p380, %p381
      %p383 = pneg %p382
      // Predicated region
      $region9: #{deeper_model_forward.1} parent=5 // pred_check
        _
      $region10: #{deeper_model_forward.1} parent=5 // pred_check_branch
        %385 = sbr.rel (%p382) target = $region12
      $region11: #{deeper_model_forward.1} parent=5 // pred_region
        %s386 = ssub.s32 %s26, 1
        // Predicated region
        $region13: #{deeper_model_forward.1} parent=11 // pred_check
          %p387 = pneg %p73
        $region14: #{deeper_model_forward.1} parent=11 // pred_check_branch
          %389 = sbr.rel (%p387) target = $region16
        $region15: #{deeper_model_forward.1} parent=11 // pred_region
          _
        $region16: #{deeper_model_forward.1} parent=11 // pred_fallthru
          _
        // Predicated region
        $region17: #{deeper_model_forward.1} parent=11 // pred_check
          %p390 = pneg %p94
        $region18: #{deeper_model_forward.1} parent=11 // pred_check_branch
          %392 = sbr.rel (%p390) target = $region20
        $region19: #{deeper_model_forward.1} parent=11 // pred_region
          _
        $region20: #{deeper_model_forward.1} parent=11 // pred_fallthru
          _
        // Predicated region
        $region21: #{deeper_model_forward.1} parent=11 // pred_check
          %p393 = pneg %p115
        $region22: #{deeper_model_forward.1} parent=11 // pred_check_branch
          %395 = sbr.rel (%p393) target = $region24
        $region23: #{deeper_model_forward.1} parent=11 // pred_region
          _
        $region24: #{deeper_model_forward.1} parent=11 // pred_fallthru
          _
        // Predicated region
        $region25: #{deeper_model_forward.1} parent=11 // pred_check
          %p396 = pneg %p136
        $region26: #{deeper_model_forward.1} parent=11 // pred_check_branch
          %398 = sbr.rel (%p396) target = $region28
        $region27: #{deeper_model_forward.1} parent=11 // pred_region
          _
        $region28: #{deeper_model_forward.1} parent=11 // pred_fallthru
          _
        // Predicated region
        $region29: #{deeper_model_forward.1} parent=11 // pred_check
          %p399 = pneg %p157
        $region30: #{deeper_model_forward.1} parent=11 // pred_check_branch
          %401 = sbr.rel (%p399) target = $region32
        $region31: #{deeper_model_forward.1} parent=11 // pred_region
          _
        $region32: #{deeper_model_forward.1} parent=11 // pred_fallthru
          _
        // Predicated region
        $region33: #{deeper_model_forward.1} parent=11 // pred_check
          %p402 = pneg %p178
        $region34: #{deeper_model_forward.1} parent=11 // pred_check_branch
          %404 = sbr.rel (%p402) target = $region36
        $region35: #{deeper_model_forward.1} parent=11 // pred_region
          _
        $region36: #{deeper_model_forward.1} parent=11 // pred_fallthru
          _
        // Predicated region
        $region37: #{deeper_model_forward.1} parent=11 // pred_check
          %p405 = pneg %p199
        $region38: #{deeper_model_forward.1} parent=11 // pred_check_branch
          %407 = sbr.rel (%p405) target = $region40
        $region39: #{deeper_model_forward.1} parent=11 // pred_region
          _
        $region40: #{deeper_model_forward.1} parent=11 // pred_fallthru
          _
        // Predicated region
        $region41: #{deeper_model_forward.1} parent=11 // pred_check
          %p408 = pneg %p220
        $region42: #{deeper_model_forward.1} parent=11 // pred_check_branch
          %410 = sbr.rel (%p408) target = $region44
        $region43: #{deeper_model_forward.1} parent=11 // pred_region
          _
        $region44: #{deeper_model_forward.1} parent=11 // pred_fallthru
          _
        // Predicated region
        $region45: #{deeper_model_forward.1} parent=11 // pred_check
          %p411 = pneg %p241
        $region46: #{deeper_model_forward.1} parent=11 // pred_check_branch
          %413 = sbr.rel (%p411) target = $region48
        $region47: #{deeper_model_forward.1} parent=11 // pred_region
          _
        $region48: #{deeper_model_forward.1} parent=11 // pred_fallthru
          _
        // Predicated region
        $region49: #{deeper_model_forward.1} parent=11 // pred_check
          %p414 = pneg %p262
        $region50: #{deeper_model_forward.1} parent=11 // pred_check_branch
          %416 = sbr.rel (%p414) target = $region52
        $region51: #{deeper_model_forward.1} parent=11 // pred_region
          _
        $region52: #{deeper_model_forward.1} parent=11 // pred_fallthru
          _
        // Predicated region
        $region53: #{deeper_model_forward.1} parent=11 // pred_check
          %p417 = pneg %p283
        $region54: #{deeper_model_forward.1} parent=11 // pred_check_branch
          %419 = sbr.rel (%p417) target = $region56
        $region55: #{deeper_model_forward.1} parent=11 // pred_region
          _
        $region56: #{deeper_model_forward.1} parent=11 // pred_fallthru
          _
        // Predicated region
        $region57: #{deeper_model_forward.1} parent=11 // pred_check
          %p420 = pneg %p304
        $region58: #{deeper_model_forward.1} parent=11 // pred_check_branch
          %422 = sbr.rel (%p420) target = $region60
        $region59: #{deeper_model_forward.1} parent=11 // pred_region
          _
        $region60: #{deeper_model_forward.1} parent=11 // pred_fallthru
          _
        // Predicated region
        $region61: #{deeper_model_forward.1} parent=11 // pred_check
          %p423 = pneg %p325
        $region62: #{deeper_model_forward.1} parent=11 // pred_check_branch
          %425 = sbr.rel (%p423) target = $region64
        $region63: #{deeper_model_forward.1} parent=11 // pred_region
          _
        $region64: #{deeper_model_forward.1} parent=11 // pred_fallthru
          _
        // Predicated region
        $region65: #{deeper_model_forward.1} parent=11 // pred_check
          %p426 = pneg %p346
        $region66: #{deeper_model_forward.1} parent=11 // pred_check_branch
          %428 = sbr.rel (%p426) target = $region68
        $region67: #{deeper_model_forward.1} parent=11 // pred_region
          _
        $region68: #{deeper_model_forward.1} parent=11 // pred_fallthru
          _
      $region12: #{deeper_model_forward.1} parent=5 // pred_fallthru
        _
      %p429 = scmp.lt.s32.totalorder %s26, 2
      // Predicated region
      $region69: #{deeper_model_forward.1} parent=5 // pred_check
        %p430 = pneg %p429
      $region70: #{deeper_model_forward.1} parent=5 // pred_check_branch
        %432 = sbr.rel (%p430) target = $region72
      $region71: #{deeper_model_forward.1} parent=5 // pred_region
        // Predicated region
        $region73: #{deeper_model_forward.1} parent=71 // pred_check
          %p433 = pneg %p46
        $region74: #{deeper_model_forward.1} parent=71 // pred_check_branch
          %435 = sbr.rel (%p433) target = $region76
        $region75: #{deeper_model_forward.1} parent=71 // pred_region
          %s436 = smul.u32 4, %s26
          %p437 = scmp.lt.s32.totalorder %s436, 7
          %s438 = scalar_select %p437, %s436, 7
          %s439 = scalar_lea.vmem %s0, %s438
          %s440 = smul.u32 4, %s26
        $region76: #{deeper_model_forward.1} parent=71 // pred_fallthru
          _
      $region72: #{deeper_model_forward.1} parent=5 // pred_fallthru
        _
      %p441 = scmp.le.s32.totalorder 1, %s26
      %p442 = scmp.lt.s32.totalorder %s26, 3
      %p443 = pnand %p441, %p442
      %p444 = pneg %p443
      // Predicated region
      $region77: #{deeper_model_forward.1} parent=5 // pred_check
        _
      $region78: #{deeper_model_forward.1} parent=5 // pred_check_branch
        %446 = sbr.rel (%p443) target = $region80
      $region79: #{deeper_model_forward.1} parent=5 // pred_region
        %s447 = ssub.s32 %s26, 1
        %s448 = smul.u32 4, %s31
        %p449 = scmp.lt.s32.totalorder %s448, 7
        %s450 = scalar_select %p449, %s448, 7
        %s451 = scalar_lea.vmem %s0, %s450
        %p452 = pneg %p52
        %p453 = pneg %p49
        %p454 = pneg %p73
        %p455 = pneg %p70
        %p456 = pneg %p94
        %p457 = pneg %p91
        %p458 = pneg %p115
        %p459 = pneg %p112
        %p460 = pneg %p136
        %p461 = pneg %p133
        %p462 = pneg %p157
        %p463 = pneg %p154
        %p464 = pneg %p178
        %p465 = pneg %p175
        %p466 = pneg %p199
        %p467 = pneg %p196
        %p468 = pneg %p220
        %p469 = pneg %p217
        %p470 = pneg %p241
        %p471 = pneg %p238
        %p472 = pneg %p262
        %p473 = pneg %p259
        %p474 = pneg %p283
        %p475 = pneg %p280
        %p476 = pneg %p304
        %p477 = pneg %p301
        %p478 = pneg %p325
        %p479 = pneg %p322
        %p480 = pneg %p346
        %p481 = pneg %p343
        %p482 = pneg %p372
        %p483 = pneg %p369
        %s484 = sand.u32 %s359, 1
        %s485 = scalar_lea.sflag [#allocation4], %s484
        %s486 = sand.u32 %s359, 1
        %s487 = smul.addr %s486, 4
        %s488 = scalar_lea.vmem [#allocation3], %s487
        %s489 = smul.u32 4, %s31
        %p490 = scmp.lt.s32.totalorder %s489, 7
        %s491 = scalar_select %p490, %s489, 7
        %s492 = scalar_lea.vmem %s0, %s491
        %s493 = smul.u32 4, %s31
        %s494 = smul.u32 4, %s31
        %v496 = vld [vmem:[%s492] sm:$0xf]
        %v497 = vld [vmem:[%s1] sm:$0xff]
        %v498 = vld [vmem:[%s1 + $0x8] sm:$0xff]
        %v499 = vld [vmem:[%s1 + $0x10] sm:$0xff]
        %v500 = vld [vmem:[%s1 + $0x18] sm:$0xff]
        %v501 = vld [vmem:[%s1 + $0x20] sm:$0xff]
        %v502 = vld [vmem:[%s1 + $0x28] sm:$0xff]
        %v503 = vld [vmem:[%s1 + $0x30] sm:$0xff]
        %v504 = vld [vmem:[%s1 + $0x38] sm:$0xff]
        %v505 = vld [vmem:[%s2] sm:$0xff]
        %v506 = vld [vmem:[%s2 + $0x8] sm:$0xff]
        %v507 = vld [vmem:[%s2 + $0x10] sm:$0xff]
        %v508 = vld [vmem:[%s2 + $0x18] sm:$0xff]
        %v509 = vld [vmem:[%s2 + $0x20] sm:$0xff]
        %v510 = vld [vmem:[%s2 + $0x28] sm:$0xff]
        %v511 = vld [vmem:[%s2 + $0x30] sm:$0xff]
        %v512 = vld [vmem:[%s2 + $0x38] sm:$0xff]
        %514 = vset.pattern.permute.xlu0 0
        %515 = vperm.xlu0 %514, %v497
        %v516 = vpop.permute.xlu0 %515
        %519 = vset.pattern.permute.xlu0 0
        %520 = vperm.xlu0 %519, %v498
        %v521 = vpop.permute.xlu0 %520
        %524 = vset.pattern.permute.xlu0 0
        %525 = vperm.xlu0 %524, %v499
        %v526 = vpop.permute.xlu0 %525
        %529 = vset.pattern.permute.xlu0 0
        %530 = vperm.xlu0 %529, %v500
        %v531 = vpop.permute.xlu0 %530
        %534 = vset.pattern.permute.xlu0 0
        %535 = vperm.xlu0 %534, %v501
        %v536 = vpop.permute.xlu0 %535
        %539 = vset.pattern.permute.xlu0 0
        %540 = vperm.xlu0 %539, %v502
        %v541 = vpop.permute.xlu0 %540
        %544 = vset.pattern.permute.xlu0 0
        %545 = vperm.xlu0 %544, %v503
        %v546 = vpop.permute.xlu0 %545
        %549 = vset.pattern.permute.xlu0 0
        %550 = vperm.xlu0 %549, %v504
        %v551 = vpop.permute.xlu0 %550
        %v554 = vlaneseq
        %v555 = vshrl.u32 %v554, 7
        %v556 = vsub.s32 0, %v555
        %v557 = vrot.slane %v496, %v556
        %v558 = vlaneseq
        %v559 = vshrl.u32 %v558, 7
        %v560 = vsub.s32 1, %v559
        %v561 = vrot.slane %v496, %v560
        %v562 = vlaneseq
        %v563 = vshrl.u32 %v562, 7
        %v564 = vsub.s32 2, %v563
        %v565 = vrot.slane %v496, %v564
        %v566 = vlaneseq
        %v567 = vshrl.u32 %v566, 7
        %v568 = vsub.s32 3, %v567
        %v569 = vrot.slane %v496, %v568
        %v574 = vmul.f32 %v516, %v557
        %v575 = vmul.f32 %v516, %v561
        %v576 = vmul.f32 %v516, %v565
        %v577 = vmul.f32 %v516, %v569
        %v578 = vmul.f32 %v521, %v557
        %v579 = vmul.f32 %v521, %v561
        %v580 = vmul.f32 %v521, %v565
        %v581 = vmul.f32 %v521, %v569
        %v582 = vmul.f32 %v526, %v557
        %v583 = vmul.f32 %v526, %v561
        %v584 = vmul.f32 %v526, %v565
        %v585 = vmul.f32 %v526, %v569
        %v586 = vmul.f32 %v531, %v557
        %v587 = vmul.f32 %v531, %v561
        %v588 = vmul.f32 %v531, %v565
        %v589 = vmul.f32 %v531, %v569
        %v590 = vmul.f32 %v536, %v557
        %v591 = vmul.f32 %v536, %v561
        %v592 = vmul.f32 %v536, %v565
        %v593 = vmul.f32 %v536, %v569
        %v594 = vmul.f32 %v541, %v557
        %v595 = vmul.f32 %v541, %v561
        %v596 = vmul.f32 %v541, %v565
        %v597 = vmul.f32 %v541, %v569
        %v598 = vmul.f32 %v546, %v557
        %v599 = vmul.f32 %v546, %v561
        %v600 = vmul.f32 %v546, %v565
        %v601 = vmul.f32 %v546, %v569
        %v602 = vmul.f32 %v551, %v557
        %v603 = vmul.f32 %v551, %v561
        %v604 = vmul.f32 %v551, %v565
        %v605 = vmul.f32 %v551, %v569
        %607 = vset.pattern.permute.xlu0 0
        %608 = vperm.xlu0 %607, %v505
        %v609 = vpop.permute.xlu0 %608
        %612 = vset.pattern.permute.xlu0 0
        %613 = vperm.xlu0 %612, %v506
        %v614 = vpop.permute.xlu0 %613
        %617 = vset.pattern.permute.xlu0 0
        %618 = vperm.xlu0 %617, %v507
        %v619 = vpop.permute.xlu0 %618
        %622 = vset.pattern.permute.xlu0 0
        %623 = vperm.xlu0 %622, %v508
        %v624 = vpop.permute.xlu0 %623
        %627 = vset.pattern.permute.xlu0 0
        %628 = vperm.xlu0 %627, %v509
        %v629 = vpop.permute.xlu0 %628
        %632 = vset.pattern.permute.xlu0 0
        %633 = vperm.xlu0 %632, %v510
        %v634 = vpop.permute.xlu0 %633
        %637 = vset.pattern.permute.xlu0 0
        %638 = vperm.xlu0 %637, %v511
        %v639 = vpop.permute.xlu0 %638
        %642 = vset.pattern.permute.xlu0 0
        %643 = vperm.xlu0 %642, %v512
        %v644 = vpop.permute.xlu0 %643
        %v646 = vadd.f32 %v574, %v609
        %v647 = vadd.f32 %v575, %v609
        %v648 = vadd.f32 %v576, %v609
        %v649 = vadd.f32 %v577, %v609
        %v650 = vadd.f32 %v578, %v614
        %v651 = vadd.f32 %v579, %v614
        %v652 = vadd.f32 %v580, %v614
        %v653 = vadd.f32 %v581, %v614
        %v654 = vadd.f32 %v582, %v619
        %v655 = vadd.f32 %v583, %v619
        %v656 = vadd.f32 %v584, %v619
        %v657 = vadd.f32 %v585, %v619
        %v658 = vadd.f32 %v586, %v624
        %v659 = vadd.f32 %v587, %v624
        %v660 = vadd.f32 %v588, %v624
        %v661 = vadd.f32 %v589, %v624
        %v662 = vadd.f32 %v590, %v629
        %v663 = vadd.f32 %v591, %v629
        %v664 = vadd.f32 %v592, %v629
        %v665 = vadd.f32 %v593, %v629
        %v666 = vadd.f32 %v594, %v634
        %v667 = vadd.f32 %v595, %v634
        %v668 = vadd.f32 %v596, %v634
        %v669 = vadd.f32 %v597, %v634
        %v670 = vadd.f32 %v598, %v639
        %v671 = vadd.f32 %v599, %v639
        %v672 = vadd.f32 %v600, %v639
        %v673 = vadd.f32 %v601, %v639
        %v674 = vadd.f32 %v602, %v644
        %v675 = vadd.f32 %v603, %v644
        %v676 = vadd.f32 %v604, %v644
        %v677 = vadd.f32 %v605, %v644
        %v678 = vtanh.pop %v646
        %v679 = vtanh.pop %v647
        %v680 = vtanh.pop %v648
        %v681 = vtanh.pop %v649
        %v682 = vtanh.pop %v650
        %v683 = vtanh.pop %v651
        %v684 = vtanh.pop %v652
        %v685 = vtanh.pop %v653
        %v686 = vtanh.pop %v654
        %v687 = vtanh.pop %v655
        %v688 = vtanh.pop %v656
        %v689 = vtanh.pop %v657
        %v690 = vtanh.pop %v658
        %v691 = vtanh.pop %v659
        %v692 = vtanh.pop %v660
        %v693 = vtanh.pop %v661
        %v694 = vtanh.pop %v662
        %v695 = vtanh.pop %v663
        %v696 = vtanh.pop %v664
        %v697 = vtanh.pop %v665
        %v698 = vtanh.pop %v666
        %v699 = vtanh.pop %v667
        %v700 = vtanh.pop %v668
        %v701 = vtanh.pop %v669
        %v702 = vtanh.pop %v670
        %v703 = vtanh.pop %v671
        %v704 = vtanh.pop %v672
        %v705 = vtanh.pop %v673
        %v706 = vtanh.pop %v674
        %v707 = vtanh.pop %v675
        %v708 = vtanh.pop %v676
        %v709 = vtanh.pop %v677
        %v710 = vpack.c.bf16 %v682, %v678
        %v711 = vpack.c.bf16 %v683, %v679
        %v712 = vpack.c.bf16 %v684, %v680
        %v713 = vpack.c.bf16 %v685, %v681
        %v714 = vpack.c.bf16 %v690, %v686
        %v715 = vpack.c.bf16 %v691, %v687
        %v716 = vpack.c.bf16 %v692, %v688
        %v717 = vpack.c.bf16 %v693, %v689
        %v718 = vpack.c.bf16 %v698, %v694
        %v719 = vpack.c.bf16 %v699, %v695
        %v720 = vpack.c.bf16 %v700, %v696
        %v721 = vpack.c.bf16 %v701, %v697
        %v722 = vpack.c.bf16 %v706, %v702
        %v723 = vpack.c.bf16 %v707, %v703
        %v724 = vpack.c.bf16 %v708, %v704
        %v725 = vpack.c.bf16 %v709, %v705
        %v726 = vld [vmem:[%s3] sm:$0xf]
        %v727 = vld [vmem:[%s3 + $0x4] sm:$0xf]
        %v728 = vld [vmem:[%s3 + $0x8] sm:$0xf]
        %v729 = vld [vmem:[%s3 + $0xc] sm:$0xf]
        %v730 = vld [vmem:[%s3 + $0x10] sm:$0xf]
        %v731 = vld [vmem:[%s3 + $0x14] sm:$0xf]
        %v732 = vld [vmem:[%s3 + $0x18] sm:$0xf]
        %v733 = vld [vmem:[%s3 + $0x1c] sm:$0xf]
        %v734 = vld [vmem:[%s3 + $0x20] sm:$0xf]
        %v735 = vld [vmem:[%s3 + $0x24] sm:$0xf]
        %v736 = vld [vmem:[%s3 + $0x28] sm:$0xf]
        %v737 = vld [vmem:[%s3 + $0x2c] sm:$0xf]
        %v738 = vld [vmem:[%s3 + $0x30] sm:$0xf]
        %v739 = vld [vmem:[%s3 + $0x34] sm:$0xf]
        %v740 = vld [vmem:[%s3 + $0x38] sm:$0xf]
        %v741 = vld [vmem:[%s3 + $0x3c] sm:$0xf]
        %v742 = vld [vmem:[%s4] sm:$0xf]
        %v743 = vld [vmem:[%s4 + $0x4] sm:$0xf]
        %v744 = vld [vmem:[%s4 + $0x8] sm:$0xf]
        %v745 = vld [vmem:[%s4 + $0xc] sm:$0xf]
        %v746 = vld [vmem:[%s4 + $0x10] sm:$0xf]
        %v747 = vld [vmem:[%s4 + $0x14] sm:$0xf]
        %v748 = vld [vmem:[%s4 + $0x18] sm:$0xf]
        %v749 = vld [vmem:[%s4 + $0x1c] sm:$0xf]
        %v750 = vld [vmem:[%s4 + $0x20] sm:$0xf]
        %v751 = vld [vmem:[%s4 + $0x24] sm:$0xf]
        %v752 = vld [vmem:[%s4 + $0x28] sm:$0xf]
        %v753 = vld [vmem:[%s4 + $0x2c] sm:$0xf]
        %v754 = vld [vmem:[%s4 + $0x30] sm:$0xf]
        %v755 = vld [vmem:[%s4 + $0x34] sm:$0xf]
        %v756 = vld [vmem:[%s4 + $0x38] sm:$0xf]
        %v757 = vld [vmem:[%s4 + $0x3c] sm:$0xf]
        %v774 = vunpack.c.l.b16 %v726
        %v775 = vunpack.c.l.b16 %v727
        %v776 = vunpack.c.l.b16 %v728
        %v777 = vunpack.c.l.b16 %v729
        %v778 = vunpack.c.l.b16 %v730
        %v779 = vunpack.c.l.b16 %v731
        %v780 = vunpack.c.l.b16 %v732
        %v781 = vunpack.c.l.b16 %v733
        %v782 = vunpack.c.l.b16 %v734
        %v783 = vunpack.c.l.b16 %v735
        %v784 = vunpack.c.l.b16 %v736
        %v785 = vunpack.c.l.b16 %v737
        %v786 = vunpack.c.l.b16 %v738
        %v787 = vunpack.c.l.b16 %v739
        %v788 = vunpack.c.l.b16 %v740
        %v789 = vunpack.c.l.b16 %v741
        %v790 = vpack.c.b16 %v775, %v774
        %v791 = vpack.c.b16 %v777, %v776
        %v792 = vpack.c.b16 %v779, %v778
        %v793 = vpack.c.b16 %v781, %v780
        %v794 = vpack.c.b16 %v783, %v782
        %v795 = vpack.c.b16 %v785, %v784
        %v796 = vpack.c.b16 %v787, %v786
        %v797 = vpack.c.b16 %v789, %v788
        %vm798 = vcmask 523264
        %v800 = vsel %vm798, %v790, 0
        %v803 = vsel %vm798, %v791, 0
        %v806 = vsel %vm798, %v792, 0
        %v809 = vsel %vm798, %v793, 0
        %v812 = vsel %vm798, %v794, 0
        %v815 = vsel %vm798, %v795, 0
        %v818 = vsel %vm798, %v796, 0
        %v821 = vsel %vm798, %v797, 0
        %823 = vmatprep.subr.bf16.mxu0 0
        %824 = vmatpush1.bf16.msra.mxu0 0
        %825 = vmatprep.subr.bf16.mxu0 0
        %826 = vmatpush1.bf16.msra.mxu0 0
        %827 = vmatprep.subr.bf16.mxu0 0
        %828 = vmatpush1.bf16.msra.mxu0 0
        %829 = vmatprep.subr.bf16.mxu0 0
        %830 = vmatpush1.bf16.msra.mxu0 0
        %831 = vmatprep.subr.bf16.mxu0 %v723
        %832 = vmatpush1.bf16.msra.mxu0 %v722
        %833 = vmatprep.subr.bf16.mxu0 %v719
        %834 = vmatpush1.bf16.msra.mxu0 %v718
        %835 = vmatprep.subr.bf16.mxu0 %v715
        %836 = vmatpush1.bf16.msra.mxu0 %v714
        %837 = vmatprep.subr.bf16.mxu0 %v711
        %838 = vmatpush1.bf16.msra.mxu0 %v710
        %839 = vmatprep.subr.bf16.mxu0 0
        %840 = vmatpush2.bf16.msra.mxu0 0
        %841 = vmatprep.subr.bf16.mxu0 0
        %842 = vmatpush2.bf16.msra.mxu0 0
        %843 = vmatprep.subr.bf16.mxu0 0
        %844 = vmatpush2.bf16.msra.mxu0 0
        %845 = vmatprep.subr.bf16.mxu0 0
        %846 = vmatpush2.bf16.msra.mxu0 0
        %847 = vmatprep.subr.bf16.mxu0 0
        %848 = vmatpush2.bf16.msra.mxu0 0
        %849 = vmatprep.subr.bf16.mxu0 0
        %850 = vmatpush2.bf16.msra.mxu0 0
        %851 = vmatprep.subr.bf16.mxu0 0
        %852 = vmatpush2.bf16.msra.mxu0 0
        %853 = vmatprep.subr.bf16.mxu0 0
        %854 = vmatpush2.bf16.msra.mxu0 0
        %855 = vmatprep.mubr.bf16.mxu0 0
        %856 = vmatmul.mubr.bf16.gmra.mxu0 %v800
        %v857 = vpop.f32.mrf.mxu0
        %v858 = vadd.f32 0.0, %v857
        %v859 = vpop.f32.mrf.mxu0
        %v860 = vadd.f32 0.0, %v859
        %v861 = vpop.f32.mrf.mxu0
        %v862 = vadd.f32 0.0, %v861
        %v863 = vpop.f32.mrf.mxu0
        %v864 = vadd.f32 0.0, %v863
        %865 = vmatprep.mubr.bf16.mxu0 0
        %866 = vmatmul.mubr.bf16.gmra.mxu0 %v803
        %v867 = vpop.f32.mrf.mxu0
        %v868 = vadd.f32 0.0, %v867
        %v869 = vpop.f32.mrf.mxu0
        %v870 = vadd.f32 0.0, %v869
        %v871 = vpop.f32.mrf.mxu0
        %v872 = vadd.f32 0.0, %v871
        %v873 = vpop.f32.mrf.mxu0
        %v874 = vadd.f32 0.0, %v873
        %875 = vmatprep.mubr.bf16.mxu0 0
        %876 = vmatmul.mubr.bf16.gmra.mxu0 %v806
        %v877 = vpop.f32.mrf.mxu0
        %v878 = vadd.f32 0.0, %v877
        %v879 = vpop.f32.mrf.mxu0
        %v880 = vadd.f32 0.0, %v879
        %v881 = vpop.f32.mrf.mxu0
        %v882 = vadd.f32 0.0, %v881
        %v883 = vpop.f32.mrf.mxu0
        %v884 = vadd.f32 0.0, %v883
        %885 = vmatprep.mubr.bf16.mxu0 0
        %886 = vmatmul.mubr.bf16.gmra.mxu0 %v809
        %v887 = vpop.f32.mrf.mxu0
        %v888 = vadd.f32 0.0, %v887
        %v889 = vpop.f32.mrf.mxu0
        %v890 = vadd.f32 0.0, %v889
        %v891 = vpop.f32.mrf.mxu0
        %v892 = vadd.f32 0.0, %v891
        %v893 = vpop.f32.mrf.mxu0
        %v894 = vadd.f32 0.0, %v893
        %895 = vmatprep.mubr.bf16.mxu0 0
        %896 = vmatmul.mubr.bf16.gmra.mxu0 %v812
        %v897 = vpop.f32.mrf.mxu0
        %v898 = vadd.f32 0.0, %v897
        %v899 = vpop.f32.mrf.mxu0
        %v900 = vadd.f32 0.0, %v899
        %v901 = vpop.f32.mrf.mxu0
        %v902 = vadd.f32 0.0, %v901
        %v903 = vpop.f32.mrf.mxu0
        %v904 = vadd.f32 0.0, %v903
        %905 = vmatprep.mubr.bf16.mxu0 0
        %906 = vmatmul.mubr.bf16.gmra.mxu0 %v815
        %v907 = vpop.f32.mrf.mxu0
        %v908 = vadd.f32 0.0, %v907
        %v909 = vpop.f32.mrf.mxu0
        %v910 = vadd.f32 0.0, %v909
        %v911 = vpop.f32.mrf.mxu0
        %v912 = vadd.f32 0.0, %v911
        %v913 = vpop.f32.mrf.mxu0
        %v914 = vadd.f32 0.0, %v913
        %915 = vmatprep.mubr.bf16.mxu0 0
        %916 = vmatmul.mubr.bf16.gmra.mxu0 %v818
        %v917 = vpop.f32.mrf.mxu0
        %v918 = vadd.f32 0.0, %v917
        %v919 = vpop.f32.mrf.mxu0
        %v920 = vadd.f32 0.0, %v919
        %v921 = vpop.f32.mrf.mxu0
        %v922 = vadd.f32 0.0, %v921
        %v923 = vpop.f32.mrf.mxu0
        %v924 = vadd.f32 0.0, %v923
        %925 = vmatprep.mubr.bf16.mxu0 0
        %926 = vmatmul.mubr.bf16.gmra.mxu0 %v821
        %v927 = vpop.f32.mrf.mxu0
        %v928 = vadd.f32 0.0, %v927
        %v929 = vpop.f32.mrf.mxu0
        %v930 = vadd.f32 0.0, %v929
        %v931 = vpop.f32.mrf.mxu0
        %v932 = vadd.f32 0.0, %v931
        %v933 = vpop.f32.mrf.mxu0
        %v934 = vadd.f32 0.0, %v933
        %935 = vdwg.mxu0
        %936 = vmatprep.subr.bf16.mxu0 0
        %937 = vmatpush1.bf16.msra.mxu0 0
        %938 = vmatprep.subr.bf16.mxu0 0
        %939 = vmatpush1.bf16.msra.mxu0 0
        %940 = vmatprep.subr.bf16.mxu0 0
        %941 = vmatpush1.bf16.msra.mxu0 0
        %942 = vmatprep.subr.bf16.mxu0 0
        %943 = vmatpush1.bf16.msra.mxu0 0
        %944 = vmatprep.subr.bf16.mxu0 %v725
        %945 = vmatpush1.bf16.msra.mxu0 %v724
        %946 = vmatprep.subr.bf16.mxu0 %v721
        %947 = vmatpush1.bf16.msra.mxu0 %v720
        %948 = vmatprep.subr.bf16.mxu0 %v717
        %949 = vmatpush1.bf16.msra.mxu0 %v716
        %950 = vmatprep.subr.bf16.mxu0 %v713
        %951 = vmatpush1.bf16.msra.mxu0 %v712
        %952 = vmatprep.subr.bf16.mxu0 0
        %953 = vmatpush2.bf16.msra.mxu0 0
        %954 = vmatprep.subr.bf16.mxu0 0
        %955 = vmatpush2.bf16.msra.mxu0 0
        %956 = vmatprep.subr.bf16.mxu0 0
        %957 = vmatpush2.bf16.msra.mxu0 0
        %958 = vmatprep.subr.bf16.mxu0 0
        %959 = vmatpush2.bf16.msra.mxu0 0
        %960 = vmatprep.subr.bf16.mxu0 0
        %961 = vmatpush2.bf16.msra.mxu0 0
        %962 = vmatprep.subr.bf16.mxu0 0
        %963 = vmatpush2.bf16.msra.mxu0 0
        %964 = vmatprep.subr.bf16.mxu0 0
        %965 = vmatpush2.bf16.msra.mxu0 0
        %966 = vmatprep.subr.bf16.mxu0 0
        %967 = vmatpush2.bf16.msra.mxu0 0
        %968 = vmatprep.mubr.bf16.mxu0 0
        %969 = vmatmul.mubr.bf16.gmra.mxu0 %v800
        %v970 = vpop.f32.mrf.mxu0
        %v971 = vadd.f32 0.0, %v970
        %v972 = vpop.f32.mrf.mxu0
        %v973 = vadd.f32 0.0, %v972
        %v974 = vpop.f32.mrf.mxu0
        %v975 = vadd.f32 0.0, %v974
        %v976 = vpop.f32.mrf.mxu0
        %v977 = vadd.f32 0.0, %v976
        %978 = vmatprep.mubr.bf16.mxu0 0
        %979 = vmatmul.mubr.bf16.gmra.mxu0 %v803
        %v980 = vpop.f32.mrf.mxu0
        %v981 = vadd.f32 0.0, %v980
        %v982 = vpop.f32.mrf.mxu0
        %v983 = vadd.f32 0.0, %v982
        %v984 = vpop.f32.mrf.mxu0
        %v985 = vadd.f32 0.0, %v984
        %v986 = vpop.f32.mrf.mxu0
        %v987 = vadd.f32 0.0, %v986
        %988 = vmatprep.mubr.bf16.mxu0 0
        %989 = vmatmul.mubr.bf16.gmra.mxu0 %v806
        %v990 = vpop.f32.mrf.mxu0
        %v991 = vadd.f32 0.0, %v990
        %v992 = vpop.f32.mrf.mxu0
        %v993 = vadd.f32 0.0, %v992
        %v994 = vpop.f32.mrf.mxu0
        %v995 = vadd.f32 0.0, %v994
        %v996 = vpop.f32.mrf.mxu0
        %v997 = vadd.f32 0.0, %v996
        %998 = vmatprep.mubr.bf16.mxu0 0
        %999 = vmatmul.mubr.bf16.gmra.mxu0 %v809
        %v1000 = vpop.f32.mrf.mxu0
        %v1001 = vadd.f32 0.0, %v1000
        %v1002 = vpop.f32.mrf.mxu0
        %v1003 = vadd.f32 0.0, %v1002
        %v1004 = vpop.f32.mrf.mxu0
        %v1005 = vadd.f32 0.0, %v1004
        %v1006 = vpop.f32.mrf.mxu0
        %v1007 = vadd.f32 0.0, %v1006
        %1008 = vmatprep.mubr.bf16.mxu0 0
        %1009 = vmatmul.mubr.bf16.gmra.mxu0 %v812
        %v1010 = vpop.f32.mrf.mxu0
        %v1011 = vadd.f32 0.0, %v1010
        %v1012 = vpop.f32.mrf.mxu0
        %v1013 = vadd.f32 0.0, %v1012
        %v1014 = vpop.f32.mrf.mxu0
        %v1015 = vadd.f32 0.0, %v1014
        %v1016 = vpop.f32.mrf.mxu0
        %v1017 = vadd.f32 0.0, %v1016
        %1018 = vmatprep.mubr.bf16.mxu0 0
        %1019 = vmatmul.mubr.bf16.gmra.mxu0 %v815
        %v1020 = vpop.f32.mrf.mxu0
        %v1021 = vadd.f32 0.0, %v1020
        %v1022 = vpop.f32.mrf.mxu0
        %v1023 = vadd.f32 0.0, %v1022
        %v1024 = vpop.f32.mrf.mxu0
        %v1025 = vadd.f32 0.0, %v1024
        %v1026 = vpop.f32.mrf.mxu0
        %v1027 = vadd.f32 0.0, %v1026
        %1028 = vmatprep.mubr.bf16.mxu0 0
        %1029 = vmatmul.mubr.bf16.gmra.mxu0 %v818
        %v1030 = vpop.f32.mrf.mxu0
        %v1031 = vadd.f32 0.0, %v1030
        %v1032 = vpop.f32.mrf.mxu0
        %v1033 = vadd.f32 0.0, %v1032
        %v1034 = vpop.f32.mrf.mxu0
        %v1035 = vadd.f32 0.0, %v1034
        %v1036 = vpop.f32.mrf.mxu0
        %v1037 = vadd.f32 0.0, %v1036
        %1038 = vmatprep.mubr.bf16.mxu0 0
        %1039 = vmatmul.mubr.bf16.gmra.mxu0 %v821
        %v1040 = vpop.f32.mrf.mxu0
        %v1041 = vadd.f32 0.0, %v1040
        %v1042 = vpop.f32.mrf.mxu0
        %v1043 = vadd.f32 0.0, %v1042
        %v1044 = vpop.f32.mrf.mxu0
        %v1045 = vadd.f32 0.0, %v1044
        %v1046 = vpop.f32.mrf.mxu0
        %v1047 = vadd.f32 0.0, %v1046
        %1048 = vdwg.mxu0
        %v1049 = vpack.c.bf16 %v862, %v858
        %v1050 = vpack.c.bf16 %v864, %v860
        %v1051 = vpack.c.bf16 %v975, %v971
        %v1052 = vpack.c.bf16 %v977, %v973
        %v1053 = vpack.c.bf16 %v872, %v868
        %v1054 = vpack.c.bf16 %v874, %v870
        %v1055 = vpack.c.bf16 %v985, %v981
        %v1056 = vpack.c.bf16 %v987, %v983
        %v1057 = vpack.c.bf16 %v882, %v878
        %v1058 = vpack.c.bf16 %v884, %v880
        %v1059 = vpack.c.bf16 %v995, %v991
        %v1060 = vpack.c.bf16 %v997, %v993
        %v1061 = vpack.c.bf16 %v892, %v888
        %v1062 = vpack.c.bf16 %v894, %v890
        %v1063 = vpack.c.bf16 %v1005, %v1001
        %v1064 = vpack.c.bf16 %v1007, %v1003
        %v1065 = vpack.c.bf16 %v902, %v898
        %v1066 = vpack.c.bf16 %v904, %v900
        %v1067 = vpack.c.bf16 %v1015, %v1011
        %v1068 = vpack.c.bf16 %v1017, %v1013
        %v1069 = vpack.c.bf16 %v912, %v908
        %v1070 = vpack.c.bf16 %v914, %v910
        %v1071 = vpack.c.bf16 %v1025, %v1021
        %v1072 = vpack.c.bf16 %v1027, %v1023
        %v1073 = vpack.c.bf16 %v922, %v918
        %v1074 = vpack.c.bf16 %v924, %v920
        %v1075 = vpack.c.bf16 %v1035, %v1031
        %v1076 = vpack.c.bf16 %v1037, %v1033
        %v1077 = vpack.c.bf16 %v932, %v928
        %v1078 = vpack.c.bf16 %v934, %v930
        %v1079 = vpack.c.bf16 %v1045, %v1041
        %v1080 = vpack.c.bf16 %v1047, %v1043
        %1082 = vset.pattern.permute.xlu0 0
        %1083 = vperm.xlu0 %1082, %v742
        %v1084 = vpop.permute.xlu0 %1083
        %v1087 = vunpack.c.l.s4 839922192
        %v1088 = vunpack.c.0.s8 %v1087
        %v1089 = vlaneseq
        %v1090 = vshrl.u32 %v1089, 7
        %v1091 = vsub.s32 %v1088, %v1090
        %v1092 = vrot.slane %v1084, %v1091
        %1094 = vset.pattern.permute.xlu0 0
        %1095 = vperm.xlu0 %1094, %v743
        %v1096 = vpop.permute.xlu0 %1095
        %v1099 = vunpack.c.l.s4 839922192
        %v1100 = vunpack.c.0.s8 %v1099
        %v1101 = vlaneseq
        %v1102 = vshrl.u32 %v1101, 7
        %v1103 = vsub.s32 %v1100, %v1102
        %v1104 = vrot.slane %v1096, %v1103
        %1106 = vset.pattern.permute.xlu0 0
        %1107 = vperm.xlu0 %1106, %v744
        %v1108 = vpop.permute.xlu0 %1107
        %v1111 = vunpack.c.l.s4 839922192
        %v1112 = vunpack.c.0.s8 %v1111
        %v1113 = vlaneseq
        %v1114 = vshrl.u32 %v1113, 7
        %v1115 = vsub.s32 %v1112, %v1114
        %v1116 = vrot.slane %v1108, %v1115
        %1118 = vset.pattern.permute.xlu0 0
        %1119 = vperm.xlu0 %1118, %v745
        %v1120 = vpop.permute.xlu0 %1119
        %v1123 = vunpack.c.l.s4 839922192
        %v1124 = vunpack.c.0.s8 %v1123
        %v1125 = vlaneseq
        %v1126 = vshrl.u32 %v1125, 7
        %v1127 = vsub.s32 %v1124, %v1126
        %v1128 = vrot.slane %v1120, %v1127
        %1130 = vset.pattern.permute.xlu0 0
        %1131 = vperm.xlu0 %1130, %v746
        %v1132 = vpop.permute.xlu0 %1131
        %v1135 = vunpack.c.l.s4 839922192
        %v1136 = vunpack.c.0.s8 %v1135
        %v1137 = vlaneseq
        %v1138 = vshrl.u32 %v1137, 7
        %v1139 = vsub.s32 %v1136, %v1138
        %v1140 = vrot.slane %v1132, %v1139
        %1142 = vset.pattern.permute.xlu0 0
        %1143 = vperm.xlu0 %1142, %v747
        %v1144 = vpop.permute.xlu0 %1143
        %v1147 = vunpack.c.l.s4 839922192
        %v1148 = vunpack.c.0.s8 %v1147
        %v1149 = vlaneseq
        %v1150 = vshrl.u32 %v1149, 7
        %v1151 = vsub.s32 %v1148, %v1150
        %v1152 = vrot.slane %v1144, %v1151
        %1154 = vset.pattern.permute.xlu0 0
        %1155 = vperm.xlu0 %1154, %v748
        %v1156 = vpop.permute.xlu0 %1155
        %v1159 = vunpack.c.l.s4 839922192
        %v1160 = vunpack.c.0.s8 %v1159
        %v1161 = vlaneseq
        %v1162 = vshrl.u32 %v1161, 7
        %v1163 = vsub.s32 %v1160, %v1162
        %v1164 = vrot.slane %v1156, %v1163
        %1166 = vset.pattern.permute.xlu0 0
        %1167 = vperm.xlu0 %1166, %v749
        %v1168 = vpop.permute.xlu0 %1167
        %v1171 = vunpack.c.l.s4 839922192
        %v1172 = vunpack.c.0.s8 %v1171
        %v1173 = vlaneseq
        %v1174 = vshrl.u32 %v1173, 7
        %v1175 = vsub.s32 %v1172, %v1174
        %v1176 = vrot.slane %v1168, %v1175
        %1178 = vset.pattern.permute.xlu0 0
        %1179 = vperm.xlu0 %1178, %v750
        %v1180 = vpop.permute.xlu0 %1179
        %v1183 = vunpack.c.l.s4 839922192
        %v1184 = vunpack.c.0.s8 %v1183
        %v1185 = vlaneseq
        %v1186 = vshrl.u32 %v1185, 7
        %v1187 = vsub.s32 %v1184, %v1186
        %v1188 = vrot.slane %v1180, %v1187
        %1190 = vset.pattern.permute.xlu0 0
        %1191 = vperm.xlu0 %1190, %v751
        %v1192 = vpop.permute.xlu0 %1191
        %v1195 = vunpack.c.l.s4 839922192
        %v1196 = vunpack.c.0.s8 %v1195
        %v1197 = vlaneseq
        %v1198 = vshrl.u32 %v1197, 7
        %v1199 = vsub.s32 %v1196, %v1198
        %v1200 = vrot.slane %v1192, %v1199
        %1202 = vset.pattern.permute.xlu0 0
        %1203 = vperm.xlu0 %1202, %v752
        %v1204 = vpop.permute.xlu0 %1203
        %v1207 = vunpack.c.l.s4 839922192
        %v1208 = vunpack.c.0.s8 %v1207
        %v1209 = vlaneseq
        %v1210 = vshrl.u32 %v1209, 7
        %v1211 = vsub.s32 %v1208, %v1210
        %v1212 = vrot.slane %v1204, %v1211
        %1214 = vset.pattern.permute.xlu0 0
        %1215 = vperm.xlu0 %1214, %v753
        %v1216 = vpop.permute.xlu0 %1215
        %v1219 = vunpack.c.l.s4 839922192
        %v1220 = vunpack.c.0.s8 %v1219
        %v1221 = vlaneseq
        %v1222 = vshrl.u32 %v1221, 7
        %v1223 = vsub.s32 %v1220, %v1222
        %v1224 = vrot.slane %v1216, %v1223
        %1226 = vset.pattern.permute.xlu0 0
        %1227 = vperm.xlu0 %1226, %v754
        %v1228 = vpop.permute.xlu0 %1227
        %v1231 = vunpack.c.l.s4 839922192
        %v1232 = vunpack.c.0.s8 %v1231
        %v1233 = vlaneseq
        %v1234 = vshrl.u32 %v1233, 7
        %v1235 = vsub.s32 %v1232, %v1234
        %v1236 = vrot.slane %v1228, %v1235
        %1238 = vset.pattern.permute.xlu0 0
        %1239 = vperm.xlu0 %1238, %v755
        %v1240 = vpop.permute.xlu0 %1239
        %v1243 = vunpack.c.l.s4 839922192
        %v1244 = vunpack.c.0.s8 %v1243
        %v1245 = vlaneseq
        %v1246 = vshrl.u32 %v1245, 7
        %v1247 = vsub.s32 %v1244, %v1246
        %v1248 = vrot.slane %v1240, %v1247
        %1250 = vset.pattern.permute.xlu0 0
        %1251 = vperm.xlu0 %1250, %v756
        %v1252 = vpop.permute.xlu0 %1251
        %v1255 = vunpack.c.l.s4 839922192
        %v1256 = vunpack.c.0.s8 %v1255
        %v1257 = vlaneseq
        %v1258 = vshrl.u32 %v1257, 7
        %v1259 = vsub.s32 %v1256, %v1258
        %v1260 = vrot.slane %v1252, %v1259
        %1262 = vset.pattern.permute.xlu0 0
        %1263 = vperm.xlu0 %1262, %v757
        %v1264 = vpop.permute.xlu0 %1263
        %v1267 = vunpack.c.l.s4 839922192
        %v1268 = vunpack.c.0.s8 %v1267
        %v1269 = vlaneseq
        %v1270 = vshrl.u32 %v1269, 7
        %v1271 = vsub.s32 %v1268, %v1270
        %v1272 = vrot.slane %v1264, %v1271
        %v1289 = vunpack.c.l.b16 %v1092
        %v1290 = vunpack.c.l.b16 %v1104
        %v1291 = vunpack.c.l.b16 %v1116
        %v1292 = vunpack.c.l.b16 %v1128
        %v1293 = vunpack.c.l.b16 %v1140
        %v1294 = vunpack.c.l.b16 %v1152
        %v1295 = vunpack.c.l.b16 %v1164
        %v1296 = vunpack.c.l.b16 %v1176
        %v1297 = vunpack.c.l.b16 %v1188
        %v1298 = vunpack.c.l.b16 %v1200
        %v1299 = vunpack.c.l.b16 %v1212
        %v1300 = vunpack.c.l.b16 %v1224
        %v1301 = vunpack.c.l.b16 %v1236
        %v1302 = vunpack.c.l.b16 %v1248
        %v1303 = vunpack.c.l.b16 %v1260
        %v1304 = vunpack.c.l.b16 %v1272
        %v1305 = vpack.c.b16 %v1290, %v1289
        %v1306 = vpack.c.b16 %v1292, %v1291
        %v1307 = vpack.c.b16 %v1294, %v1293
        %v1308 = vpack.c.b16 %v1296, %v1295
        %v1309 = vpack.c.b16 %v1298, %v1297
        %v1310 = vpack.c.b16 %v1300, %v1299
        %v1311 = vpack.c.b16 %v1302, %v1301
        %v1312 = vpack.c.b16 %v1304, %v1303
        %v1321 = vadd.bf16 %v1049, %v1305
        %v1322 = vadd.bf16 %v1050, %v1305
        %v1323 = vadd.bf16 %v1051, %v1305
        %v1324 = vadd.bf16 %v1052, %v1305
        %v1325 = vadd.bf16 %v1053, %v1306
        %v1326 = vadd.bf16 %v1054, %v1306
        %v1327 = vadd.bf16 %v1055, %v1306
        %v1328 = vadd.bf16 %v1056, %v1306
        %v1329 = vadd.bf16 %v1057, %v1307
        %v1330 = vadd.bf16 %v1058, %v1307
        %v1331 = vadd.bf16 %v1059, %v1307
        %v1332 = vadd.bf16 %v1060, %v1307
        %v1333 = vadd.bf16 %v1061, %v1308
        %v1334 = vadd.bf16 %v1062, %v1308
        %v1335 = vadd.bf16 %v1063, %v1308
        %v1336 = vadd.bf16 %v1064, %v1308
        %v1337 = vadd.bf16 %v1065, %v1309
        %v1338 = vadd.bf16 %v1066, %v1309
        %v1339 = vadd.bf16 %v1067, %v1309
        %v1340 = vadd.bf16 %v1068, %v1309
        %v1341 = vadd.bf16 %v1069, %v1310
        %v1342 = vadd.bf16 %v1070, %v1310
        %v1343 = vadd.bf16 %v1071, %v1310
        %v1344 = vadd.bf16 %v1072, %v1310
        %v1345 = vadd.bf16 %v1073, %v1311
        %v1346 = vadd.bf16 %v1074, %v1311
        %v1347 = vadd.bf16 %v1075, %v1311
        %v1348 = vadd.bf16 %v1076, %v1311
        %v1349 = vadd.bf16 %v1077, %v1312
        %v1350 = vadd.bf16 %v1078, %v1312
        %v1351 = vadd.bf16 %v1079, %v1312
        %v1352 = vadd.bf16 %v1080, %v1312
        %v1353 = vtanh.bf16.pop %v1321
        %v1354 = vtanh.bf16.pop %v1322
        %v1355 = vtanh.bf16.pop %v1323
        %v1356 = vtanh.bf16.pop %v1324
        %v1357 = vtanh.bf16.pop %v1325
        %v1358 = vtanh.bf16.pop %v1326
        %v1359 = vtanh.bf16.pop %v1327
        %v1360 = vtanh.bf16.pop %v1328
        %v1361 = vtanh.bf16.pop %v1329
        %v1362 = vtanh.bf16.pop %v1330
        %v1363 = vtanh.bf16.pop %v1331
        %v1364 = vtanh.bf16.pop %v1332
        %v1365 = vtanh.bf16.pop %v1333
        %v1366 = vtanh.bf16.pop %v1334
        %v1367 = vtanh.bf16.pop %v1335
        %v1368 = vtanh.bf16.pop %v1336
        %v1369 = vtanh.bf16.pop %v1337
        %v1370 = vtanh.bf16.pop %v1338
        %v1371 = vtanh.bf16.pop %v1339
        %v1372 = vtanh.bf16.pop %v1340
        %v1373 = vtanh.bf16.pop %v1341
        %v1374 = vtanh.bf16.pop %v1342
        %v1375 = vtanh.bf16.pop %v1343
        %v1376 = vtanh.bf16.pop %v1344
        %v1377 = vtanh.bf16.pop %v1345
        %v1378 = vtanh.bf16.pop %v1346
        %v1379 = vtanh.bf16.pop %v1347
        %v1380 = vtanh.bf16.pop %v1348
        %v1381 = vtanh.bf16.pop %v1349
        %v1382 = vtanh.bf16.pop %v1350
        %v1383 = vtanh.bf16.pop %v1351
        %v1384 = vtanh.bf16.pop %v1352
        %v1385 = vld [vmem:[%s5] sm:$0xf]
        %v1386 = vld [vmem:[%s5 + $0x4] sm:$0xf]
        %v1387 = vld [vmem:[%s5 + $0x8] sm:$0xf]
        %v1388 = vld [vmem:[%s5 + $0xc] sm:$0xf]
        %v1389 = vld [vmem:[%s5 + $0x10] sm:$0xf]
        %v1390 = vld [vmem:[%s5 + $0x14] sm:$0xf]
        %v1391 = vld [vmem:[%s5 + $0x18] sm:$0xf]
        %v1392 = vld [vmem:[%s5 + $0x1c] sm:$0xf]
        %v1393 = vld [vmem:[%s5 + $0x20] sm:$0xf]
        %v1394 = vld [vmem:[%s5 + $0x24] sm:$0xf]
        %v1395 = vld [vmem:[%s5 + $0x28] sm:$0xf]
        %v1396 = vld [vmem:[%s5 + $0x2c] sm:$0xf]
        %v1397 = vld [vmem:[%s5 + $0x30] sm:$0xf]
        %v1398 = vld [vmem:[%s5 + $0x34] sm:$0xf]
        %v1399 = vld [vmem:[%s5 + $0x38] sm:$0xf]
        %v1400 = vld [vmem:[%s5 + $0x3c] sm:$0xf]
        %v1401 = vld [vmem:[%s5 + $0x40] sm:$0xf]
        %v1402 = vld [vmem:[%s5 + $0x44] sm:$0xf]
        %v1403 = vld [vmem:[%s5 + $0x48] sm:$0xf]
        %v1404 = vld [vmem:[%s5 + $0x4c] sm:$0xf]
        %v1405 = vld [vmem:[%s5 + $0x50] sm:$0xf]
        %v1406 = vld [vmem:[%s5 + $0x54] sm:$0xf]
        %v1407 = vld [vmem:[%s5 + $0x58] sm:$0xf]
        %v1408 = vld [vmem:[%s5 + $0x5c] sm:$0xf]
        %v1409 = vld [vmem:[%s5 + $0x60] sm:$0xf]
        %v1410 = vld [vmem:[%s5 + $0x64] sm:$0xf]
        %v1411 = vld [vmem:[%s5 + $0x68] sm:$0xf]
        %v1412 = vld [vmem:[%s5 + $0x6c] sm:$0xf]
        %v1413 = vld [vmem:[%s5 + $0x70] sm:$0xf]
        %v1414 = vld [vmem:[%s5 + $0x74] sm:$0xf]
        %v1415 = vld [vmem:[%s5 + $0x78] sm:$0xf]
        %v1416 = vld [vmem:[%s5 + $0x7c] sm:$0xf]
        %v1417 = vld [vmem:[%s6] sm:$0xf]
        %v1418 = vld [vmem:[%s6 + $0x4] sm:$0xf]
        %v1419 = vld [vmem:[%s6 + $0x8] sm:$0xf]
        %v1420 = vld [vmem:[%s6 + $0xc] sm:$0xf]
        %v1421 = vld [vmem:[%s6 + $0x10] sm:$0xf]
        %v1422 = vld [vmem:[%s6 + $0x14] sm:$0xf]
        %v1423 = vld [vmem:[%s6 + $0x18] sm:$0xf]
        %v1424 = vld [vmem:[%s6 + $0x1c] sm:$0xf]
        %v1425 = vld [vmem:[%s6 + $0x20] sm:$0xf]
        %v1426 = vld [vmem:[%s6 + $0x24] sm:$0xf]
        %v1427 = vld [vmem:[%s6 + $0x28] sm:$0xf]
        %v1428 = vld [vmem:[%s6 + $0x2c] sm:$0xf]
        %v1429 = vld [vmem:[%s6 + $0x30] sm:$0xf]
        %v1430 = vld [vmem:[%s6 + $0x34] sm:$0xf]
        %v1431 = vld [vmem:[%s6 + $0x38] sm:$0xf]
        %v1432 = vld [vmem:[%s6 + $0x3c] sm:$0xf]
        %v1433 = vld [vmem:[%s6 + $0x40] sm:$0xf]
        %v1434 = vld [vmem:[%s6 + $0x44] sm:$0xf]
        %v1435 = vld [vmem:[%s6 + $0x48] sm:$0xf]
        %v1436 = vld [vmem:[%s6 + $0x4c] sm:$0xf]
        %v1437 = vld [vmem:[%s6 + $0x50] sm:$0xf]
        %v1438 = vld [vmem:[%s6 + $0x54] sm:$0xf]
        %v1439 = vld [vmem:[%s6 + $0x58] sm:$0xf]
        %v1440 = vld [vmem:[%s6 + $0x5c] sm:$0xf]
        %v1441 = vld [vmem:[%s6 + $0x60] sm:$0xf]
        %v1442 = vld [vmem:[%s6 + $0x64] sm:$0xf]
        %v1443 = vld [vmem:[%s6 + $0x68] sm:$0xf]
        %v1444 = vld [vmem:[%s6 + $0x6c] sm:$0xf]
        %v1445 = vld [vmem:[%s6 + $0x70] sm:$0xf]
        %v1446 = vld [vmem:[%s6 + $0x74] sm:$0xf]
        %v1447 = vld [vmem:[%s6 + $0x78] sm:$0xf]
        %v1448 = vld [vmem:[%s6 + $0x7c] sm:$0xf]
        %v1481 = vunpack.c.l.b16 %v1385
        %v1482 = vunpack.c.l.b16 %v1386
        %v1483 = vunpack.c.l.b16 %v1387
        %v1484 = vunpack.c.l.b16 %v1388
        %v1485 = vunpack.c.l.b16 %v1389
        %v1486 = vunpack.c.l.b16 %v1390
        %v1487 = vunpack.c.l.b16 %v1391
        %v1488 = vunpack.c.l.b16 %v1392
        %v1489 = vunpack.c.l.b16 %v1393
        %v1490 = vunpack.c.l.b16 %v1394
        %v1491 = vunpack.c.l.b16 %v1395
        %v1492 = vunpack.c.l.b16 %v1396
        %v1493 = vunpack.c.l.b16 %v1397
        %v1494 = vunpack.c.l.b16 %v1398
        %v1495 = vunpack.c.l.b16 %v1399
        %v1496 = vunpack.c.l.b16 %v1400
        %v1497 = vunpack.c.l.b16 %v1401
        %v1498 = vunpack.c.l.b16 %v1402
        %v1499 = vunpack.c.l.b16 %v1403
        %v1500 = vunpack.c.l.b16 %v1404
        %v1501 = vunpack.c.l.b16 %v1405
        %v1502 = vunpack.c.l.b16 %v1406
        %v1503 = vunpack.c.l.b16 %v1407
        %v1504 = vunpack.c.l.b16 %v1408
        %v1505 = vunpack.c.l.b16 %v1409
        %v1506 = vunpack.c.l.b16 %v1410
        %v1507 = vunpack.c.l.b16 %v1411
        %v1508 = vunpack.c.l.b16 %v1412
        %v1509 = vunpack.c.l.b16 %v1413
        %v1510 = vunpack.c.l.b16 %v1414
        %v1511 = vunpack.c.l.b16 %v1415
        %v1512 = vunpack.c.l.b16 %v1416
        %v1513 = vpack.c.b16 %v1482, %v1481
        %v1514 = vpack.c.b16 %v1484, %v1483
        %v1515 = vpack.c.b16 %v1486, %v1485
        %v1516 = vpack.c.b16 %v1488, %v1487
        %v1517 = vpack.c.b16 %v1490, %v1489
        %v1518 = vpack.c.b16 %v1492, %v1491
        %v1519 = vpack.c.b16 %v1494, %v1493
        %v1520 = vpack.c.b16 %v1496, %v1495
        %v1521 = vpack.c.b16 %v1498, %v1497
        %v1522 = vpack.c.b16 %v1500, %v1499
        %v1523 = vpack.c.b16 %v1502, %v1501
        %v1524 = vpack.c.b16 %v1504, %v1503
        %v1525 = vpack.c.b16 %v1506, %v1505
        %v1526 = vpack.c.b16 %v1508, %v1507
        %v1527 = vpack.c.b16 %v1510, %v1509
        %v1528 = vpack.c.b16 %v1512, %v1511
        %1545 = vmatprep.subr.bf16.mxu0 %v1382
        %1546 = vmatpush1.bf16.msra.mxu0 %v1381
        %1547 = vmatprep.subr.bf16.mxu0 %v1378
        %1548 = vmatpush1.bf16.msra.mxu0 %v1377
        %1549 = vmatprep.subr.bf16.mxu0 %v1374
        %1550 = vmatpush1.bf16.msra.mxu0 %v1373
        %1551 = vmatprep.subr.bf16.mxu0 %v1370
        %1552 = vmatpush1.bf16.msra.mxu0 %v1369
        %1553 = vmatprep.subr.bf16.mxu0 %v1366
        %1554 = vmatpush1.bf16.msra.mxu0 %v1365
        %1555 = vmatprep.subr.bf16.mxu0 %v1362
        %1556 = vmatpush1.bf16.msra.mxu0 %v1361
        %1557 = vmatprep.subr.bf16.mxu0 %v1358
        %1558 = vmatpush1.bf16.msra.mxu0 %v1357
        %1559 = vmatprep.subr.bf16.mxu0 %v1354
        %1560 = vmatpush1.bf16.msra.mxu0 %v1353
        %1561 = vmatprep.subr.bf16.mxu0 0
        %1562 = vmatpush2.bf16.msra.mxu0 0
        %1563 = vmatprep.subr.bf16.mxu0 0
        %1564 = vmatpush2.bf16.msra.mxu0 0
        %1565 = vmatprep.subr.bf16.mxu0 0
        %1566 = vmatpush2.bf16.msra.mxu0 0
        %1567 = vmatprep.subr.bf16.mxu0 0
        %1568 = vmatpush2.bf16.msra.mxu0 0
        %1569 = vmatprep.subr.bf16.mxu0 0
        %1570 = vmatpush2.bf16.msra.mxu0 0
        %1571 = vmatprep.subr.bf16.mxu0 0
        %1572 = vmatpush2.bf16.msra.mxu0 0
        %1573 = vmatprep.subr.bf16.mxu0 0
        %1574 = vmatpush2.bf16.msra.mxu0 0
        %1575 = vmatprep.subr.bf16.mxu0 0
        %1576 = vmatpush2.bf16.msra.mxu0 0
        %1577 = vmatprep.mubr.bf16.mxu0 0
        %1578 = vmatmul.mubr.bf16.gmra.mxu0 %v1513
        %v1579 = vpop.f32.mrf.mxu0
        %v1580 = vadd.f32 0.0, %v1579
        %v1581 = vpop.f32.mrf.mxu0
        %v1582 = vadd.f32 0.0, %v1581
        %v1583 = vpop.f32.mrf.mxu0
        %v1584 = vadd.f32 0.0, %v1583
        %v1585 = vpop.f32.mrf.mxu0
        %v1586 = vadd.f32 0.0, %v1585
        %1587 = vmatprep.mubr.bf16.mxu0 0
        %1588 = vmatmul.mubr.bf16.gmra.mxu0 %v1514
        %v1589 = vpop.f32.mrf.mxu0
        %v1590 = vadd.f32 0.0, %v1589
        %v1591 = vpop.f32.mrf.mxu0
        %v1592 = vadd.f32 0.0, %v1591
        %v1593 = vpop.f32.mrf.mxu0
        %v1594 = vadd.f32 0.0, %v1593
        %v1595 = vpop.f32.mrf.mxu0
        %v1596 = vadd.f32 0.0, %v1595
        %1597 = vmatprep.mubr.bf16.mxu0 0
        %1598 = vmatmul.mubr.bf16.gmra.mxu0 %v1515
        %v1599 = vpop.f32.mrf.mxu0
        %v1600 = vadd.f32 0.0, %v1599
        %v1601 = vpop.f32.mrf.mxu0
        %v1602 = vadd.f32 0.0, %v1601
        %v1603 = vpop.f32.mrf.mxu0
        %v1604 = vadd.f32 0.0, %v1603
        %v1605 = vpop.f32.mrf.mxu0
        %v1606 = vadd.f32 0.0, %v1605
        %1607 = vmatprep.mubr.bf16.mxu0 0
        %1608 = vmatmul.mubr.bf16.gmra.mxu0 %v1516
        %v1609 = vpop.f32.mrf.mxu0
        %v1610 = vadd.f32 0.0, %v1609
        %v1611 = vpop.f32.mrf.mxu0
        %v1612 = vadd.f32 0.0, %v1611
        %v1613 = vpop.f32.mrf.mxu0
        %v1614 = vadd.f32 0.0, %v1613
        %v1615 = vpop.f32.mrf.mxu0
        %v1616 = vadd.f32 0.0, %v1615
        %1617 = vmatprep.mubr.bf16.mxu0 0
        %1618 = vmatmul.mubr.bf16.gmra.mxu0 %v1517
        %v1619 = vpop.f32.mrf.mxu0
        %v1620 = vadd.f32 0.0, %v1619
        %v1621 = vpop.f32.mrf.mxu0
        %v1622 = vadd.f32 0.0, %v1621
        %v1623 = vpop.f32.mrf.mxu0
        %v1624 = vadd.f32 0.0, %v1623
        %v1625 = vpop.f32.mrf.mxu0
        %v1626 = vadd.f32 0.0, %v1625
        %1627 = vmatprep.mubr.bf16.mxu0 0
        %1628 = vmatmul.mubr.bf16.gmra.mxu0 %v1518
        %v1629 = vpop.f32.mrf.mxu0
        %v1630 = vadd.f32 0.0, %v1629
        %v1631 = vpop.f32.mrf.mxu0
        %v1632 = vadd.f32 0.0, %v1631
        %v1633 = vpop.f32.mrf.mxu0
        %v1634 = vadd.f32 0.0, %v1633
        %v1635 = vpop.f32.mrf.mxu0
        %v1636 = vadd.f32 0.0, %v1635
        %1637 = vmatprep.mubr.bf16.mxu0 0
        %1638 = vmatmul.mubr.bf16.gmra.mxu0 %v1519
        %v1639 = vpop.f32.mrf.mxu0
        %v1640 = vadd.f32 0.0, %v1639
        %v1641 = vpop.f32.mrf.mxu0
        %v1642 = vadd.f32 0.0, %v1641
        %v1643 = vpop.f32.mrf.mxu0
        %v1644 = vadd.f32 0.0, %v1643
        %v1645 = vpop.f32.mrf.mxu0
        %v1646 = vadd.f32 0.0, %v1645
        %1647 = vmatprep.mubr.bf16.mxu0 0
        %1648 = vmatmul.mubr.bf16.gmra.mxu0 %v1520
        %v1649 = vpop.f32.mrf.mxu0
        %v1650 = vadd.f32 0.0, %v1649
        %v1651 = vpop.f32.mrf.mxu0
        %v1652 = vadd.f32 0.0, %v1651
        %v1653 = vpop.f32.mrf.mxu0
        %v1654 = vadd.f32 0.0, %v1653
        %v1655 = vpop.f32.mrf.mxu0
        %v1656 = vadd.f32 0.0, %v1655
        %1657 = vmatprep.mubr.bf16.mxu0 0
        %1658 = vmatmul.mubr.bf16.gmra.mxu0 %v1521
        %v1659 = vpop.f32.mrf.mxu0
        %v1660 = vadd.f32 0.0, %v1659
        %v1661 = vpop.f32.mrf.mxu0
        %v1662 = vadd.f32 0.0, %v1661
        %v1663 = vpop.f32.mrf.mxu0
        %v1664 = vadd.f32 0.0, %v1663
        %v1665 = vpop.f32.mrf.mxu0
        %v1666 = vadd.f32 0.0, %v1665
        %1667 = vmatprep.mubr.bf16.mxu0 0
        %1668 = vmatmul.mubr.bf16.gmra.mxu0 %v1522
        %v1669 = vpop.f32.mrf.mxu0
        %v1670 = vadd.f32 0.0, %v1669
        %v1671 = vpop.f32.mrf.mxu0
        %v1672 = vadd.f32 0.0, %v1671
        %v1673 = vpop.f32.mrf.mxu0
        %v1674 = vadd.f32 0.0, %v1673
        %v1675 = vpop.f32.mrf.mxu0
        %v1676 = vadd.f32 0.0, %v1675
        %1677 = vmatprep.mubr.bf16.mxu0 0
        %1678 = vmatmul.mubr.bf16.gmra.mxu0 %v1523
        %v1679 = vpop.f32.mrf.mxu0
        %v1680 = vadd.f32 0.0, %v1679
        %v1681 = vpop.f32.mrf.mxu0
        %v1682 = vadd.f32 0.0, %v1681
        %v1683 = vpop.f32.mrf.mxu0
        %v1684 = vadd.f32 0.0, %v1683
        %v1685 = vpop.f32.mrf.mxu0
        %v1686 = vadd.f32 0.0, %v1685
        %1687 = vmatprep.mubr.bf16.mxu0 0
        %1688 = vmatmul.mubr.bf16.gmra.mxu0 %v1524
        %v1689 = vpop.f32.mrf.mxu0
        %v1690 = vadd.f32 0.0, %v1689
        %v1691 = vpop.f32.mrf.mxu0
        %v1692 = vadd.f32 0.0, %v1691
        %v1693 = vpop.f32.mrf.mxu0
        %v1694 = vadd.f32 0.0, %v1693
        %v1695 = vpop.f32.mrf.mxu0
        %v1696 = vadd.f32 0.0, %v1695
        %1697 = vmatprep.mubr.bf16.mxu0 0
        %1698 = vmatmul.mubr.bf16.gmra.mxu0 %v1525
        %v1699 = vpop.f32.mrf.mxu0
        %v1700 = vadd.f32 0.0, %v1699
        %v1701 = vpop.f32.mrf.mxu0
        %v1702 = vadd.f32 0.0, %v1701
        %v1703 = vpop.f32.mrf.mxu0
        %v1704 = vadd.f32 0.0, %v1703
        %v1705 = vpop.f32.mrf.mxu0
        %v1706 = vadd.f32 0.0, %v1705
        %1707 = vmatprep.mubr.bf16.mxu0 0
        %1708 = vmatmul.mubr.bf16.gmra.mxu0 %v1526
        %v1709 = vpop.f32.mrf.mxu0
        %v1710 = vadd.f32 0.0, %v1709
        %v1711 = vpop.f32.mrf.mxu0
        %v1712 = vadd.f32 0.0, %v1711
        %v1713 = vpop.f32.mrf.mxu0
        %v1714 = vadd.f32 0.0, %v1713
        %v1715 = vpop.f32.mrf.mxu0
        %v1716 = vadd.f32 0.0, %v1715
        %1717 = vmatprep.mubr.bf16.mxu0 0
        %1718 = vmatmul.mubr.bf16.gmra.mxu0 %v1527
        %v1719 = vpop.f32.mrf.mxu0
        %v1720 = vadd.f32 0.0, %v1719
        %v1721 = vpop.f32.mrf.mxu0
        %v1722 = vadd.f32 0.0, %v1721
        %v1723 = vpop.f32.mrf.mxu0
        %v1724 = vadd.f32 0.0, %v1723
        %v1725 = vpop.f32.mrf.mxu0
        %v1726 = vadd.f32 0.0, %v1725
        %1727 = vmatprep.mubr.bf16.mxu0 0
        %1728 = vmatmul.mubr.bf16.gmra.mxu0 %v1528
        %v1729 = vpop.f32.mrf.mxu0
        %v1730 = vadd.f32 0.0, %v1729
        %v1731 = vpop.f32.mrf.mxu0
        %v1732 = vadd.f32 0.0, %v1731
        %v1733 = vpop.f32.mrf.mxu0
        %v1734 = vadd.f32 0.0, %v1733
        %v1735 = vpop.f32.mrf.mxu0
        %v1736 = vadd.f32 0.0, %v1735
        %1737 = vdwg.mxu0
        %1738 = vmatprep.subr.bf16.mxu0 %v1384
        %1739 = vmatpush1.bf16.msra.mxu0 %v1383
        %1740 = vmatprep.subr.bf16.mxu0 %v1380
        %1741 = vmatpush1.bf16.msra.mxu0 %v1379
        %1742 = vmatprep.subr.bf16.mxu0 %v1376
        %1743 = vmatpush1.bf16.msra.mxu0 %v1375
        %1744 = vmatprep.subr.bf16.mxu0 %v1372
        %1745 = vmatpush1.bf16.msra.mxu0 %v1371
        %1746 = vmatprep.subr.bf16.mxu0 %v1368
        %1747 = vmatpush1.bf16.msra.mxu0 %v1367
        %1748 = vmatprep.subr.bf16.mxu0 %v1364
        %1749 = vmatpush1.bf16.msra.mxu0 %v1363
        %1750 = vmatprep.subr.bf16.mxu0 %v1360
        %1751 = vmatpush1.bf16.msra.mxu0 %v1359
        %1752 = vmatprep.subr.bf16.mxu0 %v1356
        %1753 = vmatpush1.bf16.msra.mxu0 %v1355
        %1754 = vmatprep.subr.bf16.mxu0 0
        %1755 = vmatpush2.bf16.msra.mxu0 0
        %1756 = vmatprep.subr.bf16.mxu0 0
        %1757 = vmatpush2.bf16.msra.mxu0 0
        %1758 = vmatprep.subr.bf16.mxu0 0
        %1759 = vmatpush2.bf16.msra.mxu0 0
        %1760 = vmatprep.subr.bf16.mxu0 0
        %1761 = vmatpush2.bf16.msra.mxu0 0
        %1762 = vmatprep.subr.bf16.mxu0 0
        %1763 = vmatpush2.bf16.msra.mxu0 0
        %1764 = vmatprep.subr.bf16.mxu0 0
        %1765 = vmatpush2.bf16.msra.mxu0 0
        %1766 = vmatprep.subr.bf16.mxu0 0
        %1767 = vmatpush2.bf16.msra.mxu0 0
        %1768 = vmatprep.subr.bf16.mxu0 0
        %1769 = vmatpush2.bf16.msra.mxu0 0
        %1770 = vmatprep.mubr.bf16.mxu0 0
        %1771 = vmatmul.mubr.bf16.gmra.mxu0 %v1513
        %v1772 = vpop.f32.mrf.mxu0
        %v1773 = vadd.f32 0.0, %v1772
        %v1774 = vpop.f32.mrf.mxu0
        %v1775 = vadd.f32 0.0, %v1774
        %v1776 = vpop.f32.mrf.mxu0
        %v1777 = vadd.f32 0.0, %v1776
        %v1778 = vpop.f32.mrf.mxu0
        %v1779 = vadd.f32 0.0, %v1778
        %1780 = vmatprep.mubr.bf16.mxu0 0
        %1781 = vmatmul.mubr.bf16.gmra.mxu0 %v1514
        %v1782 = vpop.f32.mrf.mxu0
        %v1783 = vadd.f32 0.0, %v1782
        %v1784 = vpop.f32.mrf.mxu0
        %v1785 = vadd.f32 0.0, %v1784
        %v1786 = vpop.f32.mrf.mxu0
        %v1787 = vadd.f32 0.0, %v1786
        %v1788 = vpop.f32.mrf.mxu0
        %v1789 = vadd.f32 0.0, %v1788
        %1790 = vmatprep.mubr.bf16.mxu0 0
        %1791 = vmatmul.mubr.bf16.gmra.mxu0 %v1515
        %v1792 = vpop.f32.mrf.mxu0
        %v1793 = vadd.f32 0.0, %v1792
        %v1794 = vpop.f32.mrf.mxu0
        %v1795 = vadd.f32 0.0, %v1794
        %v1796 = vpop.f32.mrf.mxu0
        %v1797 = vadd.f32 0.0, %v1796
        %v1798 = vpop.f32.mrf.mxu0
        %v1799 = vadd.f32 0.0, %v1798
        %1800 = vmatprep.mubr.bf16.mxu0 0
        %1801 = vmatmul.mubr.bf16.gmra.mxu0 %v1516
        %v1802 = vpop.f32.mrf.mxu0
        %v1803 = vadd.f32 0.0, %v1802
        %v1804 = vpop.f32.mrf.mxu0
        %v1805 = vadd.f32 0.0, %v1804
        %v1806 = vpop.f32.mrf.mxu0
        %v1807 = vadd.f32 0.0, %v1806
        %v1808 = vpop.f32.mrf.mxu0
        %v1809 = vadd.f32 0.0, %v1808
        %1810 = vmatprep.mubr.bf16.mxu0 0
        %1811 = vmatmul.mubr.bf16.gmra.mxu0 %v1517
        %v1812 = vpop.f32.mrf.mxu0
        %v1813 = vadd.f32 0.0, %v1812
        %v1814 = vpop.f32.mrf.mxu0
        %v1815 = vadd.f32 0.0, %v1814
        %v1816 = vpop.f32.mrf.mxu0
        %v1817 = vadd.f32 0.0, %v1816
        %v1818 = vpop.f32.mrf.mxu0
        %v1819 = vadd.f32 0.0, %v1818
        %1820 = vmatprep.mubr.bf16.mxu0 0
        %1821 = vmatmul.mubr.bf16.gmra.mxu0 %v1518
        %v1822 = vpop.f32.mrf.mxu0
        %v1823 = vadd.f32 0.0, %v1822
        %v1824 = vpop.f32.mrf.mxu0
        %v1825 = vadd.f32 0.0, %v1824
        %v1826 = vpop.f32.mrf.mxu0
        %v1827 = vadd.f32 0.0, %v1826
        %v1828 = vpop.f32.mrf.mxu0
        %v1829 = vadd.f32 0.0, %v1828
        %1830 = vmatprep.mubr.bf16.mxu0 0
        %1831 = vmatmul.mubr.bf16.gmra.mxu0 %v1519
        %v1832 = vpop.f32.mrf.mxu0
        %v1833 = vadd.f32 0.0, %v1832
        %v1834 = vpop.f32.mrf.mxu0
        %v1835 = vadd.f32 0.0, %v1834
        %v1836 = vpop.f32.mrf.mxu0
        %v1837 = vadd.f32 0.0, %v1836
        %v1838 = vpop.f32.mrf.mxu0
        %v1839 = vadd.f32 0.0, %v1838
        %1840 = vmatprep.mubr.bf16.mxu0 0
        %1841 = vmatmul.mubr.bf16.gmra.mxu0 %v1520
        %v1842 = vpop.f32.mrf.mxu0
        %v1843 = vadd.f32 0.0, %v1842
        %v1844 = vpop.f32.mrf.mxu0
        %v1845 = vadd.f32 0.0, %v1844
        %v1846 = vpop.f32.mrf.mxu0
        %v1847 = vadd.f32 0.0, %v1846
        %v1848 = vpop.f32.mrf.mxu0
        %v1849 = vadd.f32 0.0, %v1848
        %1850 = vmatprep.mubr.bf16.mxu0 0
        %1851 = vmatmul.mubr.bf16.gmra.mxu0 %v1521
        %v1852 = vpop.f32.mrf.mxu0
        %v1853 = vadd.f32 0.0, %v1852
        %v1854 = vpop.f32.mrf.mxu0
        %v1855 = vadd.f32 0.0, %v1854
        %v1856 = vpop.f32.mrf.mxu0
        %v1857 = vadd.f32 0.0, %v1856
        %v1858 = vpop.f32.mrf.mxu0
        %v1859 = vadd.f32 0.0, %v1858
        %1860 = vmatprep.mubr.bf16.mxu0 0
        %1861 = vmatmul.mubr.bf16.gmra.mxu0 %v1522
        %v1862 = vpop.f32.mrf.mxu0
        %v1863 = vadd.f32 0.0, %v1862
        %v1864 = vpop.f32.mrf.mxu0
        %v1865 = vadd.f32 0.0, %v1864
        %v1866 = vpop.f32.mrf.mxu0
        %v1867 = vadd.f32 0.0, %v1866
        %v1868 = vpop.f32.mrf.mxu0
        %v1869 = vadd.f32 0.0, %v1868
        %1870 = vmatprep.mubr.bf16.mxu0 0
        %1871 = vmatmul.mubr.bf16.gmra.mxu0 %v1523
        %v1872 = vpop.f32.mrf.mxu0
        %v1873 = vadd.f32 0.0, %v1872
        %v1874 = vpop.f32.mrf.mxu0
        %v1875 = vadd.f32 0.0, %v1874
        %v1876 = vpop.f32.mrf.mxu0
        %v1877 = vadd.f32 0.0, %v1876
        %v1878 = vpop.f32.mrf.mxu0
        %v1879 = vadd.f32 0.0, %v1878
        %1880 = vmatprep.mubr.bf16.mxu0 0
        %1881 = vmatmul.mubr.bf16.gmra.mxu0 %v1524
        %v1882 = vpop.f32.mrf.mxu0
        %v1883 = vadd.f32 0.0, %v1882
        %v1884 = vpop.f32.mrf.mxu0
        %v1885 = vadd.f32 0.0, %v1884
        %v1886 = vpop.f32.mrf.mxu0
        %v1887 = vadd.f32 0.0, %v1886
        %v1888 = vpop.f32.mrf.mxu0
        %v1889 = vadd.f32 0.0, %v1888
        %1890 = vmatprep.mubr.bf16.mxu0 0
        %1891 = vmatmul.mubr.bf16.gmra.mxu0 %v1525
        %v1892 = vpop.f32.mrf.mxu0
        %v1893 = vadd.f32 0.0, %v1892
        %v1894 = vpop.f32.mrf.mxu0
        %v1895 = vadd.f32 0.0, %v1894
        %v1896 = vpop.f32.mrf.mxu0
        %v1897 = vadd.f32 0.0, %v1896
        %v1898 = vpop.f32.mrf.mxu0
        %v1899 = vadd.f32 0.0, %v1898
        %1900 = vmatprep.mubr.bf16.mxu0 0
        %1901 = vmatmul.mubr.bf16.gmra.mxu0 %v1526
        %v1902 = vpop.f32.mrf.mxu0
        %v1903 = vadd.f32 0.0, %v1902
        %v1904 = vpop.f32.mrf.mxu0
        %v1905 = vadd.f32 0.0, %v1904
        %v1906 = vpop.f32.mrf.mxu0
        %v1907 = vadd.f32 0.0, %v1906
        %v1908 = vpop.f32.mrf.mxu0
        %v1909 = vadd.f32 0.0, %v1908
        %1910 = vmatprep.mubr.bf16.mxu0 0
        %1911 = vmatmul.mubr.bf16.gmra.mxu0 %v1527
        %v1912 = vpop.f32.mrf.mxu0
        %v1913 = vadd.f32 0.0, %v1912
        %v1914 = vpop.f32.mrf.mxu0
        %v1915 = vadd.f32 0.0, %v1914
        %v1916 = vpop.f32.mrf.mxu0
        %v1917 = vadd.f32 0.0, %v1916
        %v1918 = vpop.f32.mrf.mxu0
        %v1919 = vadd.f32 0.0, %v1918
        %1920 = vmatprep.mubr.bf16.mxu0 0
        %1921 = vmatmul.mubr.bf16.gmra.mxu0 %v1528
        %v1922 = vpop.f32.mrf.mxu0
        %v1923 = vadd.f32 0.0, %v1922
        %v1924 = vpop.f32.mrf.mxu0
        %v1925 = vadd.f32 0.0, %v1924
        %v1926 = vpop.f32.mrf.mxu0
        %v1927 = vadd.f32 0.0, %v1926
        %v1928 = vpop.f32.mrf.mxu0
        %v1929 = vadd.f32 0.0, %v1928
        %1930 = vdwg.mxu0
        %v1931 = vpack.c.bf16 %v1584, %v1580
        %v1932 = vpack.c.bf16 %v1586, %v1582
        %v1933 = vpack.c.bf16 %v1777, %v1773
        %v1934 = vpack.c.bf16 %v1779, %v1775
        %v1935 = vpack.c.bf16 %v1594, %v1590
        %v1936 = vpack.c.bf16 %v1596, %v1592
        %v1937 = vpack.c.bf16 %v1787, %v1783
        %v1938 = vpack.c.bf16 %v1789, %v1785
        %v1939 = vpack.c.bf16 %v1604, %v1600
        %v1940 = vpack.c.bf16 %v1606, %v1602
        %v1941 = vpack.c.bf16 %v1797, %v1793
        %v1942 = vpack.c.bf16 %v1799, %v1795
        %v1943 = vpack.c.bf16 %v1614, %v1610
        %v1944 = vpack.c.bf16 %v1616, %v1612
        %v1945 = vpack.c.bf16 %v1807, %v1803
        %v1946 = vpack.c.bf16 %v1809, %v1805
        %v1947 = vpack.c.bf16 %v1624, %v1620
        %v1948 = vpack.c.bf16 %v1626, %v1622
        %v1949 = vpack.c.bf16 %v1817, %v1813
        %v1950 = vpack.c.bf16 %v1819, %v1815
        %v1951 = vpack.c.bf16 %v1634, %v1630
        %v1952 = vpack.c.bf16 %v1636, %v1632
        %v1953 = vpack.c.bf16 %v1827, %v1823
        %v1954 = vpack.c.bf16 %v1829, %v1825
        %v1955 = vpack.c.bf16 %v1644, %v1640
        %v1956 = vpack.c.bf16 %v1646, %v1642
        %v1957 = vpack.c.bf16 %v1837, %v1833
        %v1958 = vpack.c.bf16 %v1839, %v1835
        %v1959 = vpack.c.bf16 %v1654, %v1650
        %v1960 = vpack.c.bf16 %v1656, %v1652
        %v1961 = vpack.c.bf16 %v1847, %v1843
        %v1962 = vpack.c.bf16 %v1849, %v1845
        %v1963 = vpack.c.bf16 %v1664, %v1660
        %v1964 = vpack.c.bf16 %v1666, %v1662
        %v1965 = vpack.c.bf16 %v1857, %v1853
        %v1966 = vpack.c.bf16 %v1859, %v1855
        %v1967 = vpack.c.bf16 %v1674, %v1670
        %v1968 = vpack.c.bf16 %v1676, %v1672
        %v1969 = vpack.c.bf16 %v1867, %v1863
        %v1970 = vpack.c.bf16 %v1869, %v1865
        %v1971 = vpack.c.bf16 %v1684, %v1680
        %v1972 = vpack.c.bf16 %v1686, %v1682
        %v1973 = vpack.c.bf16 %v1877, %v1873
        %v1974 = vpack.c.bf16 %v1879, %v1875
        %v1975 = vpack.c.bf16 %v1694, %v1690
        %v1976 = vpack.c.bf16 %v1696, %v1692
        %v1977 = vpack.c.bf16 %v1887, %v1883
        %v1978 = vpack.c.bf16 %v1889, %v1885
        %v1979 = vpack.c.bf16 %v1704, %v1700
        %v1980 = vpack.c.bf16 %v1706, %v1702
        %v1981 = vpack.c.bf16 %v1897, %v1893
        %v1982 = vpack.c.bf16 %v1899, %v1895
        %v1983 = vpack.c.bf16 %v1714, %v1710
        %v1984 = vpack.c.bf16 %v1716, %v1712
        %v1985 = vpack.c.bf16 %v1907, %v1903
        %v1986 = vpack.c.bf16 %v1909, %v1905
        %v1987 = vpack.c.bf16 %v1724, %v1720
        %v1988 = vpack.c.bf16 %v1726, %v1722
        %v1989 = vpack.c.bf16 %v1917, %v1913
        %v1990 = vpack.c.bf16 %v1919, %v1915
        %v1991 = vpack.c.bf16 %v1734, %v1730
        %v1992 = vpack.c.bf16 %v1736, %v1732
        %v1993 = vpack.c.bf16 %v1927, %v1923
        %v1994 = vpack.c.bf16 %v1929, %v1925
        %1996 = vset.pattern.permute.xlu0 0
        %1997 = vperm.xlu0 %1996, %v1417
        %v1998 = vpop.permute.xlu0 %1997
        %v2001 = vunpack.c.l.s4 839922192
        %v2002 = vunpack.c.0.s8 %v2001
        %v2003 = vlaneseq
        %v2004 = vshrl.u32 %v2003, 7
        %v2005 = vsub.s32 %v2002, %v2004
        %v2006 = vrot.slane %v1998, %v2005
        %2008 = vset.pattern.permute.xlu0 0
        %2009 = vperm.xlu0 %2008, %v1418
        %v2010 = vpop.permute.xlu0 %2009
        %v2013 = vunpack.c.l.s4 839922192
        %v2014 = vunpack.c.0.s8 %v2013
        %v2015 = vlaneseq
        %v2016 = vshrl.u32 %v2015, 7
        %v2017 = vsub.s32 %v2014, %v2016
        %v2018 = vrot.slane %v2010, %v2017
        %2020 = vset.pattern.permute.xlu0 0
        %2021 = vperm.xlu0 %2020, %v1419
        %v2022 = vpop.permute.xlu0 %2021
        %v2025 = vunpack.c.l.s4 839922192
        %v2026 = vunpack.c.0.s8 %v2025
        %v2027 = vlaneseq
        %v2028 = vshrl.u32 %v2027, 7
        %v2029 = vsub.s32 %v2026, %v2028
        %v2030 = vrot.slane %v2022, %v2029
        %2032 = vset.pattern.permute.xlu0 0
        %2033 = vperm.xlu0 %2032, %v1420
        %v2034 = vpop.permute.xlu0 %2033
        %v2037 = vunpack.c.l.s4 839922192
        %v2038 = vunpack.c.0.s8 %v2037
        %v2039 = vlaneseq
        %v2040 = vshrl.u32 %v2039, 7
        %v2041 = vsub.s32 %v2038, %v2040
        %v2042 = vrot.slane %v2034, %v2041
        %2044 = vset.pattern.permute.xlu0 0
        %2045 = vperm.xlu0 %2044, %v1421
        %v2046 = vpop.permute.xlu0 %2045
        %v2049 = vunpack.c.l.s4 839922192
        %v2050 = vunpack.c.0.s8 %v2049
        %v2051 = vlaneseq
        %v2052 = vshrl.u32 %v2051, 7
        %v2053 = vsub.s32 %v2050, %v2052
        %v2054 = vrot.slane %v2046, %v2053
        %2056 = vset.pattern.permute.xlu0 0
        %2057 = vperm.xlu0 %2056, %v1422
        %v2058 = vpop.permute.xlu0 %2057
        %v2061 = vunpack.c.l.s4 839922192
        %v2062 = vunpack.c.0.s8 %v2061
        %v2063 = vlaneseq
        %v2064 = vshrl.u32 %v2063, 7
        %v2065 = vsub.s32 %v2062, %v2064
        %v2066 = vrot.slane %v2058, %v2065
        %2068 = vset.pattern.permute.xlu0 0
        %2069 = vperm.xlu0 %2068, %v1423
        %v2070 = vpop.permute.xlu0 %2069
        %v2073 = vunpack.c.l.s4 839922192
        %v2074 = vunpack.c.0.s8 %v2073
        %v2075 = vlaneseq
        %v2076 = vshrl.u32 %v2075, 7
        %v2077 = vsub.s32 %v2074, %v2076
        %v2078 = vrot.slane %v2070, %v2077
        %2080 = vset.pattern.permute.xlu0 0
        %2081 = vperm.xlu0 %2080, %v1424
        %v2082 = vpop.permute.xlu0 %2081
        %v2085 = vunpack.c.l.s4 839922192
        %v2086 = vunpack.c.0.s8 %v2085
        %v2087 = vlaneseq
        %v2088 = vshrl.u32 %v2087, 7
        %v2089 = vsub.s32 %v2086, %v2088
        %v2090 = vrot.slane %v2082, %v2089
        %2092 = vset.pattern.permute.xlu0 0
        %2093 = vperm.xlu0 %2092, %v1425
        %v2094 = vpop.permute.xlu0 %2093
        %v2097 = vunpack.c.l.s4 839922192
        %v2098 = vunpack.c.0.s8 %v2097
        %v2099 = vlaneseq
        %v2100 = vshrl.u32 %v2099, 7
        %v2101 = vsub.s32 %v2098, %v2100
        %v2102 = vrot.slane %v2094, %v2101
        %2104 = vset.pattern.permute.xlu0 0
        %2105 = vperm.xlu0 %2104, %v1426
        %v2106 = vpop.permute.xlu0 %2105
        %v2109 = vunpack.c.l.s4 839922192
        %v2110 = vunpack.c.0.s8 %v2109
        %v2111 = vlaneseq
        %v2112 = vshrl.u32 %v2111, 7
        %v2113 = vsub.s32 %v2110, %v2112
        %v2114 = vrot.slane %v2106, %v2113
        %2116 = vset.pattern.permute.xlu0 0
        %2117 = vperm.xlu0 %2116, %v1427
        %v2118 = vpop.permute.xlu0 %2117
        %v2121 = vunpack.c.l.s4 839922192
        %v2122 = vunpack.c.0.s8 %v2121
        %v2123 = vlaneseq
        %v2124 = vshrl.u32 %v2123, 7
        %v2125 = vsub.s32 %v2122, %v2124
        %v2126 = vrot.slane %v2118, %v2125
        %2128 = vset.pattern.permute.xlu0 0
        %2129 = vperm.xlu0 %2128, %v1428
        %v2130 = vpop.permute.xlu0 %2129
        %v2133 = vunpack.c.l.s4 839922192
        %v2134 = vunpack.c.0.s8 %v2133
        %v2135 = vlaneseq
        %v2136 = vshrl.u32 %v2135, 7
        %v2137 = vsub.s32 %v2134, %v2136
        %v2138 = vrot.slane %v2130, %v2137
        %2140 = vset.pattern.permute.xlu0 0
        %2141 = vperm.xlu0 %2140, %v1429
        %v2142 = vpop.permute.xlu0 %2141
        %v2145 = vunpack.c.l.s4 839922192
        %v2146 = vunpack.c.0.s8 %v2145
        %v2147 = vlaneseq
        %v2148 = vshrl.u32 %v2147, 7
        %v2149 = vsub.s32 %v2146, %v2148
        %v2150 = vrot.slane %v2142, %v2149
        %2152 = vset.pattern.permute.xlu0 0
        %2153 = vperm.xlu0 %2152, %v1430
        %v2154 = vpop.permute.xlu0 %2153
        %v2157 = vunpack.c.l.s4 839922192
        %v2158 = vunpack.c.0.s8 %v2157
        %v2159 = vlaneseq
        %v2160 = vshrl.u32 %v2159, 7
        %v2161 = vsub.s32 %v2158, %v2160
        %v2162 = vrot.slane %v2154, %v2161
        %2164 = vset.pattern.permute.xlu0 0
        %2165 = vperm.xlu0 %2164, %v1431
        %v2166 = vpop.permute.xlu0 %2165
        %v2169 = vunpack.c.l.s4 839922192
        %v2170 = vunpack.c.0.s8 %v2169
        %v2171 = vlaneseq
        %v2172 = vshrl.u32 %v2171, 7
        %v2173 = vsub.s32 %v2170, %v2172
        %v2174 = vrot.slane %v2166, %v2173
        %2176 = vset.pattern.permute.xlu0 0
        %2177 = vperm.xlu0 %2176, %v1432
        %v2178 = vpop.permute.xlu0 %2177
        %v2181 = vunpack.c.l.s4 839922192
        %v2182 = vunpack.c.0.s8 %v2181
        %v2183 = vlaneseq
        %v2184 = vshrl.u32 %v2183, 7
        %v2185 = vsub.s32 %v2182, %v2184
        %v2186 = vrot.slane %v2178, %v2185
        %2188 = vset.pattern.permute.xlu0 0
        %2189 = vperm.xlu0 %2188, %v1433
        %v2190 = vpop.permute.xlu0 %2189
        %v2193 = vunpack.c.l.s4 839922192
        %v2194 = vunpack.c.0.s8 %v2193
        %v2195 = vlaneseq
        %v2196 = vshrl.u32 %v2195, 7
        %v2197 = vsub.s32 %v2194, %v2196
        %v2198 = vrot.slane %v2190, %v2197
        %2200 = vset.pattern.permute.xlu0 0
        %2201 = vperm.xlu0 %2200, %v1434
        %v2202 = vpop.permute.xlu0 %2201
        %v2205 = vunpack.c.l.s4 839922192
        %v2206 = vunpack.c.0.s8 %v2205
        %v2207 = vlaneseq
        %v2208 = vshrl.u32 %v2207, 7
        %v2209 = vsub.s32 %v2206, %v2208
        %v2210 = vrot.slane %v2202, %v2209
        %2212 = vset.pattern.permute.xlu0 0
        %2213 = vperm.xlu0 %2212, %v1435
        %v2214 = vpop.permute.xlu0 %2213
        %v2217 = vunpack.c.l.s4 839922192
        %v2218 = vunpack.c.0.s8 %v2217
        %v2219 = vlaneseq
        %v2220 = vshrl.u32 %v2219, 7
        %v2221 = vsub.s32 %v2218, %v2220
        %v2222 = vrot.slane %v2214, %v2221
        %2224 = vset.pattern.permute.xlu0 0
        %2225 = vperm.xlu0 %2224, %v1436
        %v2226 = vpop.permute.xlu0 %2225
        %v2229 = vunpack.c.l.s4 839922192
        %v2230 = vunpack.c.0.s8 %v2229
        %v2231 = vlaneseq
        %v2232 = vshrl.u32 %v2231, 7
        %v2233 = vsub.s32 %v2230, %v2232
        %v2234 = vrot.slane %v2226, %v2233
        %2236 = vset.pattern.permute.xlu0 0
        %2237 = vperm.xlu0 %2236, %v1437
        %v2238 = vpop.permute.xlu0 %2237
        %v2241 = vunpack.c.l.s4 839922192
        %v2242 = vunpack.c.0.s8 %v2241
        %v2243 = vlaneseq
        %v2244 = vshrl.u32 %v2243, 7
        %v2245 = vsub.s32 %v2242, %v2244
        %v2246 = vrot.slane %v2238, %v2245
        %2248 = vset.pattern.permute.xlu0 0
        %2249 = vperm.xlu0 %2248, %v1438
        %v2250 = vpop.permute.xlu0 %2249
        %v2253 = vunpack.c.l.s4 839922192
        %v2254 = vunpack.c.0.s8 %v2253
        %v2255 = vlaneseq
        %v2256 = vshrl.u32 %v2255, 7
        %v2257 = vsub.s32 %v2254, %v2256
        %v2258 = vrot.slane %v2250, %v2257
        %2260 = vset.pattern.permute.xlu0 0
        %2261 = vperm.xlu0 %2260, %v1439
        %v2262 = vpop.permute.xlu0 %2261
        %v2265 = vunpack.c.l.s4 839922192
        %v2266 = vunpack.c.0.s8 %v2265
        %v2267 = vlaneseq
        %v2268 = vshrl.u32 %v2267, 7
        %v2269 = vsub.s32 %v2266, %v2268
        %v2270 = vrot.slane %v2262, %v2269
        %2272 = vset.pattern.permute.xlu0 0
        %2273 = vperm.xlu0 %2272, %v1440
        %v2274 = vpop.permute.xlu0 %2273
        %v2277 = vunpack.c.l.s4 839922192
        %v2278 = vunpack.c.0.s8 %v2277
        %v2279 = vlaneseq
        %v2280 = vshrl.u32 %v2279, 7
        %v2281 = vsub.s32 %v2278, %v2280
        %v2282 = vrot.slane %v2274, %v2281
        %2284 = vset.pattern.permute.xlu0 0
        %2285 = vperm.xlu0 %2284, %v1441
        %v2286 = vpop.permute.xlu0 %2285
        %v2289 = vunpack.c.l.s4 839922192
        %v2290 = vunpack.c.0.s8 %v2289
        %v2291 = vlaneseq
        %v2292 = vshrl.u32 %v2291, 7
        %v2293 = vsub.s32 %v2290, %v2292
        %v2294 = vrot.slane %v2286, %v2293
        %2296 = vset.pattern.permute.xlu0 0
        %2297 = vperm.xlu0 %2296, %v1442
        %v2298 = vpop.permute.xlu0 %2297
        %v2301 = vunpack.c.l.s4 839922192
        %v2302 = vunpack.c.0.s8 %v2301
        %v2303 = vlaneseq
        %v2304 = vshrl.u32 %v2303, 7
        %v2305 = vsub.s32 %v2302, %v2304
        %v2306 = vrot.slane %v2298, %v2305
        %2308 = vset.pattern.permute.xlu0 0
        %2309 = vperm.xlu0 %2308, %v1443
        %v2310 = vpop.permute.xlu0 %2309
        %v2313 = vunpack.c.l.s4 839922192
        %v2314 = vunpack.c.0.s8 %v2313
        %v2315 = vlaneseq
        %v2316 = vshrl.u32 %v2315, 7
        %v2317 = vsub.s32 %v2314, %v2316
        %v2318 = vrot.slane %v2310, %v2317
        %2320 = vset.pattern.permute.xlu0 0
        %2321 = vperm.xlu0 %2320, %v1444
        %v2322 = vpop.permute.xlu0 %2321
        %v2325 = vunpack.c.l.s4 839922192
        %v2326 = vunpack.c.0.s8 %v2325
        %v2327 = vlaneseq
        %v2328 = vshrl.u32 %v2327, 7
        %v2329 = vsub.s32 %v2326, %v2328
        %v2330 = vrot.slane %v2322, %v2329
        %2332 = vset.pattern.permute.xlu0 0
        %2333 = vperm.xlu0 %2332, %v1445
        %v2334 = vpop.permute.xlu0 %2333
        %v2337 = vunpack.c.l.s4 839922192
        %v2338 = vunpack.c.0.s8 %v2337
        %v2339 = vlaneseq
        %v2340 = vshrl.u32 %v2339, 7
        %v2341 = vsub.s32 %v2338, %v2340
        %v2342 = vrot.slane %v2334, %v2341
        %2344 = vset.pattern.permute.xlu0 0
        %2345 = vperm.xlu0 %2344, %v1446
        %v2346 = vpop.permute.xlu0 %2345
        %v2349 = vunpack.c.l.s4 839922192
        %v2350 = vunpack.c.0.s8 %v2349
        %v2351 = vlaneseq
        %v2352 = vshrl.u32 %v2351, 7
        %v2353 = vsub.s32 %v2350, %v2352
        %v2354 = vrot.slane %v2346, %v2353
        %2356 = vset.pattern.permute.xlu0 0
        %2357 = vperm.xlu0 %2356, %v1447
        %v2358 = vpop.permute.xlu0 %2357
        %v2361 = vunpack.c.l.s4 839922192
        %v2362 = vunpack.c.0.s8 %v2361
        %v2363 = vlaneseq
        %v2364 = vshrl.u32 %v2363, 7
        %v2365 = vsub.s32 %v2362, %v2364
        %v2366 = vrot.slane %v2358, %v2365
        %2368 = vset.pattern.permute.xlu0 0
        %2369 = vperm.xlu0 %2368, %v1448
        %v2370 = vpop.permute.xlu0 %2369
        %v2373 = vunpack.c.l.s4 839922192
        %v2374 = vunpack.c.0.s8 %v2373
        %v2375 = vlaneseq
        %v2376 = vshrl.u32 %v2375, 7
        %v2377 = vsub.s32 %v2374, %v2376
        %v2378 = vrot.slane %v2370, %v2377
        %v2411 = vunpack.c.l.b16 %v2006
        %v2412 = vunpack.c.l.b16 %v2018
        %v2413 = vunpack.c.l.b16 %v2030
        %v2414 = vunpack.c.l.b16 %v2042
        %v2415 = vunpack.c.l.b16 %v2054
        %v2416 = vunpack.c.l.b16 %v2066
        %v2417 = vunpack.c.l.b16 %v2078
        %v2418 = vunpack.c.l.b16 %v2090
        %v2419 = vunpack.c.l.b16 %v2102
        %v2420 = vunpack.c.l.b16 %v2114
        %v2421 = vunpack.c.l.b16 %v2126
        %v2422 = vunpack.c.l.b16 %v2138
        %v2423 = vunpack.c.l.b16 %v2150
        %v2424 = vunpack.c.l.b16 %v2162
        %v2425 = vunpack.c.l.b16 %v2174
        %v2426 = vunpack.c.l.b16 %v2186
        %v2427 = vunpack.c.l.b16 %v2198
        %v2428 = vunpack.c.l.b16 %v2210
        %v2429 = vunpack.c.l.b16 %v2222
        %v2430 = vunpack.c.l.b16 %v2234
        %v2431 = vunpack.c.l.b16 %v2246
        %v2432 = vunpack.c.l.b16 %v2258
        %v2433 = vunpack.c.l.b16 %v2270
        %v2434 = vunpack.c.l.b16 %v2282
        %v2435 = vunpack.c.l.b16 %v2294
        %v2436 = vunpack.c.l.b16 %v2306
        %v2437 = vunpack.c.l.b16 %v2318
        %v2438 = vunpack.c.l.b16 %v2330
        %v2439 = vunpack.c.l.b16 %v2342
        %v2440 = vunpack.c.l.b16 %v2354
        %v2441 = vunpack.c.l.b16 %v2366
        %v2442 = vunpack.c.l.b16 %v2378
        %v2443 = vpack.c.b16 %v2412, %v2411
        %v2444 = vpack.c.b16 %v2414, %v2413
        %v2445 = vpack.c.b16 %v2416, %v2415
        %v2446 = vpack.c.b16 %v2418, %v2417
        %v2447 = vpack.c.b16 %v2420, %v2419
        %v2448 = vpack.c.b16 %v2422, %v2421
        %v2449 = vpack.c.b16 %v2424, %v2423
        %v2450 = vpack.c.b16 %v2426, %v2425
        %v2451 = vpack.c.b16 %v2428, %v2427
        %v2452 = vpack.c.b16 %v2430, %v2429
        %v2453 = vpack.c.b16 %v2432, %v2431
        %v2454 = vpack.c.b16 %v2434, %v2433
        %v2455 = vpack.c.b16 %v2436, %v2435
        %v2456 = vpack.c.b16 %v2438, %v2437
        %v2457 = vpack.c.b16 %v2440, %v2439
        %v2458 = vpack.c.b16 %v2442, %v2441
        %v2475 = vadd.bf16 %v1931, %v2443
        %v2476 = vadd.bf16 %v1932, %v2443
        %v2477 = vadd.bf16 %v1933, %v2443
        %v2478 = vadd.bf16 %v1934, %v2443
        %v2479 = vadd.bf16 %v1935, %v2444
        %v2480 = vadd.bf16 %v1936, %v2444
        %v2481 = vadd.bf16 %v1937, %v2444
        %v2482 = vadd.bf16 %v1938, %v2444
        %v2483 = vadd.bf16 %v1939, %v2445
        %v2484 = vadd.bf16 %v1940, %v2445
        %v2485 = vadd.bf16 %v1941, %v2445
        %v2486 = vadd.bf16 %v1942, %v2445
        %v2487 = vadd.bf16 %v1943, %v2446
        %v2488 = vadd.bf16 %v1944, %v2446
        %v2489 = vadd.bf16 %v1945, %v2446
        %v2490 = vadd.bf16 %v1946, %v2446
        %v2491 = vadd.bf16 %v1947, %v2447
        %v2492 = vadd.bf16 %v1948, %v2447
        %v2493 = vadd.bf16 %v1949, %v2447
        %v2494 = vadd.bf16 %v1950, %v2447
        %v2495 = vadd.bf16 %v1951, %v2448
        %v2496 = vadd.bf16 %v1952, %v2448
        %v2497 = vadd.bf16 %v1953, %v2448
        %v2498 = vadd.bf16 %v1954, %v2448
        %v2499 = vadd.bf16 %v1955, %v2449
        %v2500 = vadd.bf16 %v1956, %v2449
        %v2501 = vadd.bf16 %v1957, %v2449
        %v2502 = vadd.bf16 %v1958, %v2449
        %v2503 = vadd.bf16 %v1959, %v2450
        %v2504 = vadd.bf16 %v1960, %v2450
        %v2505 = vadd.bf16 %v1961, %v2450
        %v2506 = vadd.bf16 %v1962, %v2450
        %v2507 = vadd.bf16 %v1963, %v2451
        %v2508 = vadd.bf16 %v1964, %v2451
        %v2509 = vadd.bf16 %v1965, %v2451
        %v2510 = vadd.bf16 %v1966, %v2451
        %v2511 = vadd.bf16 %v1967, %v2452
        %v2512 = vadd.bf16 %v1968, %v2452
        %v2513 = vadd.bf16 %v1969, %v2452
        %v2514 = vadd.bf16 %v1970, %v2452
        %v2515 = vadd.bf16 %v1971, %v2453
        %v2516 = vadd.bf16 %v1972, %v2453
        %v2517 = vadd.bf16 %v1973, %v2453
        %v2518 = vadd.bf16 %v1974, %v2453
        %v2519 = vadd.bf16 %v1975, %v2454
        %v2520 = vadd.bf16 %v1976, %v2454
        %v2521 = vadd.bf16 %v1977, %v2454
        %v2522 = vadd.bf16 %v1978, %v2454
        %v2523 = vadd.bf16 %v1979, %v2455
        %v2524 = vadd.bf16 %v1980, %v2455
        %v2525 = vadd.bf16 %v1981, %v2455
        %v2526 = vadd.bf16 %v1982, %v2455
        %v2527 = vadd.bf16 %v1983, %v2456
        %v2528 = vadd.bf16 %v1984, %v2456
        %v2529 = vadd.bf16 %v1985, %v2456
        %v2530 = vadd.bf16 %v1986, %v2456
        %v2531 = vadd.bf16 %v1987, %v2457
        %v2532 = vadd.bf16 %v1988, %v2457
        %v2533 = vadd.bf16 %v1989, %v2457
        %v2534 = vadd.bf16 %v1990, %v2457
        %v2535 = vadd.bf16 %v1991, %v2458
        %v2536 = vadd.bf16 %v1992, %v2458
        %v2537 = vadd.bf16 %v1993, %v2458
        %v2538 = vadd.bf16 %v1994, %v2458
        %v2539 = vtanh.bf16.pop %v2475
        %v2540 = vtanh.bf16.pop %v2476
        %v2541 = vtanh.bf16.pop %v2477
        %v2542 = vtanh.bf16.pop %v2478
        %v2543 = vtanh.bf16.pop %v2479
        %v2544 = vtanh.bf16.pop %v2480
        %v2545 = vtanh.bf16.pop %v2481
        %v2546 = vtanh.bf16.pop %v2482
        %v2547 = vtanh.bf16.pop %v2483
        %v2548 = vtanh.bf16.pop %v2484
        %v2549 = vtanh.bf16.pop %v2485
        %v2550 = vtanh.bf16.pop %v2486
        %v2551 = vtanh.bf16.pop %v2487
        %v2552 = vtanh.bf16.pop %v2488
        %v2553 = vtanh.bf16.pop %v2489
        %v2554 = vtanh.bf16.pop %v2490
        %v2555 = vtanh.bf16.pop %v2491
        %v2556 = vtanh.bf16.pop %v2492
        %v2557 = vtanh.bf16.pop %v2493
        %v2558 = vtanh.bf16.pop %v2494
        %v2559 = vtanh.bf16.pop %v2495
        %v2560 = vtanh.bf16.pop %v2496
        %v2561 = vtanh.bf16.pop %v2497
        %v2562 = vtanh.bf16.pop %v2498
        %v2563 = vtanh.bf16.pop %v2499
        %v2564 = vtanh.bf16.pop %v2500
        %v2565 = vtanh.bf16.pop %v2501
        %v2566 = vtanh.bf16.pop %v2502
        %v2567 = vtanh.bf16.pop %v2503
        %v2568 = vtanh.bf16.pop %v2504
        %v2569 = vtanh.bf16.pop %v2505
        %v2570 = vtanh.bf16.pop %v2506
        %v2571 = vtanh.bf16.pop %v2507
        %v2572 = vtanh.bf16.pop %v2508
        %v2573 = vtanh.bf16.pop %v2509
        %v2574 = vtanh.bf16.pop %v2510
        %v2575 = vtanh.bf16.pop %v2511
        %v2576 = vtanh.bf16.pop %v2512
        %v2577 = vtanh.bf16.pop %v2513
        %v2578 = vtanh.bf16.pop %v2514
        %v2579 = vtanh.bf16.pop %v2515
        %v2580 = vtanh.bf16.pop %v2516
        %v2581 = vtanh.bf16.pop %v2517
        %v2582 = vtanh.bf16.pop %v2518
        %v2583 = vtanh.bf16.pop %v2519
        %v2584 = vtanh.bf16.pop %v2520
        %v2585 = vtanh.bf16.pop %v2521
        %v2586 = vtanh.bf16.pop %v2522
        %v2587 = vtanh.bf16.pop %v2523
        %v2588 = vtanh.bf16.pop %v2524
        %v2589 = vtanh.bf16.pop %v2525
        %v2590 = vtanh.bf16.pop %v2526
        %v2591 = vtanh.bf16.pop %v2527
        %v2592 = vtanh.bf16.pop %v2528
        %v2593 = vtanh.bf16.pop %v2529
        %v2594 = vtanh.bf16.pop %v2530
        %v2595 = vtanh.bf16.pop %v2531
        %v2596 = vtanh.bf16.pop %v2532
        %v2597 = vtanh.bf16.pop %v2533
        %v2598 = vtanh.bf16.pop %v2534
        %v2599 = vtanh.bf16.pop %v2535
        %v2600 = vtanh.bf16.pop %v2536
        %v2601 = vtanh.bf16.pop %v2537
        %v2602 = vtanh.bf16.pop %v2538
        %v2603 = vld [vmem:[%s7] sm:$0xff]
        %v2604 = vld [vmem:[%s7 + $0x8] sm:$0xff]
        %v2605 = vld [vmem:[%s7 + $0x10] sm:$0xff]
        %v2606 = vld [vmem:[%s7 + $0x18] sm:$0xff]
        %v2607 = vld [vmem:[%s7 + $0x20] sm:$0xff]
        %v2608 = vld [vmem:[%s7 + $0x28] sm:$0xff]
        %v2609 = vld [vmem:[%s7 + $0x30] sm:$0xff]
        %v2610 = vld [vmem:[%s7 + $0x38] sm:$0xff]
        %v2611 = vld [vmem:[%s7 + $0x40] sm:$0xff]
        %v2612 = vld [vmem:[%s7 + $0x48] sm:$0xff]
        %v2613 = vld [vmem:[%s7 + $0x50] sm:$0xff]
        %v2614 = vld [vmem:[%s7 + $0x58] sm:$0xff]
        %v2615 = vld [vmem:[%s7 + $0x60] sm:$0xff]
        %v2616 = vld [vmem:[%s7 + $0x68] sm:$0xff]
        %v2617 = vld [vmem:[%s7 + $0x70] sm:$0xff]
        %v2618 = vld [vmem:[%s7 + $0x78] sm:$0xff]
        %v2619 = vld [vmem:[%s7 + $0x80] sm:$0xff]
        %v2620 = vld [vmem:[%s7 + $0x88] sm:$0xff]
        %v2621 = vld [vmem:[%s7 + $0x90] sm:$0xff]
        %v2622 = vld [vmem:[%s7 + $0x98] sm:$0xff]
        %v2623 = vld [vmem:[%s7 + $0xa0] sm:$0xff]
        %v2624 = vld [vmem:[%s7 + $0xa8] sm:$0xff]
        %v2625 = vld [vmem:[%s7 + $0xb0] sm:$0xff]
        %v2626 = vld [vmem:[%s7 + $0xb8] sm:$0xff]
        %v2627 = vld [vmem:[%s7 + $0xc0] sm:$0xff]
        %v2628 = vld [vmem:[%s7 + $0xc8] sm:$0xff]
        %v2629 = vld [vmem:[%s7 + $0xd0] sm:$0xff]
        %v2630 = vld [vmem:[%s7 + $0xd8] sm:$0xff]
        %v2631 = vld [vmem:[%s7 + $0xe0] sm:$0xff]
        %v2632 = vld [vmem:[%s7 + $0xe8] sm:$0xff]
        %v2633 = vld [vmem:[%s7 + $0xf0] sm:$0xff]
        %v2634 = vld [vmem:[%s7 + $0xf8] sm:$0xff]
        %v2635 = vld [vmem:[%s8] sm:$0xf]
        %v2636 = vld [vmem:[%s8 + $0x4] sm:$0xf]
        %v2637 = vld [vmem:[%s8 + $0x8] sm:$0xf]
        %v2638 = vld [vmem:[%s8 + $0xc] sm:$0xf]
        %v2639 = vld [vmem:[%s8 + $0x10] sm:$0xf]
        %v2640 = vld [vmem:[%s8 + $0x14] sm:$0xf]
        %v2641 = vld [vmem:[%s8 + $0x18] sm:$0xf]
        %v2642 = vld [vmem:[%s8 + $0x1c] sm:$0xf]
        %v2643 = vld [vmem:[%s8 + $0x20] sm:$0xf]
        %v2644 = vld [vmem:[%s8 + $0x24] sm:$0xf]
        %v2645 = vld [vmem:[%s8 + $0x28] sm:$0xf]
        %v2646 = vld [vmem:[%s8 + $0x2c] sm:$0xf]
        %v2647 = vld [vmem:[%s8 + $0x30] sm:$0xf]
        %v2648 = vld [vmem:[%s8 + $0x34] sm:$0xf]
        %v2649 = vld [vmem:[%s8 + $0x38] sm:$0xf]
        %v2650 = vld [vmem:[%s8 + $0x3c] sm:$0xf]
        %v2651 = vld [vmem:[%s8 + $0x40] sm:$0xf]
        %v2652 = vld [vmem:[%s8 + $0x44] sm:$0xf]
        %v2653 = vld [vmem:[%s8 + $0x48] sm:$0xf]
        %v2654 = vld [vmem:[%s8 + $0x4c] sm:$0xf]
        %v2655 = vld [vmem:[%s8 + $0x50] sm:$0xf]
        %v2656 = vld [vmem:[%s8 + $0x54] sm:$0xf]
        %v2657 = vld [vmem:[%s8 + $0x58] sm:$0xf]
        %v2658 = vld [vmem:[%s8 + $0x5c] sm:$0xf]
        %v2659 = vld [vmem:[%s8 + $0x60] sm:$0xf]
        %v2660 = vld [vmem:[%s8 + $0x64] sm:$0xf]
        %v2661 = vld [vmem:[%s8 + $0x68] sm:$0xf]
        %v2662 = vld [vmem:[%s8 + $0x6c] sm:$0xf]
        %v2663 = vld [vmem:[%s8 + $0x70] sm:$0xf]
        %v2664 = vld [vmem:[%s8 + $0x74] sm:$0xf]
        %v2665 = vld [vmem:[%s8 + $0x78] sm:$0xf]
        %v2666 = vld [vmem:[%s8 + $0x7c] sm:$0xf]
        %v2699 = vunpack.c.l.b16 %v2603
        %v2700 = vunpack.c.h.b16 %v2603
        %v2701 = vunpack.c.l.b16 %v2604
        %v2702 = vunpack.c.h.b16 %v2604
        %v2703 = vunpack.c.l.b16 %v2605
        %v2704 = vunpack.c.h.b16 %v2605
        %v2705 = vunpack.c.l.b16 %v2606
        %v2706 = vunpack.c.h.b16 %v2606
        %v2707 = vunpack.c.l.b16 %v2607
        %v2708 = vunpack.c.h.b16 %v2607
        %v2709 = vunpack.c.l.b16 %v2608
        %v2710 = vunpack.c.h.b16 %v2608
        %v2711 = vunpack.c.l.b16 %v2609
        %v2712 = vunpack.c.h.b16 %v2609
        %v2713 = vunpack.c.l.b16 %v2610
        %v2714 = vunpack.c.h.b16 %v2610
        %v2715 = vunpack.c.l.b16 %v2611
        %v2716 = vunpack.c.h.b16 %v2611
        %v2717 = vunpack.c.l.b16 %v2612
        %v2718 = vunpack.c.h.b16 %v2612
        %v2719 = vunpack.c.l.b16 %v2613
        %v2720 = vunpack.c.h.b16 %v2613
        %v2721 = vunpack.c.l.b16 %v2614
        %v2722 = vunpack.c.h.b16 %v2614
        %v2723 = vunpack.c.l.b16 %v2615
        %v2724 = vunpack.c.h.b16 %v2615
        %v2725 = vunpack.c.l.b16 %v2616
        %v2726 = vunpack.c.h.b16 %v2616
        %v2727 = vunpack.c.l.b16 %v2617
        %v2728 = vunpack.c.h.b16 %v2617
        %v2729 = vunpack.c.l.b16 %v2618
        %v2730 = vunpack.c.h.b16 %v2618
        %v2731 = vunpack.c.l.b16 %v2619
        %v2732 = vunpack.c.h.b16 %v2619
        %v2733 = vunpack.c.l.b16 %v2620
        %v2734 = vunpack.c.h.b16 %v2620
        %v2735 = vunpack.c.l.b16 %v2621
        %v2736 = vunpack.c.h.b16 %v2621
        %v2737 = vunpack.c.l.b16 %v2622
        %v2738 = vunpack.c.h.b16 %v2622
        %v2739 = vunpack.c.l.b16 %v2623
        %v2740 = vunpack.c.h.b16 %v2623
        %v2741 = vunpack.c.l.b16 %v2624
        %v2742 = vunpack.c.h.b16 %v2624
        %v2743 = vunpack.c.l.b16 %v2625
        %v2744 = vunpack.c.h.b16 %v2625
        %v2745 = vunpack.c.l.b16 %v2626
        %v2746 = vunpack.c.h.b16 %v2626
        %v2747 = vunpack.c.l.b16 %v2627
        %v2748 = vunpack.c.h.b16 %v2627
        %v2749 = vunpack.c.l.b16 %v2628
        %v2750 = vunpack.c.h.b16 %v2628
        %v2751 = vunpack.c.l.b16 %v2629
        %v2752 = vunpack.c.h.b16 %v2629
        %v2753 = vunpack.c.l.b16 %v2630
        %v2754 = vunpack.c.h.b16 %v2630
        %v2755 = vunpack.c.l.b16 %v2631
        %v2756 = vunpack.c.h.b16 %v2631
        %v2757 = vunpack.c.l.b16 %v2632
        %v2758 = vunpack.c.h.b16 %v2632
        %v2759 = vunpack.c.l.b16 %v2633
        %v2760 = vunpack.c.h.b16 %v2633
        %v2761 = vunpack.c.l.b16 %v2634
        %v2762 = vunpack.c.h.b16 %v2634
        %v2763 = vpack.c.b16 %v2701, %v2699
        %v2764 = vpack.c.b16 %v2702, %v2700
        %v2765 = vpack.c.b16 %v2705, %v2703
        %v2766 = vpack.c.b16 %v2706, %v2704
        %v2767 = vpack.c.b16 %v2709, %v2707
        %v2768 = vpack.c.b16 %v2710, %v2708
        %v2769 = vpack.c.b16 %v2713, %v2711
        %v2770 = vpack.c.b16 %v2714, %v2712
        %v2771 = vpack.c.b16 %v2717, %v2715
        %v2772 = vpack.c.b16 %v2718, %v2716
        %v2773 = vpack.c.b16 %v2721, %v2719
        %v2774 = vpack.c.b16 %v2722, %v2720
        %v2775 = vpack.c.b16 %v2725, %v2723
        %v2776 = vpack.c.b16 %v2726, %v2724
        %v2777 = vpack.c.b16 %v2729, %v2727
        %v2778 = vpack.c.b16 %v2730, %v2728
        %v2779 = vpack.c.b16 %v2733, %v2731
        %v2780 = vpack.c.b16 %v2734, %v2732
        %v2781 = vpack.c.b16 %v2737, %v2735
        %v2782 = vpack.c.b16 %v2738, %v2736
        %v2783 = vpack.c.b16 %v2741, %v2739
        %v2784 = vpack.c.b16 %v2742, %v2740
        %v2785 = vpack.c.b16 %v2745, %v2743
        %v2786 = vpack.c.b16 %v2746, %v2744
        %v2787 = vpack.c.b16 %v2749, %v2747
        %v2788 = vpack.c.b16 %v2750, %v2748
        %v2789 = vpack.c.b16 %v2753, %v2751
        %v2790 = vpack.c.b16 %v2754, %v2752
        %v2791 = vpack.c.b16 %v2757, %v2755
        %v2792 = vpack.c.b16 %v2758, %v2756
        %v2793 = vpack.c.b16 %v2761, %v2759
        %v2794 = vpack.c.b16 %v2762, %v2760
        %2827 = vmatprep.subr.bf16.mxu0 %v2568
        %2828 = vmatpush1.bf16.msra.mxu0 %v2567
        %2829 = vmatprep.subr.bf16.mxu0 %v2564
        %2830 = vmatpush1.bf16.msra.mxu0 %v2563
        %2831 = vmatprep.subr.bf16.mxu0 %v2560
        %2832 = vmatpush1.bf16.msra.mxu0 %v2559
        %2833 = vmatprep.subr.bf16.mxu0 %v2556
        %2834 = vmatpush1.bf16.msra.mxu0 %v2555
        %2835 = vmatprep.subr.bf16.mxu0 %v2552
        %2836 = vmatpush1.bf16.msra.mxu0 %v2551
        %2837 = vmatprep.subr.bf16.mxu0 %v2548
        %2838 = vmatpush1.bf16.msra.mxu0 %v2547
        %2839 = vmatprep.subr.bf16.mxu0 %v2544
        %2840 = vmatpush1.bf16.msra.mxu0 %v2543
        %2841 = vmatprep.subr.bf16.mxu0 %v2540
        %2842 = vmatpush1.bf16.msra.mxu0 %v2539
        %2843 = vmatprep.subr.bf16.mxu0 %v2600
        %2844 = vmatpush2.bf16.msra.mxu0 %v2599
        %2845 = vmatprep.subr.bf16.mxu0 %v2596
        %2846 = vmatpush2.bf16.msra.mxu0 %v2595
        %2847 = vmatprep.subr.bf16.mxu0 %v2592
        %2848 = vmatpush2.bf16.msra.mxu0 %v2591
        %2849 = vmatprep.subr.bf16.mxu0 %v2588
        %2850 = vmatpush2.bf16.msra.mxu0 %v2587
        %2851 = vmatprep.subr.bf16.mxu0 %v2584
        %2852 = vmatpush2.bf16.msra.mxu0 %v2583
        %2853 = vmatprep.subr.bf16.mxu0 %v2580
        %2854 = vmatpush2.bf16.msra.mxu0 %v2579
        %2855 = vmatprep.subr.bf16.mxu0 %v2576
        %2856 = vmatpush2.bf16.msra.mxu0 %v2575
        %2857 = vmatprep.subr.bf16.mxu0 %v2572
        %2858 = vmatpush2.bf16.msra.mxu0 %v2571
        %2859 = vmatprep.mubr.bf16.mxu0 %v2764
        %2860 = vmatmul.mubr.bf16.gmra.mxu0 %v2763
        %v2861 = vpop.f32.mrf.mxu0
        %v2862 = vadd.f32 0.0, %v2861
        %v2863 = vpop.f32.mrf.mxu0
        %v2864 = vadd.f32 0.0, %v2863
        %v2865 = vpop.f32.mrf.mxu0
        %v2866 = vadd.f32 0.0, %v2865
        %v2867 = vpop.f32.mrf.mxu0
        %v2868 = vadd.f32 0.0, %v2867
        %2869 = vmatprep.mubr.bf16.mxu0 %v2766
        %2870 = vmatmul.mubr.bf16.gmra.mxu0 %v2765
        %v2871 = vpop.f32.mrf.mxu0
        %v2872 = vadd.f32 0.0, %v2871
        %v2873 = vpop.f32.mrf.mxu0
        %v2874 = vadd.f32 0.0, %v2873
        %v2875 = vpop.f32.mrf.mxu0
        %v2876 = vadd.f32 0.0, %v2875
        %v2877 = vpop.f32.mrf.mxu0
        %v2878 = vadd.f32 0.0, %v2877
        %2879 = vmatprep.mubr.bf16.mxu0 %v2768
        %2880 = vmatmul.mubr.bf16.gmra.mxu0 %v2767
        %v2881 = vpop.f32.mrf.mxu0
        %v2882 = vadd.f32 0.0, %v2881
        %v2883 = vpop.f32.mrf.mxu0
        %v2884 = vadd.f32 0.0, %v2883
        %v2885 = vpop.f32.mrf.mxu0
        %v2886 = vadd.f32 0.0, %v2885
        %v2887 = vpop.f32.mrf.mxu0
        %v2888 = vadd.f32 0.0, %v2887
        %2889 = vmatprep.mubr.bf16.mxu0 %v2770
        %2890 = vmatmul.mubr.bf16.gmra.mxu0 %v2769
        %v2891 = vpop.f32.mrf.mxu0
        %v2892 = vadd.f32 0.0, %v2891
        %v2893 = vpop.f32.mrf.mxu0
        %v2894 = vadd.f32 0.0, %v2893
        %v2895 = vpop.f32.mrf.mxu0
        %v2896 = vadd.f32 0.0, %v2895
        %v2897 = vpop.f32.mrf.mxu0
        %v2898 = vadd.f32 0.0, %v2897
        %2899 = vmatprep.mubr.bf16.mxu0 %v2772
        %2900 = vmatmul.mubr.bf16.gmra.mxu0 %v2771
        %v2901 = vpop.f32.mrf.mxu0
        %v2902 = vadd.f32 0.0, %v2901
        %v2903 = vpop.f32.mrf.mxu0
        %v2904 = vadd.f32 0.0, %v2903
        %v2905 = vpop.f32.mrf.mxu0
        %v2906 = vadd.f32 0.0, %v2905
        %v2907 = vpop.f32.mrf.mxu0
        %v2908 = vadd.f32 0.0, %v2907
        %2909 = vmatprep.mubr.bf16.mxu0 %v2774
        %2910 = vmatmul.mubr.bf16.gmra.mxu0 %v2773
        %v2911 = vpop.f32.mrf.mxu0
        %v2912 = vadd.f32 0.0, %v2911
        %v2913 = vpop.f32.mrf.mxu0
        %v2914 = vadd.f32 0.0, %v2913
        %v2915 = vpop.f32.mrf.mxu0
        %v2916 = vadd.f32 0.0, %v2915
        %v2917 = vpop.f32.mrf.mxu0
        %v2918 = vadd.f32 0.0, %v2917
        %2919 = vmatprep.mubr.bf16.mxu0 %v2776
        %2920 = vmatmul.mubr.bf16.gmra.mxu0 %v2775
        %v2921 = vpop.f32.mrf.mxu0
        %v2922 = vadd.f32 0.0, %v2921
        %v2923 = vpop.f32.mrf.mxu0
        %v2924 = vadd.f32 0.0, %v2923
        %v2925 = vpop.f32.mrf.mxu0
        %v2926 = vadd.f32 0.0, %v2925
        %v2927 = vpop.f32.mrf.mxu0
        %v2928 = vadd.f32 0.0, %v2927
        %2929 = vmatprep.mubr.bf16.mxu0 %v2778
        %2930 = vmatmul.mubr.bf16.gmra.mxu0 %v2777
        %v2931 = vpop.f32.mrf.mxu0
        %v2932 = vadd.f32 0.0, %v2931
        %v2933 = vpop.f32.mrf.mxu0
        %v2934 = vadd.f32 0.0, %v2933
        %v2935 = vpop.f32.mrf.mxu0
        %v2936 = vadd.f32 0.0, %v2935
        %v2937 = vpop.f32.mrf.mxu0
        %v2938 = vadd.f32 0.0, %v2937
        %2939 = vmatprep.mubr.bf16.mxu0 %v2780
        %2940 = vmatmul.mubr.bf16.gmra.mxu0 %v2779
        %v2941 = vpop.f32.mrf.mxu0
        %v2942 = vadd.f32 0.0, %v2941
        %v2943 = vpop.f32.mrf.mxu0
        %v2944 = vadd.f32 0.0, %v2943
        %v2945 = vpop.f32.mrf.mxu0
        %v2946 = vadd.f32 0.0, %v2945
        %v2947 = vpop.f32.mrf.mxu0
        %v2948 = vadd.f32 0.0, %v2947
        %2949 = vmatprep.mubr.bf16.mxu0 %v2782
        %2950 = vmatmul.mubr.bf16.gmra.mxu0 %v2781
        %v2951 = vpop.f32.mrf.mxu0
        %v2952 = vadd.f32 0.0, %v2951
        %v2953 = vpop.f32.mrf.mxu0
        %v2954 = vadd.f32 0.0, %v2953
        %v2955 = vpop.f32.mrf.mxu0
        %v2956 = vadd.f32 0.0, %v2955
        %v2957 = vpop.f32.mrf.mxu0
        %v2958 = vadd.f32 0.0, %v2957
        %2959 = vmatprep.mubr.bf16.mxu0 %v2784
        %2960 = vmatmul.mubr.bf16.gmra.mxu0 %v2783
        %v2961 = vpop.f32.mrf.mxu0
        %v2962 = vadd.f32 0.0, %v2961
        %v2963 = vpop.f32.mrf.mxu0
        %v2964 = vadd.f32 0.0, %v2963
        %v2965 = vpop.f32.mrf.mxu0
        %v2966 = vadd.f32 0.0, %v2965
        %v2967 = vpop.f32.mrf.mxu0
        %v2968 = vadd.f32 0.0, %v2967
        %2969 = vmatprep.mubr.bf16.mxu0 %v2786
        %2970 = vmatmul.mubr.bf16.gmra.mxu0 %v2785
        %v2971 = vpop.f32.mrf.mxu0
        %v2972 = vadd.f32 0.0, %v2971
        %v2973 = vpop.f32.mrf.mxu0
        %v2974 = vadd.f32 0.0, %v2973
        %v2975 = vpop.f32.mrf.mxu0
        %v2976 = vadd.f32 0.0, %v2975
        %v2977 = vpop.f32.mrf.mxu0
        %v2978 = vadd.f32 0.0, %v2977
        %2979 = vmatprep.mubr.bf16.mxu0 %v2788
        %2980 = vmatmul.mubr.bf16.gmra.mxu0 %v2787
        %v2981 = vpop.f32.mrf.mxu0
        %v2982 = vadd.f32 0.0, %v2981
        %v2983 = vpop.f32.mrf.mxu0
        %v2984 = vadd.f32 0.0, %v2983
        %v2985 = vpop.f32.mrf.mxu0
        %v2986 = vadd.f32 0.0, %v2985
        %v2987 = vpop.f32.mrf.mxu0
        %v2988 = vadd.f32 0.0, %v2987
        %2989 = vmatprep.mubr.bf16.mxu0 %v2790
        %2990 = vmatmul.mubr.bf16.gmra.mxu0 %v2789
        %v2991 = vpop.f32.mrf.mxu0
        %v2992 = vadd.f32 0.0, %v2991
        %v2993 = vpop.f32.mrf.mxu0
        %v2994 = vadd.f32 0.0, %v2993
        %v2995 = vpop.f32.mrf.mxu0
        %v2996 = vadd.f32 0.0, %v2995
        %v2997 = vpop.f32.mrf.mxu0
        %v2998 = vadd.f32 0.0, %v2997
        %2999 = vmatprep.mubr.bf16.mxu0 %v2792
        %3000 = vmatmul.mubr.bf16.gmra.mxu0 %v2791
        %v3001 = vpop.f32.mrf.mxu0
        %v3002 = vadd.f32 0.0, %v3001
        %v3003 = vpop.f32.mrf.mxu0
        %v3004 = vadd.f32 0.0, %v3003
        %v3005 = vpop.f32.mrf.mxu0
        %v3006 = vadd.f32 0.0, %v3005
        %v3007 = vpop.f32.mrf.mxu0
        %v3008 = vadd.f32 0.0, %v3007
        %3009 = vmatprep.mubr.bf16.mxu0 %v2794
        %3010 = vmatmul.mubr.bf16.gmra.mxu0 %v2793
        %v3011 = vpop.f32.mrf.mxu0
        %v3012 = vadd.f32 0.0, %v3011
        %v3013 = vpop.f32.mrf.mxu0
        %v3014 = vadd.f32 0.0, %v3013
        %v3015 = vpop.f32.mrf.mxu0
        %v3016 = vadd.f32 0.0, %v3015
        %v3017 = vpop.f32.mrf.mxu0
        %v3018 = vadd.f32 0.0, %v3017
        %3019 = vdwg.mxu0
        %3020 = vmatprep.subr.bf16.mxu0 %v2570
        %3021 = vmatpush1.bf16.msra.mxu0 %v2569
        %3022 = vmatprep.subr.bf16.mxu0 %v2566
        %3023 = vmatpush1.bf16.msra.mxu0 %v2565
        %3024 = vmatprep.subr.bf16.mxu0 %v2562
        %3025 = vmatpush1.bf16.msra.mxu0 %v2561
        %3026 = vmatprep.subr.bf16.mxu0 %v2558
        %3027 = vmatpush1.bf16.msra.mxu0 %v2557
        %3028 = vmatprep.subr.bf16.mxu0 %v2554
        %3029 = vmatpush1.bf16.msra.mxu0 %v2553
        %3030 = vmatprep.subr.bf16.mxu0 %v2550
        %3031 = vmatpush1.bf16.msra.mxu0 %v2549
        %3032 = vmatprep.subr.bf16.mxu0 %v2546
        %3033 = vmatpush1.bf16.msra.mxu0 %v2545
        %3034 = vmatprep.subr.bf16.mxu0 %v2542
        %3035 = vmatpush1.bf16.msra.mxu0 %v2541
        %3036 = vmatprep.subr.bf16.mxu0 %v2602
        %3037 = vmatpush2.bf16.msra.mxu0 %v2601
        %3038 = vmatprep.subr.bf16.mxu0 %v2598
        %3039 = vmatpush2.bf16.msra.mxu0 %v2597
        %3040 = vmatprep.subr.bf16.mxu0 %v2594
        %3041 = vmatpush2.bf16.msra.mxu0 %v2593
        %3042 = vmatprep.subr.bf16.mxu0 %v2590
        %3043 = vmatpush2.bf16.msra.mxu0 %v2589
        %3044 = vmatprep.subr.bf16.mxu0 %v2586
        %3045 = vmatpush2.bf16.msra.mxu0 %v2585
        %3046 = vmatprep.subr.bf16.mxu0 %v2582
        %3047 = vmatpush2.bf16.msra.mxu0 %v2581
        %3048 = vmatprep.subr.bf16.mxu0 %v2578
        %3049 = vmatpush2.bf16.msra.mxu0 %v2577
        %3050 = vmatprep.subr.bf16.mxu0 %v2574
        %3051 = vmatpush2.bf16.msra.mxu0 %v2573
        %3052 = vmatprep.mubr.bf16.mxu0 %v2764
        %3053 = vmatmul.mubr.bf16.gmra.mxu0 %v2763
        %v3054 = vpop.f32.mrf.mxu0
        %v3055 = vadd.f32 0.0, %v3054
        %v3056 = vpop.f32.mrf.mxu0
        %v3057 = vadd.f32 0.0, %v3056
        %v3058 = vpop.f32.mrf.mxu0
        %v3059 = vadd.f32 0.0, %v3058
        %v3060 = vpop.f32.mrf.mxu0
        %v3061 = vadd.f32 0.0, %v3060
        %3062 = vmatprep.mubr.bf16.mxu0 %v2766
        %3063 = vmatmul.mubr.bf16.gmra.mxu0 %v2765
        %v3064 = vpop.f32.mrf.mxu0
        %v3065 = vadd.f32 0.0, %v3064
        %v3066 = vpop.f32.mrf.mxu0
        %v3067 = vadd.f32 0.0, %v3066
        %v3068 = vpop.f32.mrf.mxu0
        %v3069 = vadd.f32 0.0, %v3068
        %v3070 = vpop.f32.mrf.mxu0
        %v3071 = vadd.f32 0.0, %v3070
        %3072 = vmatprep.mubr.bf16.mxu0 %v2768
        %3073 = vmatmul.mubr.bf16.gmra.mxu0 %v2767
        %v3074 = vpop.f32.mrf.mxu0
        %v3075 = vadd.f32 0.0, %v3074
        %v3076 = vpop.f32.mrf.mxu0
        %v3077 = vadd.f32 0.0, %v3076
        %v3078 = vpop.f32.mrf.mxu0
        %v3079 = vadd.f32 0.0, %v3078
        %v3080 = vpop.f32.mrf.mxu0
        %v3081 = vadd.f32 0.0, %v3080
        %3082 = vmatprep.mubr.bf16.mxu0 %v2770
        %3083 = vmatmul.mubr.bf16.gmra.mxu0 %v2769
        %v3084 = vpop.f32.mrf.mxu0
        %v3085 = vadd.f32 0.0, %v3084
        %v3086 = vpop.f32.mrf.mxu0
        %v3087 = vadd.f32 0.0, %v3086
        %v3088 = vpop.f32.mrf.mxu0
        %v3089 = vadd.f32 0.0, %v3088
        %v3090 = vpop.f32.mrf.mxu0
        %v3091 = vadd.f32 0.0, %v3090
        %3092 = vmatprep.mubr.bf16.mxu0 %v2772
        %3093 = vmatmul.mubr.bf16.gmra.mxu0 %v2771
        %v3094 = vpop.f32.mrf.mxu0
        %v3095 = vadd.f32 0.0, %v3094
        %v3096 = vpop.f32.mrf.mxu0
        %v3097 = vadd.f32 0.0, %v3096
        %v3098 = vpop.f32.mrf.mxu0
        %v3099 = vadd.f32 0.0, %v3098
        %v3100 = vpop.f32.mrf.mxu0
        %v3101 = vadd.f32 0.0, %v3100
        %3102 = vmatprep.mubr.bf16.mxu0 %v2774
        %3103 = vmatmul.mubr.bf16.gmra.mxu0 %v2773
        %v3104 = vpop.f32.mrf.mxu0
        %v3105 = vadd.f32 0.0, %v3104
        %v3106 = vpop.f32.mrf.mxu0
        %v3107 = vadd.f32 0.0, %v3106
        %v3108 = vpop.f32.mrf.mxu0
        %v3109 = vadd.f32 0.0, %v3108
        %v3110 = vpop.f32.mrf.mxu0
        %v3111 = vadd.f32 0.0, %v3110
        %3112 = vmatprep.mubr.bf16.mxu0 %v2776
        %3113 = vmatmul.mubr.bf16.gmra.mxu0 %v2775
        %v3114 = vpop.f32.mrf.mxu0
        %v3115 = vadd.f32 0.0, %v3114
        %v3116 = vpop.f32.mrf.mxu0
        %v3117 = vadd.f32 0.0, %v3116
        %v3118 = vpop.f32.mrf.mxu0
        %v3119 = vadd.f32 0.0, %v3118
        %v3120 = vpop.f32.mrf.mxu0
        %v3121 = vadd.f32 0.0, %v3120
        %3122 = vmatprep.mubr.bf16.mxu0 %v2778
        %3123 = vmatmul.mubr.bf16.gmra.mxu0 %v2777
        %v3124 = vpop.f32.mrf.mxu0
        %v3125 = vadd.f32 0.0, %v3124
        %v3126 = vpop.f32.mrf.mxu0
        %v3127 = vadd.f32 0.0, %v3126
        %v3128 = vpop.f32.mrf.mxu0
        %v3129 = vadd.f32 0.0, %v3128
        %v3130 = vpop.f32.mrf.mxu0
        %v3131 = vadd.f32 0.0, %v3130
        %3132 = vmatprep.mubr.bf16.mxu0 %v2780
        %3133 = vmatmul.mubr.bf16.gmra.mxu0 %v2779
        %v3134 = vpop.f32.mrf.mxu0
        %v3135 = vadd.f32 0.0, %v3134
        %v3136 = vpop.f32.mrf.mxu0
        %v3137 = vadd.f32 0.0, %v3136
        %v3138 = vpop.f32.mrf.mxu0
        %v3139 = vadd.f32 0.0, %v3138
        %v3140 = vpop.f32.mrf.mxu0
        %v3141 = vadd.f32 0.0, %v3140
        %3142 = vmatprep.mubr.bf16.mxu0 %v2782
        %3143 = vmatmul.mubr.bf16.gmra.mxu0 %v2781
        %v3144 = vpop.f32.mrf.mxu0
        %v3145 = vadd.f32 0.0, %v3144
        %v3146 = vpop.f32.mrf.mxu0
        %v3147 = vadd.f32 0.0, %v3146
        %v3148 = vpop.f32.mrf.mxu0
        %v3149 = vadd.f32 0.0, %v3148
        %v3150 = vpop.f32.mrf.mxu0
        %v3151 = vadd.f32 0.0, %v3150
        %3152 = vmatprep.mubr.bf16.mxu0 %v2784
        %3153 = vmatmul.mubr.bf16.gmra.mxu0 %v2783
        %v3154 = vpop.f32.mrf.mxu0
        %v3155 = vadd.f32 0.0, %v3154
        %v3156 = vpop.f32.mrf.mxu0
        %v3157 = vadd.f32 0.0, %v3156
        %v3158 = vpop.f32.mrf.mxu0
        %v3159 = vadd.f32 0.0, %v3158
        %v3160 = vpop.f32.mrf.mxu0
        %v3161 = vadd.f32 0.0, %v3160
        %3162 = vmatprep.mubr.bf16.mxu0 %v2786
        %3163 = vmatmul.mubr.bf16.gmra.mxu0 %v2785
        %v3164 = vpop.f32.mrf.mxu0
        %v3165 = vadd.f32 0.0, %v3164
        %v3166 = vpop.f32.mrf.mxu0
        %v3167 = vadd.f32 0.0, %v3166
        %v3168 = vpop.f32.mrf.mxu0
        %v3169 = vadd.f32 0.0, %v3168
        %v3170 = vpop.f32.mrf.mxu0
        %v3171 = vadd.f32 0.0, %v3170
        %3172 = vmatprep.mubr.bf16.mxu0 %v2788
        %3173 = vmatmul.mubr.bf16.gmra.mxu0 %v2787
        %v3174 = vpop.f32.mrf.mxu0
        %v3175 = vadd.f32 0.0, %v3174
        %v3176 = vpop.f32.mrf.mxu0
        %v3177 = vadd.f32 0.0, %v3176
        %v3178 = vpop.f32.mrf.mxu0
        %v3179 = vadd.f32 0.0, %v3178
        %v3180 = vpop.f32.mrf.mxu0
        %v3181 = vadd.f32 0.0, %v3180
        %3182 = vmatprep.mubr.bf16.mxu0 %v2790
        %3183 = vmatmul.mubr.bf16.gmra.mxu0 %v2789
        %v3184 = vpop.f32.mrf.mxu0
        %v3185 = vadd.f32 0.0, %v3184
        %v3186 = vpop.f32.mrf.mxu0
        %v3187 = vadd.f32 0.0, %v3186
        %v3188 = vpop.f32.mrf.mxu0
        %v3189 = vadd.f32 0.0, %v3188
        %v3190 = vpop.f32.mrf.mxu0
        %v3191 = vadd.f32 0.0, %v3190
        %3192 = vmatprep.mubr.bf16.mxu0 %v2792
        %3193 = vmatmul.mubr.bf16.gmra.mxu0 %v2791
        %v3194 = vpop.f32.mrf.mxu0
        %v3195 = vadd.f32 0.0, %v3194
        %v3196 = vpop.f32.mrf.mxu0
        %v3197 = vadd.f32 0.0, %v3196
        %v3198 = vpop.f32.mrf.mxu0
        %v3199 = vadd.f32 0.0, %v3198
        %v3200 = vpop.f32.mrf.mxu0
        %v3201 = vadd.f32 0.0, %v3200
        %3202 = vmatprep.mubr.bf16.mxu0 %v2794
        %3203 = vmatmul.mubr.bf16.gmra.mxu0 %v2793
        %v3204 = vpop.f32.mrf.mxu0
        %v3205 = vadd.f32 0.0, %v3204
        %v3206 = vpop.f32.mrf.mxu0
        %v3207 = vadd.f32 0.0, %v3206
        %v3208 = vpop.f32.mrf.mxu0
        %v3209 = vadd.f32 0.0, %v3208
        %v3210 = vpop.f32.mrf.mxu0
        %v3211 = vadd.f32 0.0, %v3210
        %3212 = vdwg.mxu0
        %v3213 = vpack.c.bf16 %v2866, %v2862
        %v3214 = vpack.c.bf16 %v2868, %v2864
        %v3215 = vpack.c.bf16 %v3059, %v3055
        %v3216 = vpack.c.bf16 %v3061, %v3057
        %v3217 = vpack.c.bf16 %v2876, %v2872
        %v3218 = vpack.c.bf16 %v2878, %v2874
        %v3219 = vpack.c.bf16 %v3069, %v3065
        %v3220 = vpack.c.bf16 %v3071, %v3067
        %v3221 = vpack.c.bf16 %v2886, %v2882
        %v3222 = vpack.c.bf16 %v2888, %v2884
        %v3223 = vpack.c.bf16 %v3079, %v3075
        %v3224 = vpack.c.bf16 %v3081, %v3077
        %v3225 = vpack.c.bf16 %v2896, %v2892
        %v3226 = vpack.c.bf16 %v2898, %v2894
        %v3227 = vpack.c.bf16 %v3089, %v3085
        %v3228 = vpack.c.bf16 %v3091, %v3087
        %v3229 = vpack.c.bf16 %v2906, %v2902
        %v3230 = vpack.c.bf16 %v2908, %v2904
        %v3231 = vpack.c.bf16 %v3099, %v3095
        %v3232 = vpack.c.bf16 %v3101, %v3097
        %v3233 = vpack.c.bf16 %v2916, %v2912
        %v3234 = vpack.c.bf16 %v2918, %v2914
        %v3235 = vpack.c.bf16 %v3109, %v3105
        %v3236 = vpack.c.bf16 %v3111, %v3107
        %v3237 = vpack.c.bf16 %v2926, %v2922
        %v3238 = vpack.c.bf16 %v2928, %v2924
        %v3239 = vpack.c.bf16 %v3119, %v3115
        %v3240 = vpack.c.bf16 %v3121, %v3117
        %v3241 = vpack.c.bf16 %v2936, %v2932
        %v3242 = vpack.c.bf16 %v2938, %v2934
        %v3243 = vpack.c.bf16 %v3129, %v3125
        %v3244 = vpack.c.bf16 %v3131, %v3127
        %v3245 = vpack.c.bf16 %v2946, %v2942
        %v3246 = vpack.c.bf16 %v2948, %v2944
        %v3247 = vpack.c.bf16 %v3139, %v3135
        %v3248 = vpack.c.bf16 %v3141, %v3137
        %v3249 = vpack.c.bf16 %v2956, %v2952
        %v3250 = vpack.c.bf16 %v2958, %v2954
        %v3251 = vpack.c.bf16 %v3149, %v3145
        %v3252 = vpack.c.bf16 %v3151, %v3147
        %v3253 = vpack.c.bf16 %v2966, %v2962
        %v3254 = vpack.c.bf16 %v2968, %v2964
        %v3255 = vpack.c.bf16 %v3159, %v3155
        %v3256 = vpack.c.bf16 %v3161, %v3157
        %v3257 = vpack.c.bf16 %v2976, %v2972
        %v3258 = vpack.c.bf16 %v2978, %v2974
        %v3259 = vpack.c.bf16 %v3169, %v3165
        %v3260 = vpack.c.bf16 %v3171, %v3167
        %v3261 = vpack.c.bf16 %v2986, %v2982
        %v3262 = vpack.c.bf16 %v2988, %v2984
        %v3263 = vpack.c.bf16 %v3179, %v3175
        %v3264 = vpack.c.bf16 %v3181, %v3177
        %v3265 = vpack.c.bf16 %v2996, %v2992
        %v3266 = vpack.c.bf16 %v2998, %v2994
        %v3267 = vpack.c.bf16 %v3189, %v3185
        %v3268 = vpack.c.bf16 %v3191, %v3187
        %v3269 = vpack.c.bf16 %v3006, %v3002
        %v3270 = vpack.c.bf16 %v3008, %v3004
        %v3271 = vpack.c.bf16 %v3199, %v3195
        %v3272 = vpack.c.bf16 %v3201, %v3197
        %v3273 = vpack.c.bf16 %v3016, %v3012
        %v3274 = vpack.c.bf16 %v3018, %v3014
        %v3275 = vpack.c.bf16 %v3209, %v3205
        %v3276 = vpack.c.bf16 %v3211, %v3207
        %3278 = vset.pattern.permute.xlu0 0
        %3279 = vperm.xlu0 %3278, %v2635
        %v3280 = vpop.permute.xlu0 %3279
        %v3283 = vunpack.c.l.s4 839922192
        %v3284 = vunpack.c.0.s8 %v3283
        %v3285 = vlaneseq
        %v3286 = vshrl.u32 %v3285, 7
        %v3287 = vsub.s32 %v3284, %v3286
        %v3288 = vrot.slane %v3280, %v3287
        %3290 = vset.pattern.permute.xlu0 0
        %3291 = vperm.xlu0 %3290, %v2636
        %v3292 = vpop.permute.xlu0 %3291
        %v3295 = vunpack.c.l.s4 839922192
        %v3296 = vunpack.c.0.s8 %v3295
        %v3297 = vlaneseq
        %v3298 = vshrl.u32 %v3297, 7
        %v3299 = vsub.s32 %v3296, %v3298
        %v3300 = vrot.slane %v3292, %v3299
        %3302 = vset.pattern.permute.xlu0 0
        %3303 = vperm.xlu0 %3302, %v2637
        %v3304 = vpop.permute.xlu0 %3303
        %v3307 = vunpack.c.l.s4 839922192
        %v3308 = vunpack.c.0.s8 %v3307
        %v3309 = vlaneseq
        %v3310 = vshrl.u32 %v3309, 7
        %v3311 = vsub.s32 %v3308, %v3310
        %v3312 = vrot.slane %v3304, %v3311
        %3314 = vset.pattern.permute.xlu0 0
        %3315 = vperm.xlu0 %3314, %v2638
        %v3316 = vpop.permute.xlu0 %3315
        %v3319 = vunpack.c.l.s4 839922192
        %v3320 = vunpack.c.0.s8 %v3319
        %v3321 = vlaneseq
        %v3322 = vshrl.u32 %v3321, 7
        %v3323 = vsub.s32 %v3320, %v3322
        %v3324 = vrot.slane %v3316, %v3323
        %3326 = vset.pattern.permute.xlu0 0
        %3327 = vperm.xlu0 %3326, %v2639
        %v3328 = vpop.permute.xlu0 %3327
        %v3331 = vunpack.c.l.s4 839922192
        %v3332 = vunpack.c.0.s8 %v3331
        %v3333 = vlaneseq
        %v3334 = vshrl.u32 %v3333, 7
        %v3335 = vsub.s32 %v3332, %v3334
        %v3336 = vrot.slane %v3328, %v3335
        %3338 = vset.pattern.permute.xlu0 0
        %3339 = vperm.xlu0 %3338, %v2640
        %v3340 = vpop.permute.xlu0 %3339
        %v3343 = vunpack.c.l.s4 839922192
        %v3344 = vunpack.c.0.s8 %v3343
        %v3345 = vlaneseq
        %v3346 = vshrl.u32 %v3345, 7
        %v3347 = vsub.s32 %v3344, %v3346
        %v3348 = vrot.slane %v3340, %v3347
        %3350 = vset.pattern.permute.xlu0 0
        %3351 = vperm.xlu0 %3350, %v2641
        %v3352 = vpop.permute.xlu0 %3351
        %v3355 = vunpack.c.l.s4 839922192
        %v3356 = vunpack.c.0.s8 %v3355
        %v3357 = vlaneseq
        %v3358 = vshrl.u32 %v3357, 7
        %v3359 = vsub.s32 %v3356, %v3358
        %v3360 = vrot.slane %v3352, %v3359
        %3362 = vset.pattern.permute.xlu0 0
        %3363 = vperm.xlu0 %3362, %v2642
        %v3364 = vpop.permute.xlu0 %3363
        %v3367 = vunpack.c.l.s4 839922192
        %v3368 = vunpack.c.0.s8 %v3367
        %v3369 = vlaneseq
        %v3370 = vshrl.u32 %v3369, 7
        %v3371 = vsub.s32 %v3368, %v3370
        %v3372 = vrot.slane %v3364, %v3371
        %3374 = vset.pattern.permute.xlu0 0
        %3375 = vperm.xlu0 %3374, %v2643
        %v3376 = vpop.permute.xlu0 %3375
        %v3379 = vunpack.c.l.s4 839922192
        %v3380 = vunpack.c.0.s8 %v3379
        %v3381 = vlaneseq
        %v3382 = vshrl.u32 %v3381, 7
        %v3383 = vsub.s32 %v3380, %v3382
        %v3384 = vrot.slane %v3376, %v3383
        %3386 = vset.pattern.permute.xlu0 0
        %3387 = vperm.xlu0 %3386, %v2644
        %v3388 = vpop.permute.xlu0 %3387
        %v3391 = vunpack.c.l.s4 839922192
        %v3392 = vunpack.c.0.s8 %v3391
        %v3393 = vlaneseq
        %v3394 = vshrl.u32 %v3393, 7
        %v3395 = vsub.s32 %v3392, %v3394
        %v3396 = vrot.slane %v3388, %v3395
        %3398 = vset.pattern.permute.xlu0 0
        %3399 = vperm.xlu0 %3398, %v2645
        %v3400 = vpop.permute.xlu0 %3399
        %v3403 = vunpack.c.l.s4 839922192
        %v3404 = vunpack.c.0.s8 %v3403
        %v3405 = vlaneseq
        %v3406 = vshrl.u32 %v3405, 7
        %v3407 = vsub.s32 %v3404, %v3406
        %v3408 = vrot.slane %v3400, %v3407
        %3410 = vset.pattern.permute.xlu0 0
        %3411 = vperm.xlu0 %3410, %v2646
        %v3412 = vpop.permute.xlu0 %3411
        %v3415 = vunpack.c.l.s4 839922192
        %v3416 = vunpack.c.0.s8 %v3415
        %v3417 = vlaneseq
        %v3418 = vshrl.u32 %v3417, 7
        %v3419 = vsub.s32 %v3416, %v3418
        %v3420 = vrot.slane %v3412, %v3419
        %3422 = vset.pattern.permute.xlu0 0
        %3423 = vperm.xlu0 %3422, %v2647
        %v3424 = vpop.permute.xlu0 %3423
        %v3427 = vunpack.c.l.s4 839922192
        %v3428 = vunpack.c.0.s8 %v3427
        %v3429 = vlaneseq
        %v3430 = vshrl.u32 %v3429, 7
        %v3431 = vsub.s32 %v3428, %v3430
        %v3432 = vrot.slane %v3424, %v3431
        %3434 = vset.pattern.permute.xlu0 0
        %3435 = vperm.xlu0 %3434, %v2648
        %v3436 = vpop.permute.xlu0 %3435
        %v3439 = vunpack.c.l.s4 839922192
        %v3440 = vunpack.c.0.s8 %v3439
        %v3441 = vlaneseq
        %v3442 = vshrl.u32 %v3441, 7
        %v3443 = vsub.s32 %v3440, %v3442
        %v3444 = vrot.slane %v3436, %v3443
        %3446 = vset.pattern.permute.xlu0 0
        %3447 = vperm.xlu0 %3446, %v2649
        %v3448 = vpop.permute.xlu0 %3447
        %v3451 = vunpack.c.l.s4 839922192
        %v3452 = vunpack.c.0.s8 %v3451
        %v3453 = vlaneseq
        %v3454 = vshrl.u32 %v3453, 7
        %v3455 = vsub.s32 %v3452, %v3454
        %v3456 = vrot.slane %v3448, %v3455
        %3458 = vset.pattern.permute.xlu0 0
        %3459 = vperm.xlu0 %3458, %v2650
        %v3460 = vpop.permute.xlu0 %3459
        %v3463 = vunpack.c.l.s4 839922192
        %v3464 = vunpack.c.0.s8 %v3463
        %v3465 = vlaneseq
        %v3466 = vshrl.u32 %v3465, 7
        %v3467 = vsub.s32 %v3464, %v3466
        %v3468 = vrot.slane %v3460, %v3467
        %3470 = vset.pattern.permute.xlu0 0
        %3471 = vperm.xlu0 %3470, %v2651
        %v3472 = vpop.permute.xlu0 %3471
        %v3475 = vunpack.c.l.s4 839922192
        %v3476 = vunpack.c.0.s8 %v3475
        %v3477 = vlaneseq
        %v3478 = vshrl.u32 %v3477, 7
        %v3479 = vsub.s32 %v3476, %v3478
        %v3480 = vrot.slane %v3472, %v3479
        %3482 = vset.pattern.permute.xlu0 0
        %3483 = vperm.xlu0 %3482, %v2652
        %v3484 = vpop.permute.xlu0 %3483
        %v3487 = vunpack.c.l.s4 839922192
        %v3488 = vunpack.c.0.s8 %v3487
        %v3489 = vlaneseq
        %v3490 = vshrl.u32 %v3489, 7
        %v3491 = vsub.s32 %v3488, %v3490
        %v3492 = vrot.slane %v3484, %v3491
        %3494 = vset.pattern.permute.xlu0 0
        %3495 = vperm.xlu0 %3494, %v2653
        %v3496 = vpop.permute.xlu0 %3495
        %v3499 = vunpack.c.l.s4 839922192
        %v3500 = vunpack.c.0.s8 %v3499
        %v3501 = vlaneseq
        %v3502 = vshrl.u32 %v3501, 7
        %v3503 = vsub.s32 %v3500, %v3502
        %v3504 = vrot.slane %v3496, %v3503
        %3506 = vset.pattern.permute.xlu0 0
        %3507 = vperm.xlu0 %3506, %v2654
        %v3508 = vpop.permute.xlu0 %3507
        %v3511 = vunpack.c.l.s4 839922192
        %v3512 = vunpack.c.0.s8 %v3511
        %v3513 = vlaneseq
        %v3514 = vshrl.u32 %v3513, 7
        %v3515 = vsub.s32 %v3512, %v3514
        %v3516 = vrot.slane %v3508, %v3515
        %3518 = vset.pattern.permute.xlu0 0
        %3519 = vperm.xlu0 %3518, %v2655
        %v3520 = vpop.permute.xlu0 %3519
        %v3523 = vunpack.c.l.s4 839922192
        %v3524 = vunpack.c.0.s8 %v3523
        %v3525 = vlaneseq
        %v3526 = vshrl.u32 %v3525, 7
        %v3527 = vsub.s32 %v3524, %v3526
        %v3528 = vrot.slane %v3520, %v3527
        %3530 = vset.pattern.permute.xlu0 0
        %3531 = vperm.xlu0 %3530, %v2656
        %v3532 = vpop.permute.xlu0 %3531
        %v3535 = vunpack.c.l.s4 839922192
        %v3536 = vunpack.c.0.s8 %v3535
        %v3537 = vlaneseq
        %v3538 = vshrl.u32 %v3537, 7
        %v3539 = vsub.s32 %v3536, %v3538
        %v3540 = vrot.slane %v3532, %v3539
        %3542 = vset.pattern.permute.xlu0 0
        %3543 = vperm.xlu0 %3542, %v2657
        %v3544 = vpop.permute.xlu0 %3543
        %v3547 = vunpack.c.l.s4 839922192
        %v3548 = vunpack.c.0.s8 %v3547
        %v3549 = vlaneseq
        %v3550 = vshrl.u32 %v3549, 7
        %v3551 = vsub.s32 %v3548, %v3550
        %v3552 = vrot.slane %v3544, %v3551
        %3554 = vset.pattern.permute.xlu0 0
        %3555 = vperm.xlu0 %3554, %v2658
        %v3556 = vpop.permute.xlu0 %3555
        %v3559 = vunpack.c.l.s4 839922192
        %v3560 = vunpack.c.0.s8 %v3559
        %v3561 = vlaneseq
        %v3562 = vshrl.u32 %v3561, 7
        %v3563 = vsub.s32 %v3560, %v3562
        %v3564 = vrot.slane %v3556, %v3563
        %3566 = vset.pattern.permute.xlu0 0
        %3567 = vperm.xlu0 %3566, %v2659
        %v3568 = vpop.permute.xlu0 %3567
        %v3571 = vunpack.c.l.s4 839922192
        %v3572 = vunpack.c.0.s8 %v3571
        %v3573 = vlaneseq
        %v3574 = vshrl.u32 %v3573, 7
        %v3575 = vsub.s32 %v3572, %v3574
        %v3576 = vrot.slane %v3568, %v3575
        %3578 = vset.pattern.permute.xlu0 0
        %3579 = vperm.xlu0 %3578, %v2660
        %v3580 = vpop.permute.xlu0 %3579
        %v3583 = vunpack.c.l.s4 839922192
        %v3584 = vunpack.c.0.s8 %v3583
        %v3585 = vlaneseq
        %v3586 = vshrl.u32 %v3585, 7
        %v3587 = vsub.s32 %v3584, %v3586
        %v3588 = vrot.slane %v3580, %v3587
        %3590 = vset.pattern.permute.xlu0 0
        %3591 = vperm.xlu0 %3590, %v2661
        %v3592 = vpop.permute.xlu0 %3591
        %v3595 = vunpack.c.l.s4 839922192
        %v3596 = vunpack.c.0.s8 %v3595
        %v3597 = vlaneseq
        %v3598 = vshrl.u32 %v3597, 7
        %v3599 = vsub.s32 %v3596, %v3598
        %v3600 = vrot.slane %v3592, %v3599
        %3602 = vset.pattern.permute.xlu0 0
        %3603 = vperm.xlu0 %3602, %v2662
        %v3604 = vpop.permute.xlu0 %3603
        %v3607 = vunpack.c.l.s4 839922192
        %v3608 = vunpack.c.0.s8 %v3607
        %v3609 = vlaneseq
        %v3610 = vshrl.u32 %v3609, 7
        %v3611 = vsub.s32 %v3608, %v3610
        %v3612 = vrot.slane %v3604, %v3611
        %3614 = vset.pattern.permute.xlu0 0
        %3615 = vperm.xlu0 %3614, %v2663
        %v3616 = vpop.permute.xlu0 %3615
        %v3619 = vunpack.c.l.s4 839922192
        %v3620 = vunpack.c.0.s8 %v3619
        %v3621 = vlaneseq
        %v3622 = vshrl.u32 %v3621, 7
        %v3623 = vsub.s32 %v3620, %v3622
        %v3624 = vrot.slane %v3616, %v3623
        %3626 = vset.pattern.permute.xlu0 0
        %3627 = vperm.xlu0 %3626, %v2664
        %v3628 = vpop.permute.xlu0 %3627
        %v3631 = vunpack.c.l.s4 839922192
        %v3632 = vunpack.c.0.s8 %v3631
        %v3633 = vlaneseq
        %v3634 = vshrl.u32 %v3633, 7
        %v3635 = vsub.s32 %v3632, %v3634
        %v3636 = vrot.slane %v3628, %v3635
        %3638 = vset.pattern.permute.xlu0 0
        %3639 = vperm.xlu0 %3638, %v2665
        %v3640 = vpop.permute.xlu0 %3639
        %v3643 = vunpack.c.l.s4 839922192
        %v3644 = vunpack.c.0.s8 %v3643
        %v3645 = vlaneseq
        %v3646 = vshrl.u32 %v3645, 7
        %v3647 = vsub.s32 %v3644, %v3646
        %v3648 = vrot.slane %v3640, %v3647
        %3650 = vset.pattern.permute.xlu0 0
        %3651 = vperm.xlu0 %3650, %v2666
        %v3652 = vpop.permute.xlu0 %3651
        %v3655 = vunpack.c.l.s4 839922192
        %v3656 = vunpack.c.0.s8 %v3655
        %v3657 = vlaneseq
        %v3658 = vshrl.u32 %v3657, 7
        %v3659 = vsub.s32 %v3656, %v3658
        %v3660 = vrot.slane %v3652, %v3659
        %v3693 = vunpack.c.l.b16 %v3288
        %v3694 = vunpack.c.l.b16 %v3300
        %v3695 = vunpack.c.l.b16 %v3312
        %v3696 = vunpack.c.l.b16 %v3324
        %v3697 = vunpack.c.l.b16 %v3336
        %v3698 = vunpack.c.l.b16 %v3348
        %v3699 = vunpack.c.l.b16 %v3360
        %v3700 = vunpack.c.l.b16 %v3372
        %v3701 = vunpack.c.l.b16 %v3384
        %v3702 = vunpack.c.l.b16 %v3396
        %v3703 = vunpack.c.l.b16 %v3408
        %v3704 = vunpack.c.l.b16 %v3420
        %v3705 = vunpack.c.l.b16 %v3432
        %v3706 = vunpack.c.l.b16 %v3444
        %v3707 = vunpack.c.l.b16 %v3456
        %v3708 = vunpack.c.l.b16 %v3468
        %v3709 = vunpack.c.l.b16 %v3480
        %v3710 = vunpack.c.l.b16 %v3492
        %v3711 = vunpack.c.l.b16 %v3504
        %v3712 = vunpack.c.l.b16 %v3516
        %v3713 = vunpack.c.l.b16 %v3528
        %v3714 = vunpack.c.l.b16 %v3540
        %v3715 = vunpack.c.l.b16 %v3552
        %v3716 = vunpack.c.l.b16 %v3564
        %v3717 = vunpack.c.l.b16 %v3576
        %v3718 = vunpack.c.l.b16 %v3588
        %v3719 = vunpack.c.l.b16 %v3600
        %v3720 = vunpack.c.l.b16 %v3612
        %v3721 = vunpack.c.l.b16 %v3624
        %v3722 = vunpack.c.l.b16 %v3636
        %v3723 = vunpack.c.l.b16 %v3648
        %v3724 = vunpack.c.l.b16 %v3660
        %v3725 = vpack.c.b16 %v3694, %v3693
        %v3726 = vpack.c.b16 %v3696, %v3695
        %v3727 = vpack.c.b16 %v3698, %v3697
        %v3728 = vpack.c.b16 %v3700, %v3699
        %v3729 = vpack.c.b16 %v3702, %v3701
        %v3730 = vpack.c.b16 %v3704, %v3703
        %v3731 = vpack.c.b16 %v3706, %v3705
        %v3732 = vpack.c.b16 %v3708, %v3707
        %v3733 = vpack.c.b16 %v3710, %v3709
        %v3734 = vpack.c.b16 %v3712, %v3711
        %v3735 = vpack.c.b16 %v3714, %v3713
        %v3736 = vpack.c.b16 %v3716, %v3715
        %v3737 = vpack.c.b16 %v3718, %v3717
        %v3738 = vpack.c.b16 %v3720, %v3719
        %v3739 = vpack.c.b16 %v3722, %v3721
        %v3740 = vpack.c.b16 %v3724, %v3723
        %v3757 = vadd.bf16 %v3213, %v3725
        %v3758 = vadd.bf16 %v3214, %v3725
        %v3759 = vadd.bf16 %v3215, %v3725
        %v3760 = vadd.bf16 %v3216, %v3725
        %v3761 = vadd.bf16 %v3217, %v3726
        %v3762 = vadd.bf16 %v3218, %v3726
        %v3763 = vadd.bf16 %v3219, %v3726
        %v3764 = vadd.bf16 %v3220, %v3726
        %v3765 = vadd.bf16 %v3221, %v3727
        %v3766 = vadd.bf16 %v3222, %v3727
        %v3767 = vadd.bf16 %v3223, %v3727
        %v3768 = vadd.bf16 %v3224, %v3727
        %v3769 = vadd.bf16 %v3225, %v3728
        %v3770 = vadd.bf16 %v3226, %v3728
        %v3771 = vadd.bf16 %v3227, %v3728
        %v3772 = vadd.bf16 %v3228, %v3728
        %v3773 = vadd.bf16 %v3229, %v3729
        %v3774 = vadd.bf16 %v3230, %v3729
        %v3775 = vadd.bf16 %v3231, %v3729
        %v3776 = vadd.bf16 %v3232, %v3729
        %v3777 = vadd.bf16 %v3233, %v3730
        %v3778 = vadd.bf16 %v3234, %v3730
        %v3779 = vadd.bf16 %v3235, %v3730
        %v3780 = vadd.bf16 %v3236, %v3730
        %v3781 = vadd.bf16 %v3237, %v3731
        %v3782 = vadd.bf16 %v3238, %v3731
        %v3783 = vadd.bf16 %v3239, %v3731
        %v3784 = vadd.bf16 %v3240, %v3731
        %v3785 = vadd.bf16 %v3241, %v3732
        %v3786 = vadd.bf16 %v3242, %v3732
        %v3787 = vadd.bf16 %v3243, %v3732
        %v3788 = vadd.bf16 %v3244, %v3732
        %v3789 = vadd.bf16 %v3245, %v3733
        %v3790 = vadd.bf16 %v3246, %v3733
        %v3791 = vadd.bf16 %v3247, %v3733
        %v3792 = vadd.bf16 %v3248, %v3733
        %v3793 = vadd.bf16 %v3249, %v3734
        %v3794 = vadd.bf16 %v3250, %v3734
        %v3795 = vadd.bf16 %v3251, %v3734
        %v3796 = vadd.bf16 %v3252, %v3734
        %v3797 = vadd.bf16 %v3253, %v3735
        %v3798 = vadd.bf16 %v3254, %v3735
        %v3799 = vadd.bf16 %v3255, %v3735
        %v3800 = vadd.bf16 %v3256, %v3735
        %v3801 = vadd.bf16 %v3257, %v3736
        %v3802 = vadd.bf16 %v3258, %v3736
        %v3803 = vadd.bf16 %v3259, %v3736
        %v3804 = vadd.bf16 %v3260, %v3736
        %v3805 = vadd.bf16 %v3261, %v3737
        %v3806 = vadd.bf16 %v3262, %v3737
        %v3807 = vadd.bf16 %v3263, %v3737
        %v3808 = vadd.bf16 %v3264, %v3737
        %v3809 = vadd.bf16 %v3265, %v3738
        %v3810 = vadd.bf16 %v3266, %v3738
        %v3811 = vadd.bf16 %v3267, %v3738
        %v3812 = vadd.bf16 %v3268, %v3738
        %v3813 = vadd.bf16 %v3269, %v3739
        %v3814 = vadd.bf16 %v3270, %v3739
        %v3815 = vadd.bf16 %v3271, %v3739
        %v3816 = vadd.bf16 %v3272, %v3739
        %v3817 = vadd.bf16 %v3273, %v3740
        %v3818 = vadd.bf16 %v3274, %v3740
        %v3819 = vadd.bf16 %v3275, %v3740
        %v3820 = vadd.bf16 %v3276, %v3740
        %v3821 = vtanh.bf16.pop %v3757
        %v3822 = vtanh.bf16.pop %v3758
        %v3823 = vtanh.bf16.pop %v3759
        %v3824 = vtanh.bf16.pop %v3760
        %v3825 = vtanh.bf16.pop %v3761
        %v3826 = vtanh.bf16.pop %v3762
        %v3827 = vtanh.bf16.pop %v3763
        %v3828 = vtanh.bf16.pop %v3764
        %v3829 = vtanh.bf16.pop %v3765
        %v3830 = vtanh.bf16.pop %v3766
        %v3831 = vtanh.bf16.pop %v3767
        %v3832 = vtanh.bf16.pop %v3768
        %v3833 = vtanh.bf16.pop %v3769
        %v3834 = vtanh.bf16.pop %v3770
        %v3835 = vtanh.bf16.pop %v3771
        %v3836 = vtanh.bf16.pop %v3772
        %v3837 = vtanh.bf16.pop %v3773
        %v3838 = vtanh.bf16.pop %v3774
        %v3839 = vtanh.bf16.pop %v3775
        %v3840 = vtanh.bf16.pop %v3776
        %v3841 = vtanh.bf16.pop %v3777
        %v3842 = vtanh.bf16.pop %v3778
        %v3843 = vtanh.bf16.pop %v3779
        %v3844 = vtanh.bf16.pop %v3780
        %v3845 = vtanh.bf16.pop %v3781
        %v3846 = vtanh.bf16.pop %v3782
        %v3847 = vtanh.bf16.pop %v3783
        %v3848 = vtanh.bf16.pop %v3784
        %v3849 = vtanh.bf16.pop %v3785
        %v3850 = vtanh.bf16.pop %v3786
        %v3851 = vtanh.bf16.pop %v3787
        %v3852 = vtanh.bf16.pop %v3788
        %v3853 = vtanh.bf16.pop %v3789
        %v3854 = vtanh.bf16.pop %v3790
        %v3855 = vtanh.bf16.pop %v3791
        %v3856 = vtanh.bf16.pop %v3792
        %v3857 = vtanh.bf16.pop %v3793
        %v3858 = vtanh.bf16.pop %v3794
        %v3859 = vtanh.bf16.pop %v3795
        %v3860 = vtanh.bf16.pop %v3796
        %v3861 = vtanh.bf16.pop %v3797
        %v3862 = vtanh.bf16.pop %v3798
        %v3863 = vtanh.bf16.pop %v3799
        %v3864 = vtanh.bf16.pop %v3800
        %v3865 = vtanh.bf16.pop %v3801
        %v3866 = vtanh.bf16.pop %v3802
        %v3867 = vtanh.bf16.pop %v3803
        %v3868 = vtanh.bf16.pop %v3804
        %v3869 = vtanh.bf16.pop %v3805
        %v3870 = vtanh.bf16.pop %v3806
        %v3871 = vtanh.bf16.pop %v3807
        %v3872 = vtanh.bf16.pop %v3808
        %v3873 = vtanh.bf16.pop %v3809
        %v3874 = vtanh.bf16.pop %v3810
        %v3875 = vtanh.bf16.pop %v3811
        %v3876 = vtanh.bf16.pop %v3812
        %v3877 = vtanh.bf16.pop %v3813
        %v3878 = vtanh.bf16.pop %v3814
        %v3879 = vtanh.bf16.pop %v3815
        %v3880 = vtanh.bf16.pop %v3816
        %v3881 = vtanh.bf16.pop %v3817
        %v3882 = vtanh.bf16.pop %v3818
        %v3883 = vtanh.bf16.pop %v3819
        %v3884 = vtanh.bf16.pop %v3820
        %v3885 = vld [vmem:[%s9] sm:$0xff]
        %v3886 = vld [vmem:[%s9 + $0x8] sm:$0xff]
        %v3887 = vld [vmem:[%s9 + $0x10] sm:$0xff]
        %v3888 = vld [vmem:[%s9 + $0x18] sm:$0xff]
        %v3889 = vld [vmem:[%s9 + $0x20] sm:$0xff]
        %v3890 = vld [vmem:[%s9 + $0x28] sm:$0xff]
        %v3891 = vld [vmem:[%s9 + $0x30] sm:$0xff]
        %v3892 = vld [vmem:[%s9 + $0x38] sm:$0xff]
        %v3893 = vld [vmem:[%s9 + $0x40] sm:$0xff]
        %v3894 = vld [vmem:[%s9 + $0x48] sm:$0xff]
        %v3895 = vld [vmem:[%s9 + $0x50] sm:$0xff]
        %v3896 = vld [vmem:[%s9 + $0x58] sm:$0xff]
        %v3897 = vld [vmem:[%s9 + $0x60] sm:$0xff]
        %v3898 = vld [vmem:[%s9 + $0x68] sm:$0xff]
        %v3899 = vld [vmem:[%s9 + $0x70] sm:$0xff]
        %v3900 = vld [vmem:[%s9 + $0x78] sm:$0xff]
        %v3901 = vld [vmem:[%s10] sm:$0xf]
        %v3902 = vld [vmem:[%s10 + $0x4] sm:$0xf]
        %v3903 = vld [vmem:[%s10 + $0x8] sm:$0xf]
        %v3904 = vld [vmem:[%s10 + $0xc] sm:$0xf]
        %v3905 = vld [vmem:[%s10 + $0x10] sm:$0xf]
        %v3906 = vld [vmem:[%s10 + $0x14] sm:$0xf]
        %v3907 = vld [vmem:[%s10 + $0x18] sm:$0xf]
        %v3908 = vld [vmem:[%s10 + $0x1c] sm:$0xf]
        %v3909 = vld [vmem:[%s10 + $0x20] sm:$0xf]
        %v3910 = vld [vmem:[%s10 + $0x24] sm:$0xf]
        %v3911 = vld [vmem:[%s10 + $0x28] sm:$0xf]
        %v3912 = vld [vmem:[%s10 + $0x2c] sm:$0xf]
        %v3913 = vld [vmem:[%s10 + $0x30] sm:$0xf]
        %v3914 = vld [vmem:[%s10 + $0x34] sm:$0xf]
        %v3915 = vld [vmem:[%s10 + $0x38] sm:$0xf]
        %v3916 = vld [vmem:[%s10 + $0x3c] sm:$0xf]
        %v3933 = vunpack.c.l.b16 %v3885
        %v3934 = vunpack.c.h.b16 %v3885
        %v3935 = vunpack.c.l.b16 %v3886
        %v3936 = vunpack.c.h.b16 %v3886
        %v3937 = vunpack.c.l.b16 %v3887
        %v3938 = vunpack.c.h.b16 %v3887
        %v3939 = vunpack.c.l.b16 %v3888
        %v3940 = vunpack.c.h.b16 %v3888
        %v3941 = vunpack.c.l.b16 %v3889
        %v3942 = vunpack.c.h.b16 %v3889
        %v3943 = vunpack.c.l.b16 %v3890
        %v3944 = vunpack.c.h.b16 %v3890
        %v3945 = vunpack.c.l.b16 %v3891
        %v3946 = vunpack.c.h.b16 %v3891
        %v3947 = vunpack.c.l.b16 %v3892
        %v3948 = vunpack.c.h.b16 %v3892
        %v3949 = vunpack.c.l.b16 %v3893
        %v3950 = vunpack.c.h.b16 %v3893
        %v3951 = vunpack.c.l.b16 %v3894
        %v3952 = vunpack.c.h.b16 %v3894
        %v3953 = vunpack.c.l.b16 %v3895
        %v3954 = vunpack.c.h.b16 %v3895
        %v3955 = vunpack.c.l.b16 %v3896
        %v3956 = vunpack.c.h.b16 %v3896
        %v3957 = vunpack.c.l.b16 %v3897
        %v3958 = vunpack.c.h.b16 %v3897
        %v3959 = vunpack.c.l.b16 %v3898
        %v3960 = vunpack.c.h.b16 %v3898
        %v3961 = vunpack.c.l.b16 %v3899
        %v3962 = vunpack.c.h.b16 %v3899
        %v3963 = vunpack.c.l.b16 %v3900
        %v3964 = vunpack.c.h.b16 %v3900
        %v3965 = vpack.c.b16 %v3935, %v3933
        %v3966 = vpack.c.b16 %v3936, %v3934
        %v3967 = vpack.c.b16 %v3939, %v3937
        %v3968 = vpack.c.b16 %v3940, %v3938
        %v3969 = vpack.c.b16 %v3943, %v3941
        %v3970 = vpack.c.b16 %v3944, %v3942
        %v3971 = vpack.c.b16 %v3947, %v3945
        %v3972 = vpack.c.b16 %v3948, %v3946
        %v3973 = vpack.c.b16 %v3951, %v3949
        %v3974 = vpack.c.b16 %v3952, %v3950
        %v3975 = vpack.c.b16 %v3955, %v3953
        %v3976 = vpack.c.b16 %v3956, %v3954
        %v3977 = vpack.c.b16 %v3959, %v3957
        %v3978 = vpack.c.b16 %v3960, %v3958
        %v3979 = vpack.c.b16 %v3963, %v3961
        %v3980 = vpack.c.b16 %v3964, %v3962
        %3997 = vmatprep.subr.bf16.mxu0 %v3850
        %3998 = vmatpush1.bf16.msra.mxu0 %v3849
        %3999 = vmatprep.subr.bf16.mxu0 %v3846
        %4000 = vmatpush1.bf16.msra.mxu0 %v3845
        %4001 = vmatprep.subr.bf16.mxu0 %v3842
        %4002 = vmatpush1.bf16.msra.mxu0 %v3841
        %4003 = vmatprep.subr.bf16.mxu0 %v3838
        %4004 = vmatpush1.bf16.msra.mxu0 %v3837
        %4005 = vmatprep.subr.bf16.mxu0 %v3834
        %4006 = vmatpush1.bf16.msra.mxu0 %v3833
        %4007 = vmatprep.subr.bf16.mxu0 %v3830
        %4008 = vmatpush1.bf16.msra.mxu0 %v3829
        %4009 = vmatprep.subr.bf16.mxu0 %v3826
        %4010 = vmatpush1.bf16.msra.mxu0 %v3825
        %4011 = vmatprep.subr.bf16.mxu0 %v3822
        %4012 = vmatpush1.bf16.msra.mxu0 %v3821
        %4013 = vmatprep.subr.bf16.mxu0 %v3882
        %4014 = vmatpush2.bf16.msra.mxu0 %v3881
        %4015 = vmatprep.subr.bf16.mxu0 %v3878
        %4016 = vmatpush2.bf16.msra.mxu0 %v3877
        %4017 = vmatprep.subr.bf16.mxu0 %v3874
        %4018 = vmatpush2.bf16.msra.mxu0 %v3873
        %4019 = vmatprep.subr.bf16.mxu0 %v3870
        %4020 = vmatpush2.bf16.msra.mxu0 %v3869
        %4021 = vmatprep.subr.bf16.mxu0 %v3866
        %4022 = vmatpush2.bf16.msra.mxu0 %v3865
        %4023 = vmatprep.subr.bf16.mxu0 %v3862
        %4024 = vmatpush2.bf16.msra.mxu0 %v3861
        %4025 = vmatprep.subr.bf16.mxu0 %v3858
        %4026 = vmatpush2.bf16.msra.mxu0 %v3857
        %4027 = vmatprep.subr.bf16.mxu0 %v3854
        %4028 = vmatpush2.bf16.msra.mxu0 %v3853
        %4029 = vmatprep.mubr.bf16.mxu0 %v3966
        %4030 = vmatmul.mubr.bf16.gmra.mxu0 %v3965
        %v4031 = vpop.f32.mrf.mxu0
        %v4032 = vadd.f32 0.0, %v4031
        %v4033 = vpop.f32.mrf.mxu0
        %v4034 = vadd.f32 0.0, %v4033
        %v4035 = vpop.f32.mrf.mxu0
        %v4036 = vadd.f32 0.0, %v4035
        %v4037 = vpop.f32.mrf.mxu0
        %v4038 = vadd.f32 0.0, %v4037
        %4039 = vmatprep.mubr.bf16.mxu0 %v3968
        %4040 = vmatmul.mubr.bf16.gmra.mxu0 %v3967
        %v4041 = vpop.f32.mrf.mxu0
        %v4042 = vadd.f32 0.0, %v4041
        %v4043 = vpop.f32.mrf.mxu0
        %v4044 = vadd.f32 0.0, %v4043
        %v4045 = vpop.f32.mrf.mxu0
        %v4046 = vadd.f32 0.0, %v4045
        %v4047 = vpop.f32.mrf.mxu0
        %v4048 = vadd.f32 0.0, %v4047
        %4049 = vmatprep.mubr.bf16.mxu0 %v3970
        %4050 = vmatmul.mubr.bf16.gmra.mxu0 %v3969
        %v4051 = vpop.f32.mrf.mxu0
        %v4052 = vadd.f32 0.0, %v4051
        %v4053 = vpop.f32.mrf.mxu0
        %v4054 = vadd.f32 0.0, %v4053
        %v4055 = vpop.f32.mrf.mxu0
        %v4056 = vadd.f32 0.0, %v4055
        %v4057 = vpop.f32.mrf.mxu0
        %v4058 = vadd.f32 0.0, %v4057
        %4059 = vmatprep.mubr.bf16.mxu0 %v3972
        %4060 = vmatmul.mubr.bf16.gmra.mxu0 %v3971
        %v4061 = vpop.f32.mrf.mxu0
        %v4062 = vadd.f32 0.0, %v4061
        %v4063 = vpop.f32.mrf.mxu0
        %v4064 = vadd.f32 0.0, %v4063
        %v4065 = vpop.f32.mrf.mxu0
        %v4066 = vadd.f32 0.0, %v4065
        %v4067 = vpop.f32.mrf.mxu0
        %v4068 = vadd.f32 0.0, %v4067
        %4069 = vmatprep.mubr.bf16.mxu0 %v3974
        %4070 = vmatmul.mubr.bf16.gmra.mxu0 %v3973
        %v4071 = vpop.f32.mrf.mxu0
        %v4072 = vadd.f32 0.0, %v4071
        %v4073 = vpop.f32.mrf.mxu0
        %v4074 = vadd.f32 0.0, %v4073
        %v4075 = vpop.f32.mrf.mxu0
        %v4076 = vadd.f32 0.0, %v4075
        %v4077 = vpop.f32.mrf.mxu0
        %v4078 = vadd.f32 0.0, %v4077
        %4079 = vmatprep.mubr.bf16.mxu0 %v3976
        %4080 = vmatmul.mubr.bf16.gmra.mxu0 %v3975
        %v4081 = vpop.f32.mrf.mxu0
        %v4082 = vadd.f32 0.0, %v4081
        %v4083 = vpop.f32.mrf.mxu0
        %v4084 = vadd.f32 0.0, %v4083
        %v4085 = vpop.f32.mrf.mxu0
        %v4086 = vadd.f32 0.0, %v4085
        %v4087 = vpop.f32.mrf.mxu0
        %v4088 = vadd.f32 0.0, %v4087
        %4089 = vmatprep.mubr.bf16.mxu0 %v3978
        %4090 = vmatmul.mubr.bf16.gmra.mxu0 %v3977
        %v4091 = vpop.f32.mrf.mxu0
        %v4092 = vadd.f32 0.0, %v4091
        %v4093 = vpop.f32.mrf.mxu0
        %v4094 = vadd.f32 0.0, %v4093
        %v4095 = vpop.f32.mrf.mxu0
        %v4096 = vadd.f32 0.0, %v4095
        %v4097 = vpop.f32.mrf.mxu0
        %v4098 = vadd.f32 0.0, %v4097
        %4099 = vmatprep.mubr.bf16.mxu0 %v3980
        %4100 = vmatmul.mubr.bf16.gmra.mxu0 %v3979
        %v4101 = vpop.f32.mrf.mxu0
        %v4102 = vadd.f32 0.0, %v4101
        %v4103 = vpop.f32.mrf.mxu0
        %v4104 = vadd.f32 0.0, %v4103
        %v4105 = vpop.f32.mrf.mxu0
        %v4106 = vadd.f32 0.0, %v4105
        %v4107 = vpop.f32.mrf.mxu0
        %v4108 = vadd.f32 0.0, %v4107
        %4109 = vdwg.mxu0
        %4110 = vmatprep.subr.bf16.mxu0 %v3852
        %4111 = vmatpush1.bf16.msra.mxu0 %v3851
        %4112 = vmatprep.subr.bf16.mxu0 %v3848
        %4113 = vmatpush1.bf16.msra.mxu0 %v3847
        %4114 = vmatprep.subr.bf16.mxu0 %v3844
        %4115 = vmatpush1.bf16.msra.mxu0 %v3843
        %4116 = vmatprep.subr.bf16.mxu0 %v3840
        %4117 = vmatpush1.bf16.msra.mxu0 %v3839
        %4118 = vmatprep.subr.bf16.mxu0 %v3836
        %4119 = vmatpush1.bf16.msra.mxu0 %v3835
        %4120 = vmatprep.subr.bf16.mxu0 %v3832
        %4121 = vmatpush1.bf16.msra.mxu0 %v3831
        %4122 = vmatprep.subr.bf16.mxu0 %v3828
        %4123 = vmatpush1.bf16.msra.mxu0 %v3827
        %4124 = vmatprep.subr.bf16.mxu0 %v3824
        %4125 = vmatpush1.bf16.msra.mxu0 %v3823
        %4126 = vmatprep.subr.bf16.mxu0 %v3884
        %4127 = vmatpush2.bf16.msra.mxu0 %v3883
        %4128 = vmatprep.subr.bf16.mxu0 %v3880
        %4129 = vmatpush2.bf16.msra.mxu0 %v3879
        %4130 = vmatprep.subr.bf16.mxu0 %v3876
        %4131 = vmatpush2.bf16.msra.mxu0 %v3875
        %4132 = vmatprep.subr.bf16.mxu0 %v3872
        %4133 = vmatpush2.bf16.msra.mxu0 %v3871
        %4134 = vmatprep.subr.bf16.mxu0 %v3868
        %4135 = vmatpush2.bf16.msra.mxu0 %v3867
        %4136 = vmatprep.subr.bf16.mxu0 %v3864
        %4137 = vmatpush2.bf16.msra.mxu0 %v3863
        %4138 = vmatprep.subr.bf16.mxu0 %v3860
        %4139 = vmatpush2.bf16.msra.mxu0 %v3859
        %4140 = vmatprep.subr.bf16.mxu0 %v3856
        %4141 = vmatpush2.bf16.msra.mxu0 %v3855
        %4142 = vmatprep.mubr.bf16.mxu0 %v3966
        %4143 = vmatmul.mubr.bf16.gmra.mxu0 %v3965
        %v4144 = vpop.f32.mrf.mxu0
        %v4145 = vadd.f32 0.0, %v4144
        %v4146 = vpop.f32.mrf.mxu0
        %v4147 = vadd.f32 0.0, %v4146
        %v4148 = vpop.f32.mrf.mxu0
        %v4149 = vadd.f32 0.0, %v4148
        %v4150 = vpop.f32.mrf.mxu0
        %v4151 = vadd.f32 0.0, %v4150
        %4152 = vmatprep.mubr.bf16.mxu0 %v3968
        %4153 = vmatmul.mubr.bf16.gmra.mxu0 %v3967
        %v4154 = vpop.f32.mrf.mxu0
        %v4155 = vadd.f32 0.0, %v4154
        %v4156 = vpop.f32.mrf.mxu0
        %v4157 = vadd.f32 0.0, %v4156
        %v4158 = vpop.f32.mrf.mxu0
        %v4159 = vadd.f32 0.0, %v4158
        %v4160 = vpop.f32.mrf.mxu0
        %v4161 = vadd.f32 0.0, %v4160
        %4162 = vmatprep.mubr.bf16.mxu0 %v3970
        %4163 = vmatmul.mubr.bf16.gmra.mxu0 %v3969
        %v4164 = vpop.f32.mrf.mxu0
        %v4165 = vadd.f32 0.0, %v4164
        %v4166 = vpop.f32.mrf.mxu0
        %v4167 = vadd.f32 0.0, %v4166
        %v4168 = vpop.f32.mrf.mxu0
        %v4169 = vadd.f32 0.0, %v4168
        %v4170 = vpop.f32.mrf.mxu0
        %v4171 = vadd.f32 0.0, %v4170
        %4172 = vmatprep.mubr.bf16.mxu0 %v3972
        %4173 = vmatmul.mubr.bf16.gmra.mxu0 %v3971
        %v4174 = vpop.f32.mrf.mxu0
        %v4175 = vadd.f32 0.0, %v4174
        %v4176 = vpop.f32.mrf.mxu0
        %v4177 = vadd.f32 0.0, %v4176
        %v4178 = vpop.f32.mrf.mxu0
        %v4179 = vadd.f32 0.0, %v4178
        %v4180 = vpop.f32.mrf.mxu0
        %v4181 = vadd.f32 0.0, %v4180
        %4182 = vmatprep.mubr.bf16.mxu0 %v3974
        %4183 = vmatmul.mubr.bf16.gmra.mxu0 %v3973
        %v4184 = vpop.f32.mrf.mxu0
        %v4185 = vadd.f32 0.0, %v4184
        %v4186 = vpop.f32.mrf.mxu0
        %v4187 = vadd.f32 0.0, %v4186
        %v4188 = vpop.f32.mrf.mxu0
        %v4189 = vadd.f32 0.0, %v4188
        %v4190 = vpop.f32.mrf.mxu0
        %v4191 = vadd.f32 0.0, %v4190
        %4192 = vmatprep.mubr.bf16.mxu0 %v3976
        %4193 = vmatmul.mubr.bf16.gmra.mxu0 %v3975
        %v4194 = vpop.f32.mrf.mxu0
        %v4195 = vadd.f32 0.0, %v4194
        %v4196 = vpop.f32.mrf.mxu0
        %v4197 = vadd.f32 0.0, %v4196
        %v4198 = vpop.f32.mrf.mxu0
        %v4199 = vadd.f32 0.0, %v4198
        %v4200 = vpop.f32.mrf.mxu0
        %v4201 = vadd.f32 0.0, %v4200
        %4202 = vmatprep.mubr.bf16.mxu0 %v3978
        %4203 = vmatmul.mubr.bf16.gmra.mxu0 %v3977
        %v4204 = vpop.f32.mrf.mxu0
        %v4205 = vadd.f32 0.0, %v4204
        %v4206 = vpop.f32.mrf.mxu0
        %v4207 = vadd.f32 0.0, %v4206
        %v4208 = vpop.f32.mrf.mxu0
        %v4209 = vadd.f32 0.0, %v4208
        %v4210 = vpop.f32.mrf.mxu0
        %v4211 = vadd.f32 0.0, %v4210
        %4212 = vmatprep.mubr.bf16.mxu0 %v3980
        %4213 = vmatmul.mubr.bf16.gmra.mxu0 %v3979
        %v4214 = vpop.f32.mrf.mxu0
        %v4215 = vadd.f32 0.0, %v4214
        %v4216 = vpop.f32.mrf.mxu0
        %v4217 = vadd.f32 0.0, %v4216
        %v4218 = vpop.f32.mrf.mxu0
        %v4219 = vadd.f32 0.0, %v4218
        %v4220 = vpop.f32.mrf.mxu0
        %v4221 = vadd.f32 0.0, %v4220
        %4222 = vdwg.mxu0
        %v4223 = vpack.c.bf16 %v4036, %v4032
        %v4224 = vpack.c.bf16 %v4038, %v4034
        %v4225 = vpack.c.bf16 %v4149, %v4145
        %v4226 = vpack.c.bf16 %v4151, %v4147
        %v4227 = vpack.c.bf16 %v4046, %v4042
        %v4228 = vpack.c.bf16 %v4048, %v4044
        %v4229 = vpack.c.bf16 %v4159, %v4155
        %v4230 = vpack.c.bf16 %v4161, %v4157
        %v4231 = vpack.c.bf16 %v4056, %v4052
        %v4232 = vpack.c.bf16 %v4058, %v4054
        %v4233 = vpack.c.bf16 %v4169, %v4165
        %v4234 = vpack.c.bf16 %v4171, %v4167
        %v4235 = vpack.c.bf16 %v4066, %v4062
        %v4236 = vpack.c.bf16 %v4068, %v4064
        %v4237 = vpack.c.bf16 %v4179, %v4175
        %v4238 = vpack.c.bf16 %v4181, %v4177
        %v4239 = vpack.c.bf16 %v4076, %v4072
        %v4240 = vpack.c.bf16 %v4078, %v4074
        %v4241 = vpack.c.bf16 %v4189, %v4185
        %v4242 = vpack.c.bf16 %v4191, %v4187
        %v4243 = vpack.c.bf16 %v4086, %v4082
        %v4244 = vpack.c.bf16 %v4088, %v4084
        %v4245 = vpack.c.bf16 %v4199, %v4195
        %v4246 = vpack.c.bf16 %v4201, %v4197
        %v4247 = vpack.c.bf16 %v4096, %v4092
        %v4248 = vpack.c.bf16 %v4098, %v4094
        %v4249 = vpack.c.bf16 %v4209, %v4205
        %v4250 = vpack.c.bf16 %v4211, %v4207
        %v4251 = vpack.c.bf16 %v4106, %v4102
        %v4252 = vpack.c.bf16 %v4108, %v4104
        %v4253 = vpack.c.bf16 %v4219, %v4215
        %v4254 = vpack.c.bf16 %v4221, %v4217
        %4256 = vset.pattern.permute.xlu0 0
        %4257 = vperm.xlu0 %4256, %v3901
        %v4258 = vpop.permute.xlu0 %4257
        %v4261 = vunpack.c.l.s4 839922192
        %v4262 = vunpack.c.0.s8 %v4261
        %v4263 = vlaneseq
        %v4264 = vshrl.u32 %v4263, 7
        %v4265 = vsub.s32 %v4262, %v4264
        %v4266 = vrot.slane %v4258, %v4265
        %4268 = vset.pattern.permute.xlu0 0
        %4269 = vperm.xlu0 %4268, %v3902
        %v4270 = vpop.permute.xlu0 %4269
        %v4273 = vunpack.c.l.s4 839922192
        %v4274 = vunpack.c.0.s8 %v4273
        %v4275 = vlaneseq
        %v4276 = vshrl.u32 %v4275, 7
        %v4277 = vsub.s32 %v4274, %v4276
        %v4278 = vrot.slane %v4270, %v4277
        %4280 = vset.pattern.permute.xlu0 0
        %4281 = vperm.xlu0 %4280, %v3903
        %v4282 = vpop.permute.xlu0 %4281
        %v4285 = vunpack.c.l.s4 839922192
        %v4286 = vunpack.c.0.s8 %v4285
        %v4287 = vlaneseq
        %v4288 = vshrl.u32 %v4287, 7
        %v4289 = vsub.s32 %v4286, %v4288
        %v4290 = vrot.slane %v4282, %v4289
        %4292 = vset.pattern.permute.xlu0 0
        %4293 = vperm.xlu0 %4292, %v3904
        %v4294 = vpop.permute.xlu0 %4293
        %v4297 = vunpack.c.l.s4 839922192
        %v4298 = vunpack.c.0.s8 %v4297
        %v4299 = vlaneseq
        %v4300 = vshrl.u32 %v4299, 7
        %v4301 = vsub.s32 %v4298, %v4300
        %v4302 = vrot.slane %v4294, %v4301
        %4304 = vset.pattern.permute.xlu0 0
        %4305 = vperm.xlu0 %4304, %v3905
        %v4306 = vpop.permute.xlu0 %4305
        %v4309 = vunpack.c.l.s4 839922192
        %v4310 = vunpack.c.0.s8 %v4309
        %v4311 = vlaneseq
        %v4312 = vshrl.u32 %v4311, 7
        %v4313 = vsub.s32 %v4310, %v4312
        %v4314 = vrot.slane %v4306, %v4313
        %4316 = vset.pattern.permute.xlu0 0
        %4317 = vperm.xlu0 %4316, %v3906
        %v4318 = vpop.permute.xlu0 %4317
        %v4321 = vunpack.c.l.s4 839922192
        %v4322 = vunpack.c.0.s8 %v4321
        %v4323 = vlaneseq
        %v4324 = vshrl.u32 %v4323, 7
        %v4325 = vsub.s32 %v4322, %v4324
        %v4326 = vrot.slane %v4318, %v4325
        %4328 = vset.pattern.permute.xlu0 0
        %4329 = vperm.xlu0 %4328, %v3907
        %v4330 = vpop.permute.xlu0 %4329
        %v4333 = vunpack.c.l.s4 839922192
        %v4334 = vunpack.c.0.s8 %v4333
        %v4335 = vlaneseq
        %v4336 = vshrl.u32 %v4335, 7
        %v4337 = vsub.s32 %v4334, %v4336
        %v4338 = vrot.slane %v4330, %v4337
        %4340 = vset.pattern.permute.xlu0 0
        %4341 = vperm.xlu0 %4340, %v3908
        %v4342 = vpop.permute.xlu0 %4341
        %v4345 = vunpack.c.l.s4 839922192
        %v4346 = vunpack.c.0.s8 %v4345
        %v4347 = vlaneseq
        %v4348 = vshrl.u32 %v4347, 7
        %v4349 = vsub.s32 %v4346, %v4348
        %v4350 = vrot.slane %v4342, %v4349
        %4352 = vset.pattern.permute.xlu0 0
        %4353 = vperm.xlu0 %4352, %v3909
        %v4354 = vpop.permute.xlu0 %4353
        %v4357 = vunpack.c.l.s4 839922192
        %v4358 = vunpack.c.0.s8 %v4357
        %v4359 = vlaneseq
        %v4360 = vshrl.u32 %v4359, 7
        %v4361 = vsub.s32 %v4358, %v4360
        %v4362 = vrot.slane %v4354, %v4361
        %4364 = vset.pattern.permute.xlu0 0
        %4365 = vperm.xlu0 %4364, %v3910
        %v4366 = vpop.permute.xlu0 %4365
        %v4369 = vunpack.c.l.s4 839922192
        %v4370 = vunpack.c.0.s8 %v4369
        %v4371 = vlaneseq
        %v4372 = vshrl.u32 %v4371, 7
        %v4373 = vsub.s32 %v4370, %v4372
        %v4374 = vrot.slane %v4366, %v4373
        %4376 = vset.pattern.permute.xlu0 0
        %4377 = vperm.xlu0 %4376, %v3911
        %v4378 = vpop.permute.xlu0 %4377
        %v4381 = vunpack.c.l.s4 839922192
        %v4382 = vunpack.c.0.s8 %v4381
        %v4383 = vlaneseq
        %v4384 = vshrl.u32 %v4383, 7
        %v4385 = vsub.s32 %v4382, %v4384
        %v4386 = vrot.slane %v4378, %v4385
        %4388 = vset.pattern.permute.xlu0 0
        %4389 = vperm.xlu0 %4388, %v3912
        %v4390 = vpop.permute.xlu0 %4389
        %v4393 = vunpack.c.l.s4 839922192
        %v4394 = vunpack.c.0.s8 %v4393
        %v4395 = vlaneseq
        %v4396 = vshrl.u32 %v4395, 7
        %v4397 = vsub.s32 %v4394, %v4396
        %v4398 = vrot.slane %v4390, %v4397
        %4400 = vset.pattern.permute.xlu0 0
        %4401 = vperm.xlu0 %4400, %v3913
        %v4402 = vpop.permute.xlu0 %4401
        %v4405 = vunpack.c.l.s4 839922192
        %v4406 = vunpack.c.0.s8 %v4405
        %v4407 = vlaneseq
        %v4408 = vshrl.u32 %v4407, 7
        %v4409 = vsub.s32 %v4406, %v4408
        %v4410 = vrot.slane %v4402, %v4409
        %4412 = vset.pattern.permute.xlu0 0
        %4413 = vperm.xlu0 %4412, %v3914
        %v4414 = vpop.permute.xlu0 %4413
        %v4417 = vunpack.c.l.s4 839922192
        %v4418 = vunpack.c.0.s8 %v4417
        %v4419 = vlaneseq
        %v4420 = vshrl.u32 %v4419, 7
        %v4421 = vsub.s32 %v4418, %v4420
        %v4422 = vrot.slane %v4414, %v4421
        %4424 = vset.pattern.permute.xlu0 0
        %4425 = vperm.xlu0 %4424, %v3915
        %v4426 = vpop.permute.xlu0 %4425
        %v4429 = vunpack.c.l.s4 839922192
        %v4430 = vunpack.c.0.s8 %v4429
        %v4431 = vlaneseq
        %v4432 = vshrl.u32 %v4431, 7
        %v4433 = vsub.s32 %v4430, %v4432
        %v4434 = vrot.slane %v4426, %v4433
        %4436 = vset.pattern.permute.xlu0 0
        %4437 = vperm.xlu0 %4436, %v3916
        %v4438 = vpop.permute.xlu0 %4437
        %v4441 = vunpack.c.l.s4 839922192
        %v4442 = vunpack.c.0.s8 %v4441
        %v4443 = vlaneseq
        %v4444 = vshrl.u32 %v4443, 7
        %v4445 = vsub.s32 %v4442, %v4444
        %v4446 = vrot.slane %v4438, %v4445
        %v4463 = vunpack.c.l.b16 %v4266
        %v4464 = vunpack.c.l.b16 %v4278
        %v4465 = vunpack.c.l.b16 %v4290
        %v4466 = vunpack.c.l.b16 %v4302
        %v4467 = vunpack.c.l.b16 %v4314
        %v4468 = vunpack.c.l.b16 %v4326
        %v4469 = vunpack.c.l.b16 %v4338
        %v4470 = vunpack.c.l.b16 %v4350
        %v4471 = vunpack.c.l.b16 %v4362
        %v4472 = vunpack.c.l.b16 %v4374
        %v4473 = vunpack.c.l.b16 %v4386
        %v4474 = vunpack.c.l.b16 %v4398
        %v4475 = vunpack.c.l.b16 %v4410
        %v4476 = vunpack.c.l.b16 %v4422
        %v4477 = vunpack.c.l.b16 %v4434
        %v4478 = vunpack.c.l.b16 %v4446
        %v4479 = vpack.c.b16 %v4464, %v4463
        %v4480 = vpack.c.b16 %v4466, %v4465
        %v4481 = vpack.c.b16 %v4468, %v4467
        %v4482 = vpack.c.b16 %v4470, %v4469
        %v4483 = vpack.c.b16 %v4472, %v4471
        %v4484 = vpack.c.b16 %v4474, %v4473
        %v4485 = vpack.c.b16 %v4476, %v4475
        %v4486 = vpack.c.b16 %v4478, %v4477
        %v4495 = vadd.bf16 %v4223, %v4479
        %v4496 = vadd.bf16 %v4224, %v4479
        %v4497 = vadd.bf16 %v4225, %v4479
        %v4498 = vadd.bf16 %v4226, %v4479
        %v4499 = vadd.bf16 %v4227, %v4480
        %v4500 = vadd.bf16 %v4228, %v4480
        %v4501 = vadd.bf16 %v4229, %v4480
        %v4502 = vadd.bf16 %v4230, %v4480
        %v4503 = vadd.bf16 %v4231, %v4481
        %v4504 = vadd.bf16 %v4232, %v4481
        %v4505 = vadd.bf16 %v4233, %v4481
        %v4506 = vadd.bf16 %v4234, %v4481
        %v4507 = vadd.bf16 %v4235, %v4482
        %v4508 = vadd.bf16 %v4236, %v4482
        %v4509 = vadd.bf16 %v4237, %v4482
        %v4510 = vadd.bf16 %v4238, %v4482
        %v4511 = vadd.bf16 %v4239, %v4483
        %v4512 = vadd.bf16 %v4240, %v4483
        %v4513 = vadd.bf16 %v4241, %v4483
        %v4514 = vadd.bf16 %v4242, %v4483
        %v4515 = vadd.bf16 %v4243, %v4484
        %v4516 = vadd.bf16 %v4244, %v4484
        %v4517 = vadd.bf16 %v4245, %v4484
        %v4518 = vadd.bf16 %v4246, %v4484
        %v4519 = vadd.bf16 %v4247, %v4485
        %v4520 = vadd.bf16 %v4248, %v4485
        %v4521 = vadd.bf16 %v4249, %v4485
        %v4522 = vadd.bf16 %v4250, %v4485
        %v4523 = vadd.bf16 %v4251, %v4486
        %v4524 = vadd.bf16 %v4252, %v4486
        %v4525 = vadd.bf16 %v4253, %v4486
        %v4526 = vadd.bf16 %v4254, %v4486
        %v4527 = vtanh.bf16.pop %v4495
        %v4528 = vtanh.bf16.pop %v4496
        %v4529 = vtanh.bf16.pop %v4497
        %v4530 = vtanh.bf16.pop %v4498
        %v4531 = vtanh.bf16.pop %v4499
        %v4532 = vtanh.bf16.pop %v4500
        %v4533 = vtanh.bf16.pop %v4501
        %v4534 = vtanh.bf16.pop %v4502
        %v4535 = vtanh.bf16.pop %v4503
        %v4536 = vtanh.bf16.pop %v4504
        %v4537 = vtanh.bf16.pop %v4505
        %v4538 = vtanh.bf16.pop %v4506
        %v4539 = vtanh.bf16.pop %v4507
        %v4540 = vtanh.bf16.pop %v4508
        %v4541 = vtanh.bf16.pop %v4509
        %v4542 = vtanh.bf16.pop %v4510
        %v4543 = vtanh.bf16.pop %v4511
        %v4544 = vtanh.bf16.pop %v4512
        %v4545 = vtanh.bf16.pop %v4513
        %v4546 = vtanh.bf16.pop %v4514
        %v4547 = vtanh.bf16.pop %v4515
        %v4548 = vtanh.bf16.pop %v4516
        %v4549 = vtanh.bf16.pop %v4517
        %v4550 = vtanh.bf16.pop %v4518
        %v4551 = vtanh.bf16.pop %v4519
        %v4552 = vtanh.bf16.pop %v4520
        %v4553 = vtanh.bf16.pop %v4521
        %v4554 = vtanh.bf16.pop %v4522
        %v4555 = vtanh.bf16.pop %v4523
        %v4556 = vtanh.bf16.pop %v4524
        %v4557 = vtanh.bf16.pop %v4525
        %v4558 = vtanh.bf16.pop %v4526
        %v4559 = vld [vmem:[%s11] sm:$0xf]
        %v4560 = vld [vmem:[%s11 + $0x4] sm:$0xf]
        %v4561 = vld [vmem:[%s11 + $0x8] sm:$0xf]
        %v4562 = vld [vmem:[%s11 + $0xc] sm:$0xf]
        %v4563 = vld [vmem:[%s11 + $0x10] sm:$0xf]
        %v4564 = vld [vmem:[%s11 + $0x14] sm:$0xf]
        %v4565 = vld [vmem:[%s11 + $0x18] sm:$0xf]
        %v4566 = vld [vmem:[%s11 + $0x1c] sm:$0xf]
        %v4567 = vld [vmem:[%s12] sm:$0xf]
        %v4568 = vld [vmem:[%s12 + $0x4] sm:$0xf]
        %v4569 = vld [vmem:[%s12 + $0x8] sm:$0xf]
        %v4570 = vld [vmem:[%s12 + $0xc] sm:$0xf]
        %v4571 = vld [vmem:[%s12 + $0x10] sm:$0xf]
        %v4572 = vld [vmem:[%s12 + $0x14] sm:$0xf]
        %v4573 = vld [vmem:[%s12 + $0x18] sm:$0xf]
        %v4574 = vld [vmem:[%s12 + $0x1c] sm:$0xf]
        %v4583 = vunpack.c.l.b16 %v4559
        %v4584 = vunpack.c.l.b16 %v4560
        %v4585 = vunpack.c.l.b16 %v4561
        %v4586 = vunpack.c.l.b16 %v4562
        %v4587 = vunpack.c.l.b16 %v4563
        %v4588 = vunpack.c.l.b16 %v4564
        %v4589 = vunpack.c.l.b16 %v4565
        %v4590 = vunpack.c.l.b16 %v4566
        %v4591 = vpack.c.b16 %v4584, %v4583
        %v4592 = vpack.c.b16 %v4586, %v4585
        %v4593 = vpack.c.b16 %v4588, %v4587
        %v4594 = vpack.c.b16 %v4590, %v4589
        %4599 = vmatprep.subr.bf16.mxu0 %v4556
        %4600 = vmatpush1.bf16.msra.mxu0 %v4555
        %4601 = vmatprep.subr.bf16.mxu0 %v4552
        %4602 = vmatpush1.bf16.msra.mxu0 %v4551
        %4603 = vmatprep.subr.bf16.mxu0 %v4548
        %4604 = vmatpush1.bf16.msra.mxu0 %v4547
        %4605 = vmatprep.subr.bf16.mxu0 %v4544
        %4606 = vmatpush1.bf16.msra.mxu0 %v4543
        %4607 = vmatprep.subr.bf16.mxu0 %v4540
        %4608 = vmatpush1.bf16.msra.mxu0 %v4539
        %4609 = vmatprep.subr.bf16.mxu0 %v4536
        %4610 = vmatpush1.bf16.msra.mxu0 %v4535
        %4611 = vmatprep.subr.bf16.mxu0 %v4532
        %4612 = vmatpush1.bf16.msra.mxu0 %v4531
        %4613 = vmatprep.subr.bf16.mxu0 %v4528
        %4614 = vmatpush1.bf16.msra.mxu0 %v4527
        %4615 = vmatprep.subr.bf16.mxu0 0
        %4616 = vmatpush2.bf16.msra.mxu0 0
        %4617 = vmatprep.subr.bf16.mxu0 0
        %4618 = vmatpush2.bf16.msra.mxu0 0
        %4619 = vmatprep.subr.bf16.mxu0 0
        %4620 = vmatpush2.bf16.msra.mxu0 0
        %4621 = vmatprep.subr.bf16.mxu0 0
        %4622 = vmatpush2.bf16.msra.mxu0 0
        %4623 = vmatprep.subr.bf16.mxu0 0
        %4624 = vmatpush2.bf16.msra.mxu0 0
        %4625 = vmatprep.subr.bf16.mxu0 0
        %4626 = vmatpush2.bf16.msra.mxu0 0
        %4627 = vmatprep.subr.bf16.mxu0 0
        %4628 = vmatpush2.bf16.msra.mxu0 0
        %4629 = vmatprep.subr.bf16.mxu0 0
        %4630 = vmatpush2.bf16.msra.mxu0 0
        %4631 = vmatprep.mubr.bf16.mxu0 0
        %4632 = vmatmul.mubr.bf16.gmra.mxu0 %v4591
        %v4633 = vpop.f32.mrf.mxu0
        %v4634 = vadd.f32 0.0, %v4633
        %v4635 = vpop.f32.mrf.mxu0
        %v4636 = vadd.f32 0.0, %v4635
        %v4637 = vpop.f32.mrf.mxu0
        %v4638 = vadd.f32 0.0, %v4637
        %v4639 = vpop.f32.mrf.mxu0
        %v4640 = vadd.f32 0.0, %v4639
        %4641 = vmatprep.mubr.bf16.mxu0 0
        %4642 = vmatmul.mubr.bf16.gmra.mxu0 %v4592
        %v4643 = vpop.f32.mrf.mxu0
        %v4644 = vadd.f32 0.0, %v4643
        %v4645 = vpop.f32.mrf.mxu0
        %v4646 = vadd.f32 0.0, %v4645
        %v4647 = vpop.f32.mrf.mxu0
        %v4648 = vadd.f32 0.0, %v4647
        %v4649 = vpop.f32.mrf.mxu0
        %v4650 = vadd.f32 0.0, %v4649
        %4651 = vmatprep.mubr.bf16.mxu0 0
        %4652 = vmatmul.mubr.bf16.gmra.mxu0 %v4593
        %v4653 = vpop.f32.mrf.mxu0
        %v4654 = vadd.f32 0.0, %v4653
        %v4655 = vpop.f32.mrf.mxu0
        %v4656 = vadd.f32 0.0, %v4655
        %v4657 = vpop.f32.mrf.mxu0
        %v4658 = vadd.f32 0.0, %v4657
        %v4659 = vpop.f32.mrf.mxu0
        %v4660 = vadd.f32 0.0, %v4659
        %4661 = vmatprep.mubr.bf16.mxu0 0
        %4662 = vmatmul.mubr.bf16.gmra.mxu0 %v4594
        %v4663 = vpop.f32.mrf.mxu0
        %v4664 = vadd.f32 0.0, %v4663
        %v4665 = vpop.f32.mrf.mxu0
        %v4666 = vadd.f32 0.0, %v4665
        %v4667 = vpop.f32.mrf.mxu0
        %v4668 = vadd.f32 0.0, %v4667
        %v4669 = vpop.f32.mrf.mxu0
        %v4670 = vadd.f32 0.0, %v4669
        %4671 = vdwg.mxu0
        %4672 = vmatprep.subr.bf16.mxu0 %v4558
        %4673 = vmatpush1.bf16.msra.mxu0 %v4557
        %4674 = vmatprep.subr.bf16.mxu0 %v4554
        %4675 = vmatpush1.bf16.msra.mxu0 %v4553
        %4676 = vmatprep.subr.bf16.mxu0 %v4550
        %4677 = vmatpush1.bf16.msra.mxu0 %v4549
        %4678 = vmatprep.subr.bf16.mxu0 %v4546
        %4679 = vmatpush1.bf16.msra.mxu0 %v4545
        %4680 = vmatprep.subr.bf16.mxu0 %v4542
        %4681 = vmatpush1.bf16.msra.mxu0 %v4541
        %4682 = vmatprep.subr.bf16.mxu0 %v4538
        %4683 = vmatpush1.bf16.msra.mxu0 %v4537
        %4684 = vmatprep.subr.bf16.mxu0 %v4534
        %4685 = vmatpush1.bf16.msra.mxu0 %v4533
        %4686 = vmatprep.subr.bf16.mxu0 %v4530
        %4687 = vmatpush1.bf16.msra.mxu0 %v4529
        %4688 = vmatprep.subr.bf16.mxu0 0
        %4689 = vmatpush2.bf16.msra.mxu0 0
        %4690 = vmatprep.subr.bf16.mxu0 0
        %4691 = vmatpush2.bf16.msra.mxu0 0
        %4692 = vmatprep.subr.bf16.mxu0 0
        %4693 = vmatpush2.bf16.msra.mxu0 0
        %4694 = vmatprep.subr.bf16.mxu0 0
        %4695 = vmatpush2.bf16.msra.mxu0 0
        %4696 = vmatprep.subr.bf16.mxu0 0
        %4697 = vmatpush2.bf16.msra.mxu0 0
        %4698 = vmatprep.subr.bf16.mxu0 0
        %4699 = vmatpush2.bf16.msra.mxu0 0
        %4700 = vmatprep.subr.bf16.mxu0 0
        %4701 = vmatpush2.bf16.msra.mxu0 0
        %4702 = vmatprep.subr.bf16.mxu0 0
        %4703 = vmatpush2.bf16.msra.mxu0 0
        %4704 = vmatprep.mubr.bf16.mxu0 0
        %4705 = vmatmul.mubr.bf16.gmra.mxu0 %v4591
        %v4706 = vpop.f32.mrf.mxu0
        %v4707 = vadd.f32 0.0, %v4706
        %v4708 = vpop.f32.mrf.mxu0
        %v4709 = vadd.f32 0.0, %v4708
        %v4710 = vpop.f32.mrf.mxu0
        %v4711 = vadd.f32 0.0, %v4710
        %v4712 = vpop.f32.mrf.mxu0
        %v4713 = vadd.f32 0.0, %v4712
        %4714 = vmatprep.mubr.bf16.mxu0 0
        %4715 = vmatmul.mubr.bf16.gmra.mxu0 %v4592
        %v4716 = vpop.f32.mrf.mxu0
        %v4717 = vadd.f32 0.0, %v4716
        %v4718 = vpop.f32.mrf.mxu0
        %v4719 = vadd.f32 0.0, %v4718
        %v4720 = vpop.f32.mrf.mxu0
        %v4721 = vadd.f32 0.0, %v4720
        %v4722 = vpop.f32.mrf.mxu0
        %v4723 = vadd.f32 0.0, %v4722
        %4724 = vmatprep.mubr.bf16.mxu0 0
        %4725 = vmatmul.mubr.bf16.gmra.mxu0 %v4593
        %v4726 = vpop.f32.mrf.mxu0
        %v4727 = vadd.f32 0.0, %v4726
        %v4728 = vpop.f32.mrf.mxu0
        %v4729 = vadd.f32 0.0, %v4728
        %v4730 = vpop.f32.mrf.mxu0
        %v4731 = vadd.f32 0.0, %v4730
        %v4732 = vpop.f32.mrf.mxu0
        %v4733 = vadd.f32 0.0, %v4732
        %4734 = vmatprep.mubr.bf16.mxu0 0
        %4735 = vmatmul.mubr.bf16.gmra.mxu0 %v4594
        %v4736 = vpop.f32.mrf.mxu0
        %v4737 = vadd.f32 0.0, %v4736
        %v4738 = vpop.f32.mrf.mxu0
        %v4739 = vadd.f32 0.0, %v4738
        %v4740 = vpop.f32.mrf.mxu0
        %v4741 = vadd.f32 0.0, %v4740
        %v4742 = vpop.f32.mrf.mxu0
        %v4743 = vadd.f32 0.0, %v4742
        %4744 = vdwg.mxu0
        %v4745 = vpack.c.bf16 %v4638, %v4634
        %v4746 = vpack.c.bf16 %v4640, %v4636
        %v4747 = vpack.c.bf16 %v4711, %v4707
        %v4748 = vpack.c.bf16 %v4713, %v4709
        %v4749 = vpack.c.bf16 %v4648, %v4644
        %v4750 = vpack.c.bf16 %v4650, %v4646
        %v4751 = vpack.c.bf16 %v4721, %v4717
        %v4752 = vpack.c.bf16 %v4723, %v4719
        %v4753 = vpack.c.bf16 %v4658, %v4654
        %v4754 = vpack.c.bf16 %v4660, %v4656
        %v4755 = vpack.c.bf16 %v4731, %v4727
        %v4756 = vpack.c.bf16 %v4733, %v4729
        %v4757 = vpack.c.bf16 %v4668, %v4664
        %v4758 = vpack.c.bf16 %v4670, %v4666
        %v4759 = vpack.c.bf16 %v4741, %v4737
        %v4760 = vpack.c.bf16 %v4743, %v4739
        %4762 = vset.pattern.permute.xlu0 0
        %4763 = vperm.xlu0 %4762, %v4567
        %v4764 = vpop.permute.xlu0 %4763
        %v4767 = vunpack.c.l.s4 839922192
        %v4768 = vunpack.c.0.s8 %v4767
        %v4769 = vlaneseq
        %v4770 = vshrl.u32 %v4769, 7
        %v4771 = vsub.s32 %v4768, %v4770
        %v4772 = vrot.slane %v4764, %v4771
        %4774 = vset.pattern.permute.xlu0 0
        %4775 = vperm.xlu0 %4774, %v4568
        %v4776 = vpop.permute.xlu0 %4775
        %v4779 = vunpack.c.l.s4 839922192
        %v4780 = vunpack.c.0.s8 %v4779
        %v4781 = vlaneseq
        %v4782 = vshrl.u32 %v4781, 7
        %v4783 = vsub.s32 %v4780, %v4782
        %v4784 = vrot.slane %v4776, %v4783
        %4786 = vset.pattern.permute.xlu0 0
        %4787 = vperm.xlu0 %4786, %v4569
        %v4788 = vpop.permute.xlu0 %4787
        %v4791 = vunpack.c.l.s4 839922192
        %v4792 = vunpack.c.0.s8 %v4791
        %v4793 = vlaneseq
        %v4794 = vshrl.u32 %v4793, 7
        %v4795 = vsub.s32 %v4792, %v4794
        %v4796 = vrot.slane %v4788, %v4795
        %4798 = vset.pattern.permute.xlu0 0
        %4799 = vperm.xlu0 %4798, %v4570
        %v4800 = vpop.permute.xlu0 %4799
        %v4803 = vunpack.c.l.s4 839922192
        %v4804 = vunpack.c.0.s8 %v4803
        %v4805 = vlaneseq
        %v4806 = vshrl.u32 %v4805, 7
        %v4807 = vsub.s32 %v4804, %v4806
        %v4808 = vrot.slane %v4800, %v4807
        %4810 = vset.pattern.permute.xlu0 0
        %4811 = vperm.xlu0 %4810, %v4571
        %v4812 = vpop.permute.xlu0 %4811
        %v4815 = vunpack.c.l.s4 839922192
        %v4816 = vunpack.c.0.s8 %v4815
        %v4817 = vlaneseq
        %v4818 = vshrl.u32 %v4817, 7
        %v4819 = vsub.s32 %v4816, %v4818
        %v4820 = vrot.slane %v4812, %v4819
        %4822 = vset.pattern.permute.xlu0 0
        %4823 = vperm.xlu0 %4822, %v4572
        %v4824 = vpop.permute.xlu0 %4823
        %v4827 = vunpack.c.l.s4 839922192
        %v4828 = vunpack.c.0.s8 %v4827
        %v4829 = vlaneseq
        %v4830 = vshrl.u32 %v4829, 7
        %v4831 = vsub.s32 %v4828, %v4830
        %v4832 = vrot.slane %v4824, %v4831
        %4834 = vset.pattern.permute.xlu0 0
        %4835 = vperm.xlu0 %4834, %v4573
        %v4836 = vpop.permute.xlu0 %4835
        %v4839 = vunpack.c.l.s4 839922192
        %v4840 = vunpack.c.0.s8 %v4839
        %v4841 = vlaneseq
        %v4842 = vshrl.u32 %v4841, 7
        %v4843 = vsub.s32 %v4840, %v4842
        %v4844 = vrot.slane %v4836, %v4843
        %4846 = vset.pattern.permute.xlu0 0
        %4847 = vperm.xlu0 %4846, %v4574
        %v4848 = vpop.permute.xlu0 %4847
        %v4851 = vunpack.c.l.s4 839922192
        %v4852 = vunpack.c.0.s8 %v4851
        %v4853 = vlaneseq
        %v4854 = vshrl.u32 %v4853, 7
        %v4855 = vsub.s32 %v4852, %v4854
        %v4856 = vrot.slane %v4848, %v4855
        %v4865 = vunpack.c.l.b16 %v4772
        %v4866 = vunpack.c.l.b16 %v4784
        %v4867 = vunpack.c.l.b16 %v4796
        %v4868 = vunpack.c.l.b16 %v4808
        %v4869 = vunpack.c.l.b16 %v4820
        %v4870 = vunpack.c.l.b16 %v4832
        %v4871 = vunpack.c.l.b16 %v4844
        %v4872 = vunpack.c.l.b16 %v4856
        %v4873 = vpack.c.b16 %v4866, %v4865
        %v4874 = vpack.c.b16 %v4868, %v4867
        %v4875 = vpack.c.b16 %v4870, %v4869
        %v4876 = vpack.c.b16 %v4872, %v4871
        %v4881 = vadd.bf16 %v4745, %v4873
        %v4882 = vadd.bf16 %v4746, %v4873
        %v4883 = vadd.bf16 %v4747, %v4873
        %v4884 = vadd.bf16 %v4748, %v4873
        %v4885 = vadd.bf16 %v4749, %v4874
        %v4886 = vadd.bf16 %v4750, %v4874
        %v4887 = vadd.bf16 %v4751, %v4874
        %v4888 = vadd.bf16 %v4752, %v4874
        %v4889 = vadd.bf16 %v4753, %v4875
        %v4890 = vadd.bf16 %v4754, %v4875
        %v4891 = vadd.bf16 %v4755, %v4875
        %v4892 = vadd.bf16 %v4756, %v4875
        %v4893 = vadd.bf16 %v4757, %v4876
        %v4894 = vadd.bf16 %v4758, %v4876
        %v4895 = vadd.bf16 %v4759, %v4876
        %v4896 = vadd.bf16 %v4760, %v4876
        %v4897 = vtanh.bf16.pop %v4881
        %v4898 = vtanh.bf16.pop %v4882
        %v4899 = vtanh.bf16.pop %v4883
        %v4900 = vtanh.bf16.pop %v4884
        %v4901 = vtanh.bf16.pop %v4885
        %v4902 = vtanh.bf16.pop %v4886
        %v4903 = vtanh.bf16.pop %v4887
        %v4904 = vtanh.bf16.pop %v4888
        %v4905 = vtanh.bf16.pop %v4889
        %v4906 = vtanh.bf16.pop %v4890
        %v4907 = vtanh.bf16.pop %v4891
        %v4908 = vtanh.bf16.pop %v4892
        %v4909 = vtanh.bf16.pop %v4893
        %v4910 = vtanh.bf16.pop %v4894
        %v4911 = vtanh.bf16.pop %v4895
        %v4912 = vtanh.bf16.pop %v4896
        %v4913 = vld [vmem:[%s13] sm:$0xff]
        %v4914 = vld [vmem:[%s13 + $0x8] sm:$0xff]
        %v4915 = vld [vmem:[%s13 + $0x10] sm:$0xff]
        %v4916 = vld [vmem:[%s13 + $0x18] sm:$0xff]
        %v4917 = vld [vmem:[%s13 + $0x20] sm:$0xff]
        %v4918 = vld [vmem:[%s13 + $0x28] sm:$0xff]
        %v4919 = vld [vmem:[%s13 + $0x30] sm:$0xff]
        %v4920 = vld [vmem:[%s13 + $0x38] sm:$0xff]
        %v4921 = vld [vmem:[#allocation2] sm:$0x1]
        %v4922 = vunpack.c.l.bf16 %v4897
        %v4923 = vunpack.c.l.bf16 %v4898
        %v4924 = vunpack.c.l.bf16 %v4899
        %v4925 = vunpack.c.l.bf16 %v4900
        %v4926 = vunpack.c.h.bf16 %v4897
        %v4927 = vunpack.c.h.bf16 %v4898
        %v4928 = vunpack.c.h.bf16 %v4899
        %v4929 = vunpack.c.h.bf16 %v4900
        %v4930 = vunpack.c.l.bf16 %v4901
        %v4931 = vunpack.c.l.bf16 %v4902
        %v4932 = vunpack.c.l.bf16 %v4903
        %v4933 = vunpack.c.l.bf16 %v4904
        %v4934 = vunpack.c.h.bf16 %v4901
        %v4935 = vunpack.c.h.bf16 %v4902
        %v4936 = vunpack.c.h.bf16 %v4903
        %v4937 = vunpack.c.h.bf16 %v4904
        %v4938 = vunpack.c.l.bf16 %v4905
        %v4939 = vunpack.c.l.bf16 %v4906
        %v4940 = vunpack.c.l.bf16 %v4907
        %v4941 = vunpack.c.l.bf16 %v4908
        %v4942 = vunpack.c.h.bf16 %v4905
        %v4943 = vunpack.c.h.bf16 %v4906
        %v4944 = vunpack.c.h.bf16 %v4907
        %v4945 = vunpack.c.h.bf16 %v4908
        %v4946 = vunpack.c.l.bf16 %v4909
        %v4947 = vunpack.c.l.bf16 %v4910
        %v4948 = vunpack.c.l.bf16 %v4911
        %v4949 = vunpack.c.l.bf16 %v4912
        %v4950 = vunpack.c.h.bf16 %v4909
        %v4951 = vunpack.c.h.bf16 %v4910
        %v4952 = vunpack.c.h.bf16 %v4911
        %v4953 = vunpack.c.h.bf16 %v4912
        %4955 = vset.pattern.permute.xlu0 0
        %4956 = vperm.xlu0 %4955, %v4913
        %v4957 = vpop.permute.xlu0 %4956
        %4960 = vset.pattern.permute.xlu0 0
        %4961 = vperm.xlu0 %4960, %v4914
        %v4962 = vpop.permute.xlu0 %4961
        %4965 = vset.pattern.permute.xlu0 0
        %4966 = vperm.xlu0 %4965, %v4915
        %v4967 = vpop.permute.xlu0 %4966
        %4970 = vset.pattern.permute.xlu0 0
        %4971 = vperm.xlu0 %4970, %v4916
        %v4972 = vpop.permute.xlu0 %4971
        %4975 = vset.pattern.permute.xlu0 0
        %4976 = vperm.xlu0 %4975, %v4917
        %v4977 = vpop.permute.xlu0 %4976
        %4980 = vset.pattern.permute.xlu0 0
        %4981 = vperm.xlu0 %4980, %v4918
        %v4982 = vpop.permute.xlu0 %4981
        %4985 = vset.pattern.permute.xlu0 0
        %4986 = vperm.xlu0 %4985, %v4919
        %v4987 = vpop.permute.xlu0 %4986
        %4990 = vset.pattern.permute.xlu0 0
        %4991 = vperm.xlu0 %4990, %v4920
        %v4992 = vpop.permute.xlu0 %4991
        %v4994 = vmul.f32 %v4957, %v4922
        %v4995 = vmul.f32 %v4957, %v4923
        %v4996 = vmul.f32 %v4957, %v4924
        %v4997 = vmul.f32 %v4957, %v4925
        %v4998 = vmul.f32 %v4962, %v4926
        %v4999 = vmul.f32 %v4962, %v4927
        %v5000 = vmul.f32 %v4962, %v4928
        %v5001 = vmul.f32 %v4962, %v4929
        %v5002 = vmul.f32 %v4967, %v4930
        %v5003 = vmul.f32 %v4967, %v4931
        %v5004 = vmul.f32 %v4967, %v4932
        %v5005 = vmul.f32 %v4967, %v4933
        %v5006 = vmul.f32 %v4972, %v4934
        %v5007 = vmul.f32 %v4972, %v4935
        %v5008 = vmul.f32 %v4972, %v4936
        %v5009 = vmul.f32 %v4972, %v4937
        %v5010 = vmul.f32 %v4977, %v4938
        %v5011 = vmul.f32 %v4977, %v4939
        %v5012 = vmul.f32 %v4977, %v4940
        %v5013 = vmul.f32 %v4977, %v4941
        %v5014 = vmul.f32 %v4982, %v4942
        %v5015 = vmul.f32 %v4982, %v4943
        %v5016 = vmul.f32 %v4982, %v4944
        %v5017 = vmul.f32 %v4982, %v4945
        %v5018 = vmul.f32 %v4987, %v4946
        %v5019 = vmul.f32 %v4987, %v4947
        %v5020 = vmul.f32 %v4987, %v4948
        %v5021 = vmul.f32 %v4987, %v4949
        %v5022 = vmul.f32 %v4992, %v4950
        %v5023 = vmul.f32 %v4992, %v4951
        %v5024 = vmul.f32 %v4992, %v4952
        %v5025 = vmul.f32 %v4992, %v4953
        %v5026 = vadd.f32 %v4994, %v4998
        %v5027 = vadd.f32 %v5026, %v5002
        %v5028 = vadd.f32 %v5027, %v5006
        %v5029 = vadd.f32 %v5028, %v5010
        %v5030 = vadd.f32 %v5029, %v5014
        %v5031 = vadd.f32 %v5030, %v5018
        %v5032 = vadd.f32 %v5031, %v5022
        %v5033 = vrot.slane %v5032, 4
        %v5034 = vadd.f32 %v5032, %v5033
        %v5035 = vrot.slane %v5034, 2
        %v5036 = vadd.f32 %v5034, %v5035
        %v5037 = vrot.slane %v5036, 1
        %v5038 = vadd.f32 %v5036, %v5037
        %v5039 = vadd.f32 %v4995, %v4999
        %v5040 = vadd.f32 %v5039, %v5003
        %v5041 = vadd.f32 %v5040, %v5007
        %v5042 = vadd.f32 %v5041, %v5011
        %v5043 = vadd.f32 %v5042, %v5015
        %v5044 = vadd.f32 %v5043, %v5019
        %v5045 = vadd.f32 %v5044, %v5023
        %v5046 = vrot.slane %v5045, 4
        %v5047 = vadd.f32 %v5045, %v5046
        %v5048 = vrot.slane %v5047, 2
        %v5049 = vadd.f32 %v5047, %v5048
        %v5050 = vrot.slane %v5049, 1
        %v5051 = vadd.f32 %v5049, %v5050
        %v5052 = vadd.f32 %v4996, %v5000
        %v5053 = vadd.f32 %v5052, %v5004
        %v5054 = vadd.f32 %v5053, %v5008
        %v5055 = vadd.f32 %v5054, %v5012
        %v5056 = vadd.f32 %v5055, %v5016
        %v5057 = vadd.f32 %v5056, %v5020
        %v5058 = vadd.f32 %v5057, %v5024
        %v5059 = vrot.slane %v5058, 4
        %v5060 = vadd.f32 %v5058, %v5059
        %v5061 = vrot.slane %v5060, 2
        %v5062 = vadd.f32 %v5060, %v5061
        %v5063 = vrot.slane %v5062, 1
        %v5064 = vadd.f32 %v5062, %v5063
        %v5065 = vadd.f32 %v4997, %v5001
        %v5066 = vadd.f32 %v5065, %v5005
        %v5067 = vadd.f32 %v5066, %v5009
        %v5068 = vadd.f32 %v5067, %v5013
        %v5069 = vadd.f32 %v5068, %v5017
        %v5070 = vadd.f32 %v5069, %v5021
        %v5071 = vadd.f32 %v5070, %v5025
        %v5072 = vrot.slane %v5071, 4
        %v5073 = vadd.f32 %v5071, %v5072
        %v5074 = vrot.slane %v5073, 2
        %v5075 = vadd.f32 %v5073, %v5074
        %v5076 = vrot.slane %v5075, 1
        %v5077 = vadd.f32 %v5075, %v5076
        %5079 = vset.pattern.permute.xlu0 0
        %5080 = vperm.xlu0 %5079, %v4921
        %v5081 = vpop.permute.xlu0 %5080
        %v5083 = vlaneseq
        %v5084 = vshrl.u32 %v5083, 7
        %v5085 = vsub.s32 0, %v5084
        %v5086 = vrot.slane %v5081, %v5085
        %v5087 = vadd.f32 %v5038, %v5086
        %v5088 = vadd.f32 %v5051, %v5086
        %v5089 = vadd.f32 %v5064, %v5086
        %v5090 = vadd.f32 %v5077, %v5086
        %v5095 = vcombine.low %v5087, %v5088
        %v5096 = vcombine.low %v5089, %v5090
        %v5098 = vunpack.c.l.s4 1966171168
        %v5099 = vunpack.c.0.s8 %v5098
        %v5100 = vlaneseq
        %v5101 = vshrl.u32 %v5100, 7
        %v5102 = vsub.s32 %v5099, %v5101
        %v5103 = vrot.slane %v5095, %v5102
        %v5105 = vunpack.c.l.s4 1966171168
        %v5106 = vunpack.c.0.s8 %v5105
        %v5107 = vlaneseq
        %v5108 = vshrl.u32 %v5107, 7
        %v5109 = vsub.s32 %v5106, %v5108
        %v5110 = vrot.slane %v5096, %v5109
        %v5111 = vcombine.low %v5103, %v5110
        %v5113 = vunpack.c.l.s4 1966171168
        %v5114 = vunpack.c.0.s8 %v5113
        %v5115 = vlaneseq
        %v5116 = vshrl.u32 %v5115, 7
        %v5117 = vsub.s32 %v5114, %v5116
        %v5118 = vrot.slane %v5111, %v5117
        %v5120 = vlaneseq
        %vm5121 = vcmp.ge.s32.totalorder %v5120, 0
        %vm5122 = vcmp.lt.s32.totalorder %v5120, 512
        %vm5123 = vmand %vm5121, %vm5122
        %5124 = vst.msk [vmem:[%s488] sm:$0xf] %vm5123, %v5118
        %s5125 = sand.u32 %s359, 1
        %s5126 = scalar_lea.sflag [#allocation4], %s5125
        %s5127 = sand.u32 %s359, 1
        %s5128 = smul.addr %s5127, 4
        %s5129 = scalar_lea.vmem [#allocation3], %s5128
        // Predicated region
        $region81: #{deeper_model_forward.1} parent=79 // pred_check
          %p5130 = pneg %p369
        $region82: #{deeper_model_forward.1} parent=79 // pred_check_branch
          %5132 = sbr.rel (%p5130) target = $region84
        $region83: #{deeper_model_forward.1} parent=79 // pred_region
          %s5133 = smul.u32 4, %s31
          %s5135 = ssub.s32 64, 64
          %5136 = vsyncadd %s5126, %s5135
          %s5137 = smul.addr %s5133, 16
          %s5138 = scalar_lea.hbm %s15, %s5137
          %s5140 = sshll.u32 %s5129, 4
          %s5141 = int_to_ptr.vmem [resolvable:$true] %s5140
          %5143 = dma.vmem_to_hbm [thread:$0]  %s5141, 64, %s5138, %s5126
        $region84: #{deeper_model_forward.1} parent=79 // pred_fallthru
          _
      $region80: #{deeper_model_forward.1} parent=5 // pred_fallthru
        _
      %p5144 = scmp.le.s32.totalorder 2, %s26
      // Predicated region
      $region85: #{deeper_model_forward.1} parent=5 // pred_check
        %p5145 = pneg %p5144
      $region86: #{deeper_model_forward.1} parent=5 // pred_check_branch
        %5147 = sbr.rel (%p5145) target = $region88
      $region87: #{deeper_model_forward.1} parent=5 // pred_region
        %s5148 = ssub.s32 %s26, 2
        // Predicated region
        $region89: #{deeper_model_forward.1} parent=87 // pred_check
          %p5149 = pneg %p375
        $region90: #{deeper_model_forward.1} parent=87 // pred_check_branch
          %5151 = sbr.rel (%p5149) target = $region92
        $region91: #{deeper_model_forward.1} parent=87 // pred_region
          %s5152 = sand.u32 %s360, 1
          %s5153 = scalar_lea.sflag [#allocation4], %s5152
          %s5154 = sand.u32 %s360, 1
          %s5155 = smul.addr %s5154, 4
          %s5156 = scalar_lea.vmem [#allocation3], %s5155
          %5157 = dma.done %s5153, 64
        $region92: #{deeper_model_forward.1} parent=87 // pred_fallthru
          _
      $region88: #{deeper_model_forward.1} parent=5 // pred_fallthru
        _
    $region6: #{deeper_model_forward.1} parent=1 // loop_footer
      %s30 = sadd.s32 1, %s26
    $region7: #{deeper_model_forward.1} parent=1 // loop_footer_branch
      %25 = sbr.rel target = $region3
    $region8: #{deeper_model_forward.1} parent=1 // loop_exit
      _
    %5158 = vsyncpa [#allocation4], 1
    %s5159 = scalar_lea.sflag [#allocation4], 1
    %5160 = vsyncpa %s5159, 1

</llo_original>
